<compile_context>
chip_gen: v6e
topology: v6e:2x2x1
jax: 0.10.0
libtpu: 0.0.40
codegen_flags: <defaults>
</compile_context>

<pallas_src>
import math
import functools

import jax
import jax.numpy as jnp
from jax.experimental import pallas as pl
from jax.experimental.pallas import tpu as pltpu


# ------------------------------ fused kernel -------------------------------

def _decoder_step_kernel(
        ids_ref,                      # [B] int32, SMEM (scalar prefetch)
        emb_hbm,                      # [V, emb]  embedding table, stays in HBM (pl.ANY)
        hidden_ref,                   # [L, B, hid]
        enc_ref,                      # [S, B, hid]  native seq-major layout
        sa_wv, sa_bv, sa_wo, sa_bo,   # self-attention (Sc==1 => k-proj has no effect)
        ea_wkv, ea_bkv, ea_wo, ea_bo, ea_seg,
        *rest,
        n_layers, num_heads):
    gru_refs = rest[:4 * n_layers]
    out_w, out_b = rest[4 * n_layers:4 * n_layers + 2]
    pred_ref, hid_out_ref = rest[4 * n_layers + 2:4 * n_layers + 4]
    emb_buf, dma_sem = rest[4 * n_layers + 4:]

    B = emb_buf.shape[0]
    S = enc_ref.shape[0]
    hid = enc_ref.shape[2]

    # ---- 1. issue embedding row gather DMAs (ids in SMEM; rows HBM -> VMEM) ----
    copies = []
    for b in range(B):
        cp = pltpu.make_async_copy(emb_hbm.at[pl.ds(ids_ref[b], 1)],
                                   emb_buf.at[pl.ds(b, 1)],
                                   dma_sem.at[b])
        cp.start()
        copies.append(cp)

    # ---- 2. encoder K/V projection (largest matmul) overlaps the gather DMAs ----
    c2 = enc_ref[...].reshape(S * B, hid)               # leading-dim collapse, no relayout
    kv = jnp.dot(c2, ea_wkv[...], preferred_element_type=jnp.float32) + ea_bkv[...]
    k = kv[:, :hid]                                     # lane-aligned slices (hid % 128 == 0)
    v = kv[:, hid:]

    for cp in copies:
        cp.wait()
    emb = emb_buf[...]                                  # [B, emb]

    # ---- 3. self-attention over the single decoder position --------------------
    # Sq == Sc == 1: softmax over one key is exactly 1, so out = o_proj(v_proj(emb)).
    sa_v = jnp.dot(emb, sa_wv[...], preferred_element_type=jnp.float32) + sa_bv[...]
    sa_out = jnp.dot(sa_v, sa_wo[...], preferred_element_type=jnp.float32) + sa_bo[...]
    x = emb + sa_out                                    # dropout1 = identity (eval)

    # ---- 4. GRU stack: two fused gate matmuls per layer (no per-gate matmuls) ---
    for layer in range(n_layers):
        w_ih, w_hh, b_ih, b_hh = gru_refs[4 * layer:4 * layer + 4]
        h = hidden_ref[layer]                           # [B, hid]
        gi = jnp.dot(x, w_ih[...], preferred_element_type=jnp.float32) + b_ih[...]
        gh = jnp.dot(h, w_hh[...], preferred_element_type=jnp.float32) + b_hh[...]
        r = jax.nn.sigmoid(gi[:, :hid] + gh[:, :hid])
        z = jax.nn.sigmoid(gi[:, hid:2 * hid] + gh[:, hid:2 * hid])
        n = jnp.tanh(gi[:, 2 * hid:] + r * gh[:, 2 * hid:])
        h_new = (1.0 - z) * n + z * h
        hid_out_ref[layer] = h_new
        x = h_new                                       # inter-layer dropout = identity
    gru_out = x                                         # [B, hid]

    # ---- 5. encoder attention; per-head logits via block-diagonal segment matmul
    head_dim = hid // num_heads
    scale = 1.0 / math.sqrt(head_dim)
    q_rep = jnp.broadcast_to(gru_out[None, :, :], (S, B, hid)).reshape(S * B, hid)
    # each head's logit replicated across that head's lane block -> no per-head loop
    logits = jnp.dot(q_rep * k, ea_seg[...], preferred_element_type=jnp.float32) * scale
    logits = logits.reshape(S, B, hid)
    m = jnp.max(logits, axis=0, keepdims=True)
    e = jnp.exp(logits - m)
    denom = jnp.sum(e, axis=0, keepdims=True)
    attn = e * pl.reciprocal(denom, approx=True)
    vals = jnp.sum(attn * v.reshape(S, B, hid), axis=0)  # [B, hid]
    ea_out = jnp.dot(vals, ea_wo[...], preferred_element_type=jnp.float32) + ea_bo[...]
    out = gru_out + ea_out                               # dropout = identity (eval)

    # ---- 6. output projection (lane-dense vocab last dim) -----------------------
    pred_ref[...] = jnp.dot(out, out_w[...], preferred_element_type=jnp.float32) + out_b[...]


def decoder_cnn_forward(params, tokens, hidden, encoder_outputs, *, n_layers, num_heads=4):
    """tokens [B] int32, hidden [L, B, hid], encoder_outputs [S, B, hid]
       -> (prediction [B, output_dim], new_hidden [L, B, hid]) — one fused pallas_call."""
    L, B, hid_dim = hidden.shape
    emb_dim = params["emb"].shape[1]
    vocab = params["out_w"].shape[1]
    head_dim = hid_dim // num_heads

    # block-diagonal head-segment matrix (constant under jit)
    lane = jnp.arange(hid_dim, dtype=jnp.int32) // head_dim
    ea_seg = (lane[:, None] == lane[None, :]).astype(jnp.float32)        # [hid, hid]

    inputs = [tokens, params["emb"], hidden, encoder_outputs,
              params["sa_wv"], params["sa_bv"], params["sa_wo"], params["sa_bo"],
              params["ea_wkv"], params["ea_bkv"], params["ea_wo"], params["ea_bo"], ea_seg]
    for g in params["gru"]:
        inputs += [g["w_ih"], g["w_hh"], g["b_ih"], g["b_hh"]]
    inputs += [params["out_w"], params["out_b"]]

    def _full_spec(a):
        zeros = (0,) * a.ndim

        def imap(i, ids):
            del i, ids
            return zeros
        return pl.BlockSpec(a.shape, imap)

    in_specs = [pl.BlockSpec(memory_space=pl.ANY)]      # embedding table stays in HBM
    in_specs += [_full_spec(a) for a in inputs[2:]]     # everything else whole-array in VMEM

    kernel = functools.partial(_decoder_step_kernel, n_layers=n_layers, num_heads=num_heads)

    pred, new_hidden = pl.pallas_call(
        kernel,
        out_shape=(jax.ShapeDtypeStruct((B, vocab), jnp.float32),
                   jax.ShapeDtypeStruct((L, B, hid_dim), jnp.float32)),
        grid_spec=pltpu.PrefetchScalarGridSpec(
            num_scalar_prefetch=1,
            grid=(1,),
            in_specs=in_specs,
            out_specs=(pl.BlockSpec((B, vocab), lambda i, ids: (0, 0)),
                       pl.BlockSpec((L, B, hid_dim), lambda i, ids: (0, 0, 0))),
            scratch_shapes=[pltpu.VMEM((B, emb_dim), jnp.float32),
                            pltpu.SemaphoreType.DMA((B,))]),
        compiler_params=pltpu.CompilerParams(dimension_semantics=("arbitrary",)),
    )(*inputs)
    return pred, new_hidden


# --------------------------- parameter construction ------------------------

def _xavier(key, fan_in, fan_out):
    bound = math.sqrt(6.0 / (fan_in + fan_out))
    return jax.random.uniform(key, (fan_in, fan_out), jnp.float32, -bound, bound)


def _split_kv_headmajor(wkv_t, bkv, num_heads):
    """Interleaved-per-head (k|v) projection [in, 2E] -> head-major W_k, b_k, W_v, b_v."""
    in_dim, two_e = wkv_t.shape
    e = two_e // 2
    hd = e // num_heads
    w = wkv_t.reshape(in_dim, num_heads, 2, hd)
    wk = w[:, :, 0, :].reshape(in_dim, e)
    wv = w[:, :, 1, :].reshape(in_dim, e)
    b = bkv.reshape(num_heads, 2, hd)
    bk = b[:, 0, :].reshape(1, e)
    bv = b[:, 1, :].reshape(1, e)
    return wk, bk, wv, bv


def init_params(key, output_dim, emb_dim, hid_dim, n_layers, num_heads=4):
    ks = iter(jax.random.split(key, 8 + 4 * n_layers))
    p = {}
    p["emb"] = jax.random.normal(next(ks), (output_dim, emb_dim), jnp.float32)

    # self-attention (input_dim = embed_dim = emb_dim); biases zero (matches _reset_parameters).
    sa_wkv = _xavier(next(ks), emb_dim, 2 * emb_dim)
    sa_bkv = jnp.zeros((2 * emb_dim,), jnp.float32)
    # sa_wk/sa_bk kept only for parameter-structure fidelity; with Sc==1 they provably cannot
    # affect the forward output (softmax over a single key is exactly 1), so the kernel skips them.
    p["sa_wk"], p["sa_bk"], p["sa_wv"], p["sa_bv"] = _split_kv_headmajor(sa_wkv, sa_bkv, num_heads)
    p["sa_wo"] = _xavier(next(ks), emb_dim, emb_dim)
    p["sa_bo"] = jnp.zeros((1, emb_dim), jnp.float32)

    # encoder attention (input_dim = embed_dim = hid_dim), K|V concatenated head-major
    ea_wkv_raw = _xavier(next(ks), hid_dim, 2 * hid_dim)
    ea_bkv_raw = jnp.zeros((2 * hid_dim,), jnp.float32)
    wk, bk, wv, bv = _split_kv_headmajor(ea_wkv_raw, ea_bkv_raw, num_heads)
    p["ea_wkv"] = jnp.concatenate([wk, wv], axis=1)       # [hid, 2*hid]
    p["ea_bkv"] = jnp.concatenate([bk, bv], axis=1)       # [1, 2*hid]
    p["ea_wo"] = _xavier(next(ks), hid_dim, hid_dim)
    p["ea_bo"] = jnp.zeros((1, hid_dim), jnp.float32)

    # GRU layers, gates concatenated along lanes [in, 3*hid] with PyTorch gate order (r, z, n)
    gbound = 1.0 / math.sqrt(hid_dim)
    gru = []
    for layer in range(n_layers):
        in_dim = emb_dim if layer == 0 else hid_dim
        gru.append(dict(
            w_ih=jax.random.uniform(next(ks), (in_dim, 3 * hid_dim), jnp.float32, -gbound, gbound),
            w_hh=jax.random.uniform(next(ks), (hid_dim, 3 * hid_dim), jnp.float32, -gbound, gbound),
            b_ih=jax.random.uniform(next(ks), (1, 3 * hid_dim), jnp.float32, -gbound, gbound),
            b_hh=jax.random.uniform(next(ks), (1, 3 * hid_dim), jnp.float32, -gbound, gbound),
        ))
    p["gru"] = gru

    # output projection (at real vocab sizes this should be vocab-tiled / bf16 for v7x VMEM)
    obound = 1.0 / math.sqrt(hid_dim)
    p["out_w"] = jax.random.uniform(next(ks), (hid_dim, output_dim), jnp.float32, -obound, obound)
    p["out_b"] = jax.random.uniform(next(ks), (1, output_dim), jnp.float32, -obound, obound)
    return p


# ----------------------------------- main -----------------------------------

if __name__ == "__main__":
    OUTPUT_DIM = 128   # vocab size (multiple of 128 -> lane-dense prediction stores)
    EMB_DIM = 64       # divisible by 4 heads
    HID_DIM = 128      # divisible by 4 heads, lane-dense (gate slices lane-aligned)
    N_LAYERS = 2
    NUM_HEADS = 4
    BATCH = 8
    SRC_LEN = 16

    key = jax.random.PRNGKey(0)
    k_par, k_tok, k_hid, k_enc = jax.random.split(key, 4)

    params = init_params(k_par, OUTPUT_DIM, EMB_DIM, HID_DIM, N_LAYERS, NUM_HEADS)

    tokens = jax.random.randint(k_tok, (BATCH,), 0, OUTPUT_DIM, dtype=jnp.int32)
    hidden = jax.random.normal(k_hid, (N_LAYERS, BATCH, HID_DIM), jnp.float32)
    encoder_outputs = jax.random.normal(k_enc, (SRC_LEN, BATCH, HID_DIM), jnp.float32)

    fwd = jax.jit(functools.partial(decoder_cnn_forward,
                                    n_layers=N_LAYERS, num_heads=NUM_HEADS))
    prediction, new_hidden = fwd(params, tokens, hidden, encoder_outputs)

    jax.block_until_ready(prediction)
    jax.block_until_ready(new_hidden)

    assert prediction.shape == (BATCH, OUTPUT_DIM)
    assert new_hidden.shape == (N_LAYERS, BATCH, HID_DIM)
    assert bool(jnp.all(jnp.isfinite(prediction))) and bool(jnp.all(jnp.isfinite(new_hidden)))
    print("KERNEL_OK")
</pallas_src>

<mosaic_0001>
module attributes {stable_mosaic.version = 11 : i64} {
  func.func @_decoder_step_kernel(%arg0: i32, %arg1: memref<8xi32, #tpu.memory_space<smem>>, %arg2: memref<128x64xf32, #tpu.memory_space<any>>, %arg3: memref<2x8x128xf32, #tpu.memory_space<vmem>>, %arg4: memref<16x8x128xf32, #tpu.memory_space<vmem>>, %arg5: memref<64x64xf32, #tpu.memory_space<vmem>>, %arg6: memref<1x64xf32, #tpu.memory_space<vmem>>, %arg7: memref<64x64xf32, #tpu.memory_space<vmem>>, %arg8: memref<1x64xf32, #tpu.memory_space<vmem>>, %arg9: memref<128x256xf32, #tpu.memory_space<vmem>>, %arg10: memref<1x256xf32, #tpu.memory_space<vmem>>, %arg11: memref<128x128xf32, #tpu.memory_space<vmem>>, %arg12: memref<1x128xf32, #tpu.memory_space<vmem>>, %arg13: memref<128x128xf32, #tpu.memory_space<vmem>>, %arg14: memref<64x384xf32, #tpu.memory_space<vmem>>, %arg15: memref<128x384xf32, #tpu.memory_space<vmem>>, %arg16: memref<1x384xf32, #tpu.memory_space<vmem>>, %arg17: memref<1x384xf32, #tpu.memory_space<vmem>>, %arg18: memref<128x384xf32, #tpu.memory_space<vmem>>, %arg19: memref<128x384xf32, #tpu.memory_space<vmem>>, %arg20: memref<1x384xf32, #tpu.memory_space<vmem>>, %arg21: memref<1x384xf32, #tpu.memory_space<vmem>>, %arg22: memref<128x128xf32, #tpu.memory_space<vmem>>, %arg23: memref<1x128xf32, #tpu.memory_space<vmem>>, %arg24: memref<8x128xf32, #tpu.memory_space<vmem>>, %arg25: memref<2x8x128xf32, #tpu.memory_space<vmem>>, %arg26: memref<8x64xf32, #tpu.memory_space<vmem>>, %arg27: memref<8x!tpu.dma_semaphore, #tpu.memory_space<semaphore_mem>>) attributes {dimension_semantics = [#tpu.dimension_semantics<arbitrary>], iteration_bounds = array<i64: 1>, scalar_prefetch = 1 : i64, scratch_operands = 2 : i64, tpu.core_type = #tpu.core_type<tc>, window_params = [{}, {pipeline_mode = #tpu.pipeline_mode<synchronous>, transform_indices = @transform_1, window_bounds = array<i64: 2, 8, 128>}, {pipeline_mode = #tpu.pipeline_mode<synchronous>, transform_indices = @transform_2, window_bounds = array<i64: 16, 8, 128>}, {pipeline_mode = #tpu.pipeline_mode<synchronous>, transform_indices = @transform_3, window_bounds = array<i64: 64, 64>}, {pipeline_mode = #tpu.pipeline_mode<synchronous>, transform_indices = @transform_4, window_bounds = array<i64: 1, 64>}, {pipeline_mode = #tpu.pipeline_mode<synchronous>, transform_indices = @transform_5, window_bounds = array<i64: 64, 64>}, {pipeline_mode = #tpu.pipeline_mode<synchronous>, transform_indices = @transform_6, window_bounds = array<i64: 1, 64>}, {pipeline_mode = #tpu.pipeline_mode<synchronous>, transform_indices = @transform_7, window_bounds = array<i64: 128, 256>}, {pipeline_mode = #tpu.pipeline_mode<synchronous>, transform_indices = @transform_8, window_bounds = array<i64: 1, 256>}, {pipeline_mode = #tpu.pipeline_mode<synchronous>, transform_indices = @transform_9, window_bounds = array<i64: 128, 128>}, {pipeline_mode = #tpu.pipeline_mode<synchronous>, transform_indices = @transform_10, window_bounds = array<i64: 1, 128>}, {pipeline_mode = #tpu.pipeline_mode<synchronous>, transform_indices = @transform_11, window_bounds = array<i64: 128, 128>}, {pipeline_mode = #tpu.pipeline_mode<synchronous>, transform_indices = @transform_12, window_bounds = array<i64: 64, 384>}, {pipeline_mode = #tpu.pipeline_mode<synchronous>, transform_indices = @transform_13, window_bounds = array<i64: 128, 384>}, {pipeline_mode = #tpu.pipeline_mode<synchronous>, transform_indices = @transform_14, window_bounds = array<i64: 1, 384>}, {pipeline_mode = #tpu.pipeline_mode<synchronous>, transform_indices = @transform_15, window_bounds = array<i64: 1, 384>}, {pipeline_mode = #tpu.pipeline_mode<synchronous>, transform_indices = @transform_16, window_bounds = array<i64: 128, 384>}, {pipeline_mode = #tpu.pipeline_mode<synchronous>, transform_indices = @transform_17, window_bounds = array<i64: 128, 384>}, {pipeline_mode = #tpu.pipeline_mode<synchronous>, transform_indices = @transform_18, window_bounds = array<i64: 1, 384>}, {pipeline_mode = #tpu.pipeline_mode<synchronous>, transform_indices = @transform_19, window_bounds = array<i64: 1, 384>}, {pipeline_mode = #tpu.pipeline_mode<synchronous>, transform_indices = @transform_20, window_bounds = array<i64: 128, 128>}, {pipeline_mode = #tpu.pipeline_mode<synchronous>, transform_indices = @transform_21, window_bounds = array<i64: 1, 128>}, {pipeline_mode = #tpu.pipeline_mode<synchronous>, transform_indices = @transform_22, window_bounds = array<i64: 8, 128>}, {pipeline_mode = #tpu.pipeline_mode<synchronous>, transform_indices = @transform_23, window_bounds = array<i64: 2, 8, 128>}]} {
    %c0 = arith.constant 0 : index
    %0 = memref.load %arg1[%c0] : memref<8xi32, #tpu.memory_space<smem>>
    %c0_i32 = arith.constant 0 : i32
    %c0_i32_0 = arith.constant 0 : i32
    %1 = tpu.memref_slice %arg2[%0, %c0_i32_0] : memref<128x64xf32, #tpu.memory_space<any>> -> memref<1x64xf32, #tpu.memory_space<any>>
    %c0_i32_1 = arith.constant 0 : i32
    %c0_i32_2 = arith.constant 0 : i32
    %2 = tpu.memref_slice %arg26[%c0_i32_1, %c0_i32_2] : memref<8x64xf32, #tpu.memory_space<vmem>> -> memref<1x64xf32, #tpu.memory_space<vmem>>
    %3 = tpu.memref_slice %arg27[%c0_i32] : memref<8x!tpu.dma_semaphore, #tpu.memory_space<semaphore_mem>> -> memref<1x!tpu.dma_semaphore, #tpu.memory_space<semaphore_mem>>
    %4 = tpu.memref_squeeze %3 : memref<1x!tpu.dma_semaphore, #tpu.memory_space<semaphore_mem>> -> memref<!tpu.dma_semaphore, #tpu.memory_space<semaphore_mem>>
    tpu.enqueue_dma source(%1 : memref<1x64xf32, #tpu.memory_space<any>>) target(%2 : memref<1x64xf32, #tpu.memory_space<vmem>>) target_semaphore(%4 : memref<!tpu.dma_semaphore, #tpu.memory_space<semaphore_mem>>)
    %c1 = arith.constant 1 : index
    %5 = memref.load %arg1[%c1] : memref<8xi32, #tpu.memory_space<smem>>
    %c1_i32 = arith.constant 1 : i32
    %c0_i32_3 = arith.constant 0 : i32
    %6 = tpu.memref_slice %arg2[%5, %c0_i32_3] : memref<128x64xf32, #tpu.memory_space<any>> -> memref<1x64xf32, #tpu.memory_space<any>>
    %c1_i32_4 = arith.constant 1 : i32
    %c0_i32_5 = arith.constant 0 : i32
    %7 = tpu.memref_slice %arg26[%c1_i32_4, %c0_i32_5] : memref<8x64xf32, #tpu.memory_space<vmem>> -> memref<1x64xf32, #tpu.memory_space<vmem>>
    %8 = tpu.memref_slice %arg27[%c1_i32] : memref<8x!tpu.dma_semaphore, #tpu.memory_space<semaphore_mem>> -> memref<1x!tpu.dma_semaphore, #tpu.memory_space<semaphore_mem>>
    %9 = tpu.memref_squeeze %8 : memref<1x!tpu.dma_semaphore, #tpu.memory_space<semaphore_mem>> -> memref<!tpu.dma_semaphore, #tpu.memory_space<semaphore_mem>>
    tpu.enqueue_dma source(%6 : memref<1x64xf32, #tpu.memory_space<any>>) target(%7 : memref<1x64xf32, #tpu.memory_space<vmem>>) target_semaphore(%9 : memref<!tpu.dma_semaphore, #tpu.memory_space<semaphore_mem>>)
    %c2 = arith.constant 2 : index
    %10 = memref.load %arg1[%c2] : memref<8xi32, #tpu.memory_space<smem>>
    %c2_i32 = arith.constant 2 : i32
    %c0_i32_6 = arith.constant 0 : i32
    %11 = tpu.memref_slice %arg2[%10, %c0_i32_6] : memref<128x64xf32, #tpu.memory_space<any>> -> memref<1x64xf32, #tpu.memory_space<any>>
    %c2_i32_7 = arith.constant 2 : i32
    %c0_i32_8 = arith.constant 0 : i32
    %12 = tpu.memref_slice %arg26[%c2_i32_7, %c0_i32_8] : memref<8x64xf32, #tpu.memory_space<vmem>> -> memref<1x64xf32, #tpu.memory_space<vmem>>
    %13 = tpu.memref_slice %arg27[%c2_i32] : memref<8x!tpu.dma_semaphore, #tpu.memory_space<semaphore_mem>> -> memref<1x!tpu.dma_semaphore, #tpu.memory_space<semaphore_mem>>
    %14 = tpu.memref_squeeze %13 : memref<1x!tpu.dma_semaphore, #tpu.memory_space<semaphore_mem>> -> memref<!tpu.dma_semaphore, #tpu.memory_space<semaphore_mem>>
    tpu.enqueue_dma source(%11 : memref<1x64xf32, #tpu.memory_space<any>>) target(%12 : memref<1x64xf32, #tpu.memory_space<vmem>>) target_semaphore(%14 : memref<!tpu.dma_semaphore, #tpu.memory_space<semaphore_mem>>)
    %c3 = arith.constant 3 : index
    %15 = memref.load %arg1[%c3] : memref<8xi32, #tpu.memory_space<smem>>
    %c3_i32 = arith.constant 3 : i32
    %c0_i32_9 = arith.constant 0 : i32
    %16 = tpu.memref_slice %arg2[%15, %c0_i32_9] : memref<128x64xf32, #tpu.memory_space<any>> -> memref<1x64xf32, #tpu.memory_space<any>>
    %c3_i32_10 = arith.constant 3 : i32
    %c0_i32_11 = arith.constant 0 : i32
    %17 = tpu.memref_slice %arg26[%c3_i32_10, %c0_i32_11] : memref<8x64xf32, #tpu.memory_space<vmem>> -> memref<1x64xf32, #tpu.memory_space<vmem>>
    %18 = tpu.memref_slice %arg27[%c3_i32] : memref<8x!tpu.dma_semaphore, #tpu.memory_space<semaphore_mem>> -> memref<1x!tpu.dma_semaphore, #tpu.memory_space<semaphore_mem>>
    %19 = tpu.memref_squeeze %18 : memref<1x!tpu.dma_semaphore, #tpu.memory_space<semaphore_mem>> -> memref<!tpu.dma_semaphore, #tpu.memory_space<semaphore_mem>>
    tpu.enqueue_dma source(%16 : memref<1x64xf32, #tpu.memory_space<any>>) target(%17 : memref<1x64xf32, #tpu.memory_space<vmem>>) target_semaphore(%19 : memref<!tpu.dma_semaphore, #tpu.memory_space<semaphore_mem>>)
    %c4 = arith.constant 4 : index
    %20 = memref.load %arg1[%c4] : memref<8xi32, #tpu.memory_space<smem>>
    %c4_i32 = arith.constant 4 : i32
    %c0_i32_12 = arith.constant 0 : i32
    %21 = tpu.memref_slice %arg2[%20, %c0_i32_12] : memref<128x64xf32, #tpu.memory_space<any>> -> memref<1x64xf32, #tpu.memory_space<any>>
    %c4_i32_13 = arith.constant 4 : i32
    %c0_i32_14 = arith.constant 0 : i32
    %22 = tpu.memref_slice %arg26[%c4_i32_13, %c0_i32_14] : memref<8x64xf32, #tpu.memory_space<vmem>> -> memref<1x64xf32, #tpu.memory_space<vmem>>
    %23 = tpu.memref_slice %arg27[%c4_i32] : memref<8x!tpu.dma_semaphore, #tpu.memory_space<semaphore_mem>> -> memref<1x!tpu.dma_semaphore, #tpu.memory_space<semaphore_mem>>
    %24 = tpu.memref_squeeze %23 : memref<1x!tpu.dma_semaphore, #tpu.memory_space<semaphore_mem>> -> memref<!tpu.dma_semaphore, #tpu.memory_space<semaphore_mem>>
    tpu.enqueue_dma source(%21 : memref<1x64xf32, #tpu.memory_space<any>>) target(%22 : memref<1x64xf32, #tpu.memory_space<vmem>>) target_semaphore(%24 : memref<!tpu.dma_semaphore, #tpu.memory_space<semaphore_mem>>)
    %c5 = arith.constant 5 : index
    %25 = memref.load %arg1[%c5] : memref<8xi32, #tpu.memory_space<smem>>
    %c5_i32 = arith.constant 5 : i32
    %c0_i32_15 = arith.constant 0 : i32
    %26 = tpu.memref_slice %arg2[%25, %c0_i32_15] : memref<128x64xf32, #tpu.memory_space<any>> -> memref<1x64xf32, #tpu.memory_space<any>>
    %c5_i32_16 = arith.constant 5 : i32
    %c0_i32_17 = arith.constant 0 : i32
    %27 = tpu.memref_slice %arg26[%c5_i32_16, %c0_i32_17] : memref<8x64xf32, #tpu.memory_space<vmem>> -> memref<1x64xf32, #tpu.memory_space<vmem>>
    %28 = tpu.memref_slice %arg27[%c5_i32] : memref<8x!tpu.dma_semaphore, #tpu.memory_space<semaphore_mem>> -> memref<1x!tpu.dma_semaphore, #tpu.memory_space<semaphore_mem>>
    %29 = tpu.memref_squeeze %28 : memref<1x!tpu.dma_semaphore, #tpu.memory_space<semaphore_mem>> -> memref<!tpu.dma_semaphore, #tpu.memory_space<semaphore_mem>>
    tpu.enqueue_dma source(%26 : memref<1x64xf32, #tpu.memory_space<any>>) target(%27 : memref<1x64xf32, #tpu.memory_space<vmem>>) target_semaphore(%29 : memref<!tpu.dma_semaphore, #tpu.memory_space<semaphore_mem>>)
    %c6 = arith.constant 6 : index
    %30 = memref.load %arg1[%c6] : memref<8xi32, #tpu.memory_space<smem>>
    %c6_i32 = arith.constant 6 : i32
    %c0_i32_18 = arith.constant 0 : i32
    %31 = tpu.memref_slice %arg2[%30, %c0_i32_18] : memref<128x64xf32, #tpu.memory_space<any>> -> memref<1x64xf32, #tpu.memory_space<any>>
    %c6_i32_19 = arith.constant 6 : i32
    %c0_i32_20 = arith.constant 0 : i32
    %32 = tpu.memref_slice %arg26[%c6_i32_19, %c0_i32_20] : memref<8x64xf32, #tpu.memory_space<vmem>> -> memref<1x64xf32, #tpu.memory_space<vmem>>
    %33 = tpu.memref_slice %arg27[%c6_i32] : memref<8x!tpu.dma_semaphore, #tpu.memory_space<semaphore_mem>> -> memref<1x!tpu.dma_semaphore, #tpu.memory_space<semaphore_mem>>
    %34 = tpu.memref_squeeze %33 : memref<1x!tpu.dma_semaphore, #tpu.memory_space<semaphore_mem>> -> memref<!tpu.dma_semaphore, #tpu.memory_space<semaphore_mem>>
    tpu.enqueue_dma source(%31 : memref<1x64xf32, #tpu.memory_space<any>>) target(%32 : memref<1x64xf32, #tpu.memory_space<vmem>>) target_semaphore(%34 : memref<!tpu.dma_semaphore, #tpu.memory_space<semaphore_mem>>)
    %c7 = arith.constant 7 : index
    %35 = memref.load %arg1[%c7] : memref<8xi32, #tpu.memory_space<smem>>
    %c7_i32 = arith.constant 7 : i32
    %c0_i32_21 = arith.constant 0 : i32
    %36 = tpu.memref_slice %arg2[%35, %c0_i32_21] : memref<128x64xf32, #tpu.memory_space<any>> -> memref<1x64xf32, #tpu.memory_space<any>>
    %c7_i32_22 = arith.constant 7 : i32
    %c0_i32_23 = arith.constant 0 : i32
    %37 = tpu.memref_slice %arg26[%c7_i32_22, %c0_i32_23] : memref<8x64xf32, #tpu.memory_space<vmem>> -> memref<1x64xf32, #tpu.memory_space<vmem>>
    %38 = tpu.memref_slice %arg27[%c7_i32] : memref<8x!tpu.dma_semaphore, #tpu.memory_space<semaphore_mem>> -> memref<1x!tpu.dma_semaphore, #tpu.memory_space<semaphore_mem>>
    %39 = tpu.memref_squeeze %38 : memref<1x!tpu.dma_semaphore, #tpu.memory_space<semaphore_mem>> -> memref<!tpu.dma_semaphore, #tpu.memory_space<semaphore_mem>>
    tpu.enqueue_dma source(%36 : memref<1x64xf32, #tpu.memory_space<any>>) target(%37 : memref<1x64xf32, #tpu.memory_space<vmem>>) target_semaphore(%39 : memref<!tpu.dma_semaphore, #tpu.memory_space<semaphore_mem>>)
    %c0_24 = arith.constant 0 : index
    %c0_25 = arith.constant 0 : index
    %c0_26 = arith.constant 0 : index
    %40 = vector.load %arg4[%c0_24, %c0_25, %c0_26] : memref<16x8x128xf32, #tpu.memory_space<vmem>>, vector<16x8x128xf32>
    %41 = vector.shape_cast %40 : vector<16x8x128xf32> to vector<128x128xf32>
    %c0_27 = arith.constant 0 : index
    %c0_28 = arith.constant 0 : index
    %42 = vector.load %arg9[%c0_27, %c0_28] : memref<128x256xf32, #tpu.memory_space<vmem>>, vector<128x256xf32>
    %cst = arith.constant dense<0.000000e+00> : vector<128x256xf32>
    %43 = tpu.matmul %41, %42, %cst {dimension_numbers = #tpu.dot_dimension_numbers<[1], [0], [0], [1], [0, 0, 1, 1], [], []>} : vector<128x128xf32>, vector<128x256xf32>, vector<128x256xf32> -> vector<128x256xf32>
    %c0_29 = arith.constant 0 : index
    %c0_30 = arith.constant 0 : index
    %44 = vector.load %arg10[%c0_29, %c0_30] : memref<1x256xf32, #tpu.memory_space<vmem>>, vector<1x256xf32>
    %45 = vector.broadcast %44 : vector<1x256xf32> to vector<128x256xf32>
    %46 = arith.addf %43, %45 : vector<128x256xf32>
    %47 = vector.extract_strided_slice %46 {offsets = [0, 0], sizes = [128, 128], strides = [1, 1]} : vector<128x256xf32> to vector<128x128xf32>
    %48 = vector.extract_strided_slice %46 {offsets = [0, 128], sizes = [128, 128], strides = [1, 1]} : vector<128x256xf32> to vector<128x128xf32>
    %c0_i32_31 = arith.constant 0 : i32
    %c0_i32_32 = arith.constant 0 : i32
    %49 = tpu.memref_slice %arg2[%0, %c0_i32_32] : memref<128x64xf32, #tpu.memory_space<any>> -> memref<1x64xf32, #tpu.memory_space<any>>
    %c0_i32_33 = arith.constant 0 : i32
    %c0_i32_34 = arith.constant 0 : i32
    %50 = tpu.memref_slice %arg26[%c0_i32_33, %c0_i32_34] : memref<8x64xf32, #tpu.memory_space<vmem>> -> memref<1x64xf32, #tpu.memory_space<vmem>>
    %51 = tpu.memref_slice %arg27[%c0_i32_31] : memref<8x!tpu.dma_semaphore, #tpu.memory_space<semaphore_mem>> -> memref<1x!tpu.dma_semaphore, #tpu.memory_space<semaphore_mem>>
    %52 = tpu.memref_squeeze %51 : memref<1x!tpu.dma_semaphore, #tpu.memory_space<semaphore_mem>> -> memref<!tpu.dma_semaphore, #tpu.memory_space<semaphore_mem>>
    tpu.wait_dma2 semaphore(%52 : memref<!tpu.dma_semaphore, #tpu.memory_space<semaphore_mem>>) src(%49 : memref<1x64xf32, #tpu.memory_space<any>>) dst(%50 : memref<1x64xf32, #tpu.memory_space<vmem>>)
    %c1_i32_35 = arith.constant 1 : i32
    %c0_i32_36 = arith.constant 0 : i32
    %53 = tpu.memref_slice %arg2[%5, %c0_i32_36] : memref<128x64xf32, #tpu.memory_space<any>> -> memref<1x64xf32, #tpu.memory_space<any>>
    %c1_i32_37 = arith.constant 1 : i32
    %c0_i32_38 = arith.constant 0 : i32
    %54 = tpu.memref_slice %arg26[%c1_i32_37, %c0_i32_38] : memref<8x64xf32, #tpu.memory_space<vmem>> -> memref<1x64xf32, #tpu.memory_space<vmem>>
    %55 = tpu.memref_slice %arg27[%c1_i32_35] : memref<8x!tpu.dma_semaphore, #tpu.memory_space<semaphore_mem>> -> memref<1x!tpu.dma_semaphore, #tpu.memory_space<semaphore_mem>>
    %56 = tpu.memref_squeeze %55 : memref<1x!tpu.dma_semaphore, #tpu.memory_space<semaphore_mem>> -> memref<!tpu.dma_semaphore, #tpu.memory_space<semaphore_mem>>
    tpu.wait_dma2 semaphore(%56 : memref<!tpu.dma_semaphore, #tpu.memory_space<semaphore_mem>>) src(%53 : memref<1x64xf32, #tpu.memory_space<any>>) dst(%54 : memref<1x64xf32, #tpu.memory_space<vmem>>)
    %c2_i32_39 = arith.constant 2 : i32
    %c0_i32_40 = arith.constant 0 : i32
    %57 = tpu.memref_slice %arg2[%10, %c0_i32_40] : memref<128x64xf32, #tpu.memory_space<any>> -> memref<1x64xf32, #tpu.memory_space<any>>
    %c2_i32_41 = arith.constant 2 : i32
    %c0_i32_42 = arith.constant 0 : i32
    %58 = tpu.memref_slice %arg26[%c2_i32_41, %c0_i32_42] : memref<8x64xf32, #tpu.memory_space<vmem>> -> memref<1x64xf32, #tpu.memory_space<vmem>>
    %59 = tpu.memref_slice %arg27[%c2_i32_39] : memref<8x!tpu.dma_semaphore, #tpu.memory_space<semaphore_mem>> -> memref<1x!tpu.dma_semaphore, #tpu.memory_space<semaphore_mem>>
    %60 = tpu.memref_squeeze %59 : memref<1x!tpu.dma_semaphore, #tpu.memory_space<semaphore_mem>> -> memref<!tpu.dma_semaphore, #tpu.memory_space<semaphore_mem>>
    tpu.wait_dma2 semaphore(%60 : memref<!tpu.dma_semaphore, #tpu.memory_space<semaphore_mem>>) src(%57 : memref<1x64xf32, #tpu.memory_space<any>>) dst(%58 : memref<1x64xf32, #tpu.memory_space<vmem>>)
    %c3_i32_43 = arith.constant 3 : i32
    %c0_i32_44 = arith.constant 0 : i32
    %61 = tpu.memref_slice %arg2[%15, %c0_i32_44] : memref<128x64xf32, #tpu.memory_space<any>> -> memref<1x64xf32, #tpu.memory_space<any>>
    %c3_i32_45 = arith.constant 3 : i32
    %c0_i32_46 = arith.constant 0 : i32
    %62 = tpu.memref_slice %arg26[%c3_i32_45, %c0_i32_46] : memref<8x64xf32, #tpu.memory_space<vmem>> -> memref<1x64xf32, #tpu.memory_space<vmem>>
    %63 = tpu.memref_slice %arg27[%c3_i32_43] : memref<8x!tpu.dma_semaphore, #tpu.memory_space<semaphore_mem>> -> memref<1x!tpu.dma_semaphore, #tpu.memory_space<semaphore_mem>>
    %64 = tpu.memref_squeeze %63 : memref<1x!tpu.dma_semaphore, #tpu.memory_space<semaphore_mem>> -> memref<!tpu.dma_semaphore, #tpu.memory_space<semaphore_mem>>
    tpu.wait_dma2 semaphore(%64 : memref<!tpu.dma_semaphore, #tpu.memory_space<semaphore_mem>>) src(%61 : memref<1x64xf32, #tpu.memory_space<any>>) dst(%62 : memref<1x64xf32, #tpu.memory_space<vmem>>)
    %c4_i32_47 = arith.constant 4 : i32
    %c0_i32_48 = arith.constant 0 : i32
    %65 = tpu.memref_slice %arg2[%20, %c0_i32_48] : memref<128x64xf32, #tpu.memory_space<any>> -> memref<1x64xf32, #tpu.memory_space<any>>
    %c4_i32_49 = arith.constant 4 : i32
    %c0_i32_50 = arith.constant 0 : i32
    %66 = tpu.memref_slice %arg26[%c4_i32_49, %c0_i32_50] : memref<8x64xf32, #tpu.memory_space<vmem>> -> memref<1x64xf32, #tpu.memory_space<vmem>>
    %67 = tpu.memref_slice %arg27[%c4_i32_47] : memref<8x!tpu.dma_semaphore, #tpu.memory_space<semaphore_mem>> -> memref<1x!tpu.dma_semaphore, #tpu.memory_space<semaphore_mem>>
    %68 = tpu.memref_squeeze %67 : memref<1x!tpu.dma_semaphore, #tpu.memory_space<semaphore_mem>> -> memref<!tpu.dma_semaphore, #tpu.memory_space<semaphore_mem>>
    tpu.wait_dma2 semaphore(%68 : memref<!tpu.dma_semaphore, #tpu.memory_space<semaphore_mem>>) src(%65 : memref<1x64xf32, #tpu.memory_space<any>>) dst(%66 : memref<1x64xf32, #tpu.memory_space<vmem>>)
    %c5_i32_51 = arith.constant 5 : i32
    %c0_i32_52 = arith.constant 0 : i32
    %69 = tpu.memref_slice %arg2[%25, %c0_i32_52] : memref<128x64xf32, #tpu.memory_space<any>> -> memref<1x64xf32, #tpu.memory_space<any>>
    %c5_i32_53 = arith.constant 5 : i32
    %c0_i32_54 = arith.constant 0 : i32
    %70 = tpu.memref_slice %arg26[%c5_i32_53, %c0_i32_54] : memref<8x64xf32, #tpu.memory_space<vmem>> -> memref<1x64xf32, #tpu.memory_space<vmem>>
    %71 = tpu.memref_slice %arg27[%c5_i32_51] : memref<8x!tpu.dma_semaphore, #tpu.memory_space<semaphore_mem>> -> memref<1x!tpu.dma_semaphore, #tpu.memory_space<semaphore_mem>>
    %72 = tpu.memref_squeeze %71 : memref<1x!tpu.dma_semaphore, #tpu.memory_space<semaphore_mem>> -> memref<!tpu.dma_semaphore, #tpu.memory_space<semaphore_mem>>
    tpu.wait_dma2 semaphore(%72 : memref<!tpu.dma_semaphore, #tpu.memory_space<semaphore_mem>>) src(%69 : memref<1x64xf32, #tpu.memory_space<any>>) dst(%70 : memref<1x64xf32, #tpu.memory_space<vmem>>)
    %c6_i32_55 = arith.constant 6 : i32
    %c0_i32_56 = arith.constant 0 : i32
    %73 = tpu.memref_slice %arg2[%30, %c0_i32_56] : memref<128x64xf32, #tpu.memory_space<any>> -> memref<1x64xf32, #tpu.memory_space<any>>
    %c6_i32_57 = arith.constant 6 : i32
    %c0_i32_58 = arith.constant 0 : i32
    %74 = tpu.memref_slice %arg26[%c6_i32_57, %c0_i32_58] : memref<8x64xf32, #tpu.memory_space<vmem>> -> memref<1x64xf32, #tpu.memory_space<vmem>>
    %75 = tpu.memref_slice %arg27[%c6_i32_55] : memref<8x!tpu.dma_semaphore, #tpu.memory_space<semaphore_mem>> -> memref<1x!tpu.dma_semaphore, #tpu.memory_space<semaphore_mem>>
    %76 = tpu.memref_squeeze %75 : memref<1x!tpu.dma_semaphore, #tpu.memory_space<semaphore_mem>> -> memref<!tpu.dma_semaphore, #tpu.memory_space<semaphore_mem>>
    tpu.wait_dma2 semaphore(%76 : memref<!tpu.dma_semaphore, #tpu.memory_space<semaphore_mem>>) src(%73 : memref<1x64xf32, #tpu.memory_space<any>>) dst(%74 : memref<1x64xf32, #tpu.memory_space<vmem>>)
    %c7_i32_59 = arith.constant 7 : i32
    %c0_i32_60 = arith.constant 0 : i32
    %77 = tpu.memref_slice %arg2[%35, %c0_i32_60] : memref<128x64xf32, #tpu.memory_space<any>> -> memref<1x64xf32, #tpu.memory_space<any>>
    %c7_i32_61 = arith.constant 7 : i32
    %c0_i32_62 = arith.constant 0 : i32
    %78 = tpu.memref_slice %arg26[%c7_i32_61, %c0_i32_62] : memref<8x64xf32, #tpu.memory_space<vmem>> -> memref<1x64xf32, #tpu.memory_space<vmem>>
    %79 = tpu.memref_slice %arg27[%c7_i32_59] : memref<8x!tpu.dma_semaphore, #tpu.memory_space<semaphore_mem>> -> memref<1x!tpu.dma_semaphore, #tpu.memory_space<semaphore_mem>>
    %80 = tpu.memref_squeeze %79 : memref<1x!tpu.dma_semaphore, #tpu.memory_space<semaphore_mem>> -> memref<!tpu.dma_semaphore, #tpu.memory_space<semaphore_mem>>
    tpu.wait_dma2 semaphore(%80 : memref<!tpu.dma_semaphore, #tpu.memory_space<semaphore_mem>>) src(%77 : memref<1x64xf32, #tpu.memory_space<any>>) dst(%78 : memref<1x64xf32, #tpu.memory_space<vmem>>)
    %c0_63 = arith.constant 0 : index
    %c0_64 = arith.constant 0 : index
    %81 = vector.load %arg26[%c0_63, %c0_64] : memref<8x64xf32, #tpu.memory_space<vmem>>, vector<8x64xf32>
    %c0_65 = arith.constant 0 : index
    %c0_66 = arith.constant 0 : index
    %82 = vector.load %arg5[%c0_65, %c0_66] : memref<64x64xf32, #tpu.memory_space<vmem>>, vector<64x64xf32>
    %cst_67 = arith.constant dense<0.000000e+00> : vector<8x64xf32>
    %83 = tpu.matmul %81, %82, %cst_67 {dimension_numbers = #tpu.dot_dimension_numbers<[1], [0], [0], [1], [0, 0, 1, 1], [], []>} : vector<8x64xf32>, vector<64x64xf32>, vector<8x64xf32> -> vector<8x64xf32>
    %c0_68 = arith.constant 0 : index
    %c0_69 = arith.constant 0 : index
    %84 = vector.load %arg6[%c0_68, %c0_69] : memref<1x64xf32, #tpu.memory_space<vmem>>, vector<1x64xf32>
    %85 = vector.broadcast %84 : vector<1x64xf32> to vector<8x64xf32>
    %86 = arith.addf %83, %85 : vector<8x64xf32>
    %c0_70 = arith.constant 0 : index
    %c0_71 = arith.constant 0 : index
    %87 = vector.load %arg7[%c0_70, %c0_71] : memref<64x64xf32, #tpu.memory_space<vmem>>, vector<64x64xf32>
    %cst_72 = arith.constant dense<0.000000e+00> : vector<8x64xf32>
    %88 = tpu.matmul %86, %87, %cst_72 {dimension_numbers = #tpu.dot_dimension_numbers<[1], [0], [0], [1], [0, 0, 1, 1], [], []>} : vector<8x64xf32>, vector<64x64xf32>, vector<8x64xf32> -> vector<8x64xf32>
    %c0_73 = arith.constant 0 : index
    %c0_74 = arith.constant 0 : index
    %89 = vector.load %arg8[%c0_73, %c0_74] : memref<1x64xf32, #tpu.memory_space<vmem>>, vector<1x64xf32>
    %90 = vector.broadcast %89 : vector<1x64xf32> to vector<8x64xf32>
    %91 = arith.addf %88, %90 : vector<8x64xf32>
    %92 = arith.addf %81, %91 : vector<8x64xf32>
    %c0_75 = arith.constant 0 : index
    %c0_76 = arith.constant 0 : index
    %c0_77 = arith.constant 0 : index
    %93 = vector.load %arg3[%c0_75, %c0_76, %c0_77] : memref<2x8x128xf32, #tpu.memory_space<vmem>>, vector<1x8x128xf32>
    %94 = vector.shape_cast %93 : vector<1x8x128xf32> to vector<8x128xf32>
    %c0_78 = arith.constant 0 : index
    %c0_79 = arith.constant 0 : index
    %95 = vector.load %arg14[%c0_78, %c0_79] : memref<64x384xf32, #tpu.memory_space<vmem>>, vector<64x384xf32>
    %cst_80 = arith.constant dense<0.000000e+00> : vector<8x384xf32>
    %96 = tpu.matmul %92, %95, %cst_80 {dimension_numbers = #tpu.dot_dimension_numbers<[1], [0], [0], [1], [0, 0, 1, 1], [], []>} : vector<8x64xf32>, vector<64x384xf32>, vector<8x384xf32> -> vector<8x384xf32>
    %c0_81 = arith.constant 0 : index
    %c0_82 = arith.constant 0 : index
    %97 = vector.load %arg16[%c0_81, %c0_82] : memref<1x384xf32, #tpu.memory_space<vmem>>, vector<1x384xf32>
    %98 = vector.broadcast %97 : vector<1x384xf32> to vector<8x384xf32>
    %99 = arith.addf %96, %98 : vector<8x384xf32>
    %c0_83 = arith.constant 0 : index
    %c0_84 = arith.constant 0 : index
    %100 = vector.load %arg15[%c0_83, %c0_84] : memref<128x384xf32, #tpu.memory_space<vmem>>, vector<128x384xf32>
    %cst_85 = arith.constant dense<0.000000e+00> : vector<8x384xf32>
    %101 = tpu.matmul %94, %100, %cst_85 {dimension_numbers = #tpu.dot_dimension_numbers<[1], [0], [0], [1], [0, 0, 1, 1], [], []>} : vector<8x128xf32>, vector<128x384xf32>, vector<8x384xf32> -> vector<8x384xf32>
    %c0_86 = arith.constant 0 : index
    %c0_87 = arith.constant 0 : index
    %102 = vector.load %arg17[%c0_86, %c0_87] : memref<1x384xf32, #tpu.memory_space<vmem>>, vector<1x384xf32>
    %103 = vector.broadcast %102 : vector<1x384xf32> to vector<8x384xf32>
    %104 = arith.addf %101, %103 : vector<8x384xf32>
    %105 = vector.extract_strided_slice %99 {offsets = [0, 0], sizes = [8, 128], strides = [1, 1]} : vector<8x384xf32> to vector<8x128xf32>
    %106 = vector.extract_strided_slice %104 {offsets = [0, 0], sizes = [8, 128], strides = [1, 1]} : vector<8x384xf32> to vector<8x128xf32>
    %107 = arith.addf %105, %106 : vector<8x128xf32>
    %108 = arith.negf %107 : vector<8x128xf32>
    %109 = math.exp %108 : vector<8x128xf32>
    %cst_88 = arith.constant 1.000000e+00 : f32
    %110 = vector.broadcast %cst_88 : f32 to vector<8x128xf32>
    %111 = arith.addf %110, %109 : vector<8x128xf32>
    %112 = arith.divf %110, %111 : vector<8x128xf32>
    %113 = vector.extract_strided_slice %99 {offsets = [0, 128], sizes = [8, 128], strides = [1, 1]} : vector<8x384xf32> to vector<8x128xf32>
    %114 = vector.extract_strided_slice %104 {offsets = [0, 128], sizes = [8, 128], strides = [1, 1]} : vector<8x384xf32> to vector<8x128xf32>
    %115 = arith.addf %113, %114 : vector<8x128xf32>
    %116 = arith.negf %115 : vector<8x128xf32>
    %117 = math.exp %116 : vector<8x128xf32>
    %cst_89 = arith.constant 1.000000e+00 : f32
    %118 = vector.broadcast %cst_89 : f32 to vector<8x128xf32>
    %119 = arith.addf %118, %117 : vector<8x128xf32>
    %120 = arith.divf %118, %119 : vector<8x128xf32>
    %121 = vector.extract_strided_slice %99 {offsets = [0, 256], sizes = [8, 128], strides = [1, 1]} : vector<8x384xf32> to vector<8x128xf32>
    %122 = vector.extract_strided_slice %104 {offsets = [0, 256], sizes = [8, 128], strides = [1, 1]} : vector<8x384xf32> to vector<8x128xf32>
    %123 = arith.mulf %112, %122 : vector<8x128xf32>
    %124 = arith.addf %121, %123 : vector<8x128xf32>
    %125 = math.tanh %124 : vector<8x128xf32>
    %cst_90 = arith.constant 1.000000e+00 : f32
    %126 = vector.broadcast %cst_90 : f32 to vector<8x128xf32>
    %127 = arith.subf %126, %120 : vector<8x128xf32>
    %128 = arith.mulf %127, %125 : vector<8x128xf32>
    %129 = arith.mulf %120, %94 : vector<8x128xf32>
    %130 = arith.addf %128, %129 : vector<8x128xf32>
    %c0_91 = arith.constant 0 : index
    %c0_92 = arith.constant 0 : index
    %c0_93 = arith.constant 0 : index
    %131 = vector.load %arg25[%c0_91, %c0_92, %c0_93] : memref<2x8x128xf32, #tpu.memory_space<vmem>>, vector<1x8x128xf32>
    %132 = vector.shape_cast %131 : vector<1x8x128xf32> to vector<8x128xf32>
    %133 = vector.shape_cast %130 : vector<8x128xf32> to vector<1x8x128xf32>
    tpu.vector_store %arg25[%c0_91, %c0_92, %c0_93], %133 {strides = array<i32>} : memref<2x8x128xf32, #tpu.memory_space<vmem>>, vector<1x8x128xf32>,
    %c1_94 = arith.constant 1 : index
    %c0_95 = arith.constant 0 : index
    %c0_96 = arith.constant 0 : index
    %134 = vector.load %arg3[%c1_94, %c0_95, %c0_96] : memref<2x8x128xf32, #tpu.memory_space<vmem>>, vector<1x8x128xf32>
    %135 = vector.shape_cast %134 : vector<1x8x128xf32> to vector<8x128xf32>
    %c0_97 = arith.constant 0 : index
    %c0_98 = arith.constant 0 : index
    %136 = vector.load %arg18[%c0_97, %c0_98] : memref<128x384xf32, #tpu.memory_space<vmem>>, vector<128x384xf32>
    %cst_99 = arith.constant dense<0.000000e+00> : vector<8x384xf32>
    %137 = tpu.matmul %130, %136, %cst_99 {dimension_numbers = #tpu.dot_dimension_numbers<[1], [0], [0], [1], [0, 0, 1, 1], [], []>} : vector<8x128xf32>, vector<128x384xf32>, vector<8x384xf32> -> vector<8x384xf32>
    %c0_100 = arith.constant 0 : index
    %c0_101 = arith.constant 0 : index
    %138 = vector.load %arg20[%c0_100, %c0_101] : memref<1x384xf32, #tpu.memory_space<vmem>>, vector<1x384xf32>
    %139 = vector.broadcast %138 : vector<1x384xf32> to vector<8x384xf32>
    %140 = arith.addf %137, %139 : vector<8x384xf32>
    %c0_102 = arith.constant 0 : index
    %c0_103 = arith.constant 0 : index
    %141 = vector.load %arg19[%c0_102, %c0_103] : memref<128x384xf32, #tpu.memory_space<vmem>>, vector<128x384xf32>
    %cst_104 = arith.constant dense<0.000000e+00> : vector<8x384xf32>
    %142 = tpu.matmul %135, %141, %cst_104 {dimension_numbers = #tpu.dot_dimension_numbers<[1], [0], [0], [1], [0, 0, 1, 1], [], []>} : vector<8x128xf32>, vector<128x384xf32>, vector<8x384xf32> -> vector<8x384xf32>
    %c0_105 = arith.constant 0 : index
    %c0_106 = arith.constant 0 : index
    %143 = vector.load %arg21[%c0_105, %c0_106] : memref<1x384xf32, #tpu.memory_space<vmem>>, vector<1x384xf32>
    %144 = vector.broadcast %143 : vector<1x384xf32> to vector<8x384xf32>
    %145 = arith.addf %142, %144 : vector<8x384xf32>
    %146 = vector.extract_strided_slice %140 {offsets = [0, 0], sizes = [8, 128], strides = [1, 1]} : vector<8x384xf32> to vector<8x128xf32>
    %147 = vector.extract_strided_slice %145 {offsets = [0, 0], sizes = [8, 128], strides = [1, 1]} : vector<8x384xf32> to vector<8x128xf32>
    %148 = arith.addf %146, %147 : vector<8x128xf32>
    %149 = arith.negf %148 : vector<8x128xf32>
    %150 = math.exp %149 : vector<8x128xf32>
    %cst_107 = arith.constant 1.000000e+00 : f32
    %151 = vector.broadcast %cst_107 : f32 to vector<8x128xf32>
    %152 = arith.addf %151, %150 : vector<8x128xf32>
    %153 = arith.divf %151, %152 : vector<8x128xf32>
    %154 = vector.extract_strided_slice %140 {offsets = [0, 128], sizes = [8, 128], strides = [1, 1]} : vector<8x384xf32> to vector<8x128xf32>
    %155 = vector.extract_strided_slice %145 {offsets = [0, 128], sizes = [8, 128], strides = [1, 1]} : vector<8x384xf32> to vector<8x128xf32>
    %156 = arith.addf %154, %155 : vector<8x128xf32>
    %157 = arith.negf %156 : vector<8x128xf32>
    %158 = math.exp %157 : vector<8x128xf32>
    %cst_108 = arith.constant 1.000000e+00 : f32
    %159 = vector.broadcast %cst_108 : f32 to vector<8x128xf32>
    %160 = arith.addf %159, %158 : vector<8x128xf32>
    %161 = arith.divf %159, %160 : vector<8x128xf32>
    %162 = vector.extract_strided_slice %140 {offsets = [0, 256], sizes = [8, 128], strides = [1, 1]} : vector<8x384xf32> to vector<8x128xf32>
    %163 = vector.extract_strided_slice %145 {offsets = [0, 256], sizes = [8, 128], strides = [1, 1]} : vector<8x384xf32> to vector<8x128xf32>
    %164 = arith.mulf %153, %163 : vector<8x128xf32>
    %165 = arith.addf %162, %164 : vector<8x128xf32>
    %166 = math.tanh %165 : vector<8x128xf32>
    %cst_109 = arith.constant 1.000000e+00 : f32
    %167 = vector.broadcast %cst_109 : f32 to vector<8x128xf32>
    %168 = arith.subf %167, %161 : vector<8x128xf32>
    %169 = arith.mulf %168, %166 : vector<8x128xf32>
    %170 = arith.mulf %161, %135 : vector<8x128xf32>
    %171 = arith.addf %169, %170 : vector<8x128xf32>
    %c1_110 = arith.constant 1 : index
    %c0_111 = arith.constant 0 : index
    %c0_112 = arith.constant 0 : index
    %172 = vector.load %arg25[%c1_110, %c0_111, %c0_112] : memref<2x8x128xf32, #tpu.memory_space<vmem>>, vector<1x8x128xf32>
    %173 = vector.shape_cast %172 : vector<1x8x128xf32> to vector<8x128xf32>
    %174 = vector.shape_cast %171 : vector<8x128xf32> to vector<1x8x128xf32>
    tpu.vector_store %arg25[%c1_110, %c0_111, %c0_112], %174 {strides = array<i32>} : memref<2x8x128xf32, #tpu.memory_space<vmem>>, vector<1x8x128xf32>,
    %175 = vector.shape_cast %171 : vector<8x128xf32> to vector<1x8x128xf32>
    %176 = vector.shape_cast %175 : vector<1x8x128xf32> to vector<1x8x128xf32>
    %177 = vector.broadcast %176 : vector<1x8x128xf32> to vector<16x8x128xf32>
    %178 = vector.shape_cast %177 : vector<16x8x128xf32> to vector<128x128xf32>
    %179 = arith.mulf %178, %47 : vector<128x128xf32>
    %c0_113 = arith.constant 0 : index
    %c0_114 = arith.constant 0 : index
    %180 = vector.load %arg13[%c0_113, %c0_114] : memref<128x128xf32, #tpu.memory_space<vmem>>, vector<128x128xf32>
    %cst_115 = arith.constant dense<0.000000e+00> : vector<128x128xf32>
    %181 = tpu.matmul %179, %180, %cst_115 {dimension_numbers = #tpu.dot_dimension_numbers<[1], [0], [0], [1], [0, 0, 1, 1], [], []>} : vector<128x128xf32>, vector<128x128xf32>, vector<128x128xf32> -> vector<128x128xf32>
    %cst_116 = arith.constant 0.176776692 : f32
    %182 = vector.broadcast %cst_116 : f32 to vector<128x128xf32>
    %183 = arith.mulf %181, %182 : vector<128x128xf32>
    %184 = vector.shape_cast %183 : vector<128x128xf32> to vector<16x8x128xf32>
    %cst_117 = arith.constant dense<0xFF800000> : vector<8x128xf32>
    %185 = vector.multi_reduction <maximumf>, %184, %cst_117 [0] : vector<16x8x128xf32> to vector<8x128xf32>
    %186 = vector.shape_cast %185 : vector<8x128xf32> to vector<1x8x128xf32>
    %187 = vector.broadcast %186 : vector<1x8x128xf32> to vector<16x8x128xf32>
    %188 = arith.subf %184, %187 : vector<16x8x128xf32>
    %189 = math.exp %188 : vector<16x8x128xf32>
    %cst_118 = arith.constant dense<0.000000e+00> : vector<8x128xf32>
    %190 = vector.multi_reduction <add>, %189, %cst_118 [0] : vector<16x8x128xf32> to vector<8x128xf32>
    %191 = vector.shape_cast %190 : vector<8x128xf32> to vector<1x8x128xf32>
    %192 = tpu.reciprocal %191 {approx = true} : vector<1x8x128xf32> -> vector<1x8x128xf32>
    %193 = vector.broadcast %192 : vector<1x8x128xf32> to vector<16x8x128xf32>
    %194 = arith.mulf %189, %193 : vector<16x8x128xf32>
    %195 = vector.shape_cast %48 : vector<128x128xf32> to vector<16x8x128xf32>
    %196 = arith.mulf %194, %195 : vector<16x8x128xf32>
    %cst_119 = arith.constant dense<0.000000e+00> : vector<8x128xf32>
    %197 = vector.multi_reduction <add>, %196, %cst_119 [0] : vector<16x8x128xf32> to vector<8x128xf32>
    %c0_120 = arith.constant 0 : index
    %c0_121 = arith.constant 0 : index
    %198 = vector.load %arg11[%c0_120, %c0_121] : memref<128x128xf32, #tpu.memory_space<vmem>>, vector<128x128xf32>
    %cst_122 = arith.constant dense<0.000000e+00> : vector<8x128xf32>
    %199 = tpu.matmul %197, %198, %cst_122 {dimension_numbers = #tpu.dot_dimension_numbers<[1], [0], [0], [1], [0, 0, 1, 1], [], []>} : vector<8x128xf32>, vector<128x128xf32>, vector<8x128xf32> -> vector<8x128xf32>
    %c0_123 = arith.constant 0 : index
    %c0_124 = arith.constant 0 : index
    %200 = vector.load %arg12[%c0_123, %c0_124] : memref<1x128xf32, #tpu.memory_space<vmem>>, vector<1x128xf32>
    %201 = vector.broadcast %200 : vector<1x128xf32> to vector<8x128xf32>
    %202 = arith.addf %199, %201 : vector<8x128xf32>
    %203 = arith.addf %171, %202 : vector<8x128xf32>
    %c0_125 = arith.constant 0 : index
    %c0_126 = arith.constant 0 : index
    %204 = vector.load %arg22[%c0_125, %c0_126] : memref<128x128xf32, #tpu.memory_space<vmem>>, vector<128x128xf32>
    %cst_127 = arith.constant dense<0.000000e+00> : vector<8x128xf32>
    %205 = tpu.matmul %203, %204, %cst_127 {dimension_numbers = #tpu.dot_dimension_numbers<[1], [0], [0], [1], [0, 0, 1, 1], [], []>} : vector<8x128xf32>, vector<128x128xf32>, vector<8x128xf32> -> vector<8x128xf32>
    %c0_128 = arith.constant 0 : index
    %c0_129 = arith.constant 0 : index
    %206 = vector.load %arg23[%c0_128, %c0_129] : memref<1x128xf32, #tpu.memory_space<vmem>>, vector<1x128xf32>
    %207 = vector.broadcast %206 : vector<1x128xf32> to vector<8x128xf32>
    %208 = arith.addf %205, %207 : vector<8x128xf32>
    %c0_130 = arith.constant 0 : index
    %c0_131 = arith.constant 0 : index
    %209 = vector.load %arg24[%c0_130, %c0_131] : memref<8x128xf32, #tpu.memory_space<vmem>>, vector<8x128xf32>
    tpu.vector_store %arg24[%c0_130, %c0_131], %208 {strides = array<i32>} : memref<8x128xf32, #tpu.memory_space<vmem>>, vector<8x128xf32>,
    return
  }
  func.func @transform_1(%arg0: i32, %arg1: memref<8xi32, #tpu.memory_space<smem>>) -> (i32, i32, i32) {
    %c0_i32 = arith.constant 0 : i32
    %c0_i32_0 = arith.constant 0 : i32
    %c0_i32_1 = arith.constant 0 : i32
    %c0_i32_2 = arith.constant 0 : i32
    return %c0_i32, %c0_i32_0, %c0_i32_1 : i32, i32, i32
  }
  func.func @transform_2(%arg0: i32, %arg1: memref<8xi32, #tpu.memory_space<smem>>) -> (i32, i32, i32) {
    %c0_i32 = arith.constant 0 : i32
    %c0_i32_0 = arith.constant 0 : i32
    %c0_i32_1 = arith.constant 0 : i32
    %c0_i32_2 = arith.constant 0 : i32
    return %c0_i32, %c0_i32_0, %c0_i32_1 : i32, i32, i32
  }
  func.func @transform_3(%arg0: i32, %arg1: memref<8xi32, #tpu.memory_space<smem>>) -> (i32, i32) {
    %c0_i32 = arith.constant 0 : i32
    %c0_i32_0 = arith.constant 0 : i32
    %c0_i32_1 = arith.constant 0 : i32
    return %c0_i32, %c0_i32_0 : i32, i32
  }
  func.func @transform_4(%arg0: i32, %arg1: memref<8xi32, #tpu.memory_space<smem>>) -> (i32, i32) {
    %c0_i32 = arith.constant 0 : i32
    %c0_i32_0 = arith.constant 0 : i32
    %c0_i32_1 = arith.constant 0 : i32
    return %c0_i32, %c0_i32_0 : i32, i32
  }
  func.func @transform_5(%arg0: i32, %arg1: memref<8xi32, #tpu.memory_space<smem>>) -> (i32, i32) {
    %c0_i32 = arith.constant 0 : i32
    %c0_i32_0 = arith.constant 0 : i32
    %c0_i32_1 = arith.constant 0 : i32
    return %c0_i32, %c0_i32_0 : i32, i32
  }
  func.func @transform_6(%arg0: i32, %arg1: memref<8xi32, #tpu.memory_space<smem>>) -> (i32, i32) {
    %c0_i32 = arith.constant 0 : i32
    %c0_i32_0 = arith.constant 0 : i32
    %c0_i32_1 = arith.constant 0 : i32
    return %c0_i32, %c0_i32_0 : i32, i32
  }
  func.func @transform_7(%arg0: i32, %arg1: memref<8xi32, #tpu.memory_space<smem>>) -> (i32, i32) {
    %c0_i32 = arith.constant 0 : i32
    %c0_i32_0 = arith.constant 0 : i32
    %c0_i32_1 = arith.constant 0 : i32
    return %c0_i32, %c0_i32_0 : i32, i32
  }
  func.func @transform_8(%arg0: i32, %arg1: memref<8xi32, #tpu.memory_space<smem>>) -> (i32, i32) {
    %c0_i32 = arith.constant 0 : i32
    %c0_i32_0 = arith.constant 0 : i32
    %c0_i32_1 = arith.constant 0 : i32
    return %c0_i32, %c0_i32_0 : i32, i32
  }
  func.func @transform_9(%arg0: i32, %arg1: memref<8xi32, #tpu.memory_space<smem>>) -> (i32, i32) {
    %c0_i32 = arith.constant 0 : i32
    %c0_i32_0 = arith.constant 0 : i32
    %c0_i32_1 = arith.constant 0 : i32
    return %c0_i32, %c0_i32_0 : i32, i32
  }
  func.func @transform_10(%arg0: i32, %arg1: memref<8xi32, #tpu.memory_space<smem>>) -> (i32, i32) {
    %c0_i32 = arith.constant 0 : i32
    %c0_i32_0 = arith.constant 0 : i32
    %c0_i32_1 = arith.constant 0 : i32
    return %c0_i32, %c0_i32_0 : i32, i32
  }
  func.func @transform_11(%arg0: i32, %arg1: memref<8xi32, #tpu.memory_space<smem>>) -> (i32, i32) {
    %c0_i32 = arith.constant 0 : i32
    %c0_i32_0 = arith.constant 0 : i32
    %c0_i32_1 = arith.constant 0 : i32
    return %c0_i32, %c0_i32_0 : i32, i32
  }
  func.func @transform_12(%arg0: i32, %arg1: memref<8xi32, #tpu.memory_space<smem>>) -> (i32, i32) {
    %c0_i32 = arith.constant 0 : i32
    %c0_i32_0 = arith.constant 0 : i32
    %c0_i32_1 = arith.constant 0 : i32
    return %c0_i32, %c0_i32_0 : i32, i32
  }
  func.func @transform_13(%arg0: i32, %arg1: memref<8xi32, #tpu.memory_space<smem>>) -> (i32, i32) {
    %c0_i32 = arith.constant 0 : i32
    %c0_i32_0 = arith.constant 0 : i32
    %c0_i32_1 = arith.constant 0 : i32
    return %c0_i32, %c0_i32_0 : i32, i32
  }
  func.func @transform_14(%arg0: i32, %arg1: memref<8xi32, #tpu.memory_space<smem>>) -> (i32, i32) {
    %c0_i32 = arith.constant 0 : i32
    %c0_i32_0 = arith.constant 0 : i32
    %c0_i32_1 = arith.constant 0 : i32
    return %c0_i32, %c0_i32_0 : i32, i32
  }
  func.func @transform_15(%arg0: i32, %arg1: memref<8xi32, #tpu.memory_space<smem>>) -> (i32, i32) {
    %c0_i32 = arith.constant 0 : i32
    %c0_i32_0 = arith.constant 0 : i32
    %c0_i32_1 = arith.constant 0 : i32
    return %c0_i32, %c0_i32_0 : i32, i32
  }
  func.func @transform_16(%arg0: i32, %arg1: memref<8xi32, #tpu.memory_space<smem>>) -> (i32, i32) {
    %c0_i32 = arith.constant 0 : i32
    %c0_i32_0 = arith.constant 0 : i32
    %c0_i32_1 = arith.constant 0 : i32
    return %c0_i32, %c0_i32_0 : i32, i32
  }
  func.func @transform_17(%arg0: i32, %arg1: memref<8xi32, #tpu.memory_space<smem>>) -> (i32, i32) {
    %c0_i32 = arith.constant 0 : i32
    %c0_i32_0 = arith.constant 0 : i32
    %c0_i32_1 = arith.constant 0 : i32
    return %c0_i32, %c0_i32_0 : i32, i32
  }
  func.func @transform_18(%arg0: i32, %arg1: memref<8xi32, #tpu.memory_space<smem>>) -> (i32, i32) {
    %c0_i32 = arith.constant 0 : i32
    %c0_i32_0 = arith.constant 0 : i32
    %c0_i32_1 = arith.constant 0 : i32
    return %c0_i32, %c0_i32_0 : i32, i32
  }
  func.func @transform_19(%arg0: i32, %arg1: memref<8xi32, #tpu.memory_space<smem>>) -> (i32, i32) {
    %c0_i32 = arith.constant 0 : i32
    %c0_i32_0 = arith.constant 0 : i32
    %c0_i32_1 = arith.constant 0 : i32
    return %c0_i32, %c0_i32_0 : i32, i32
  }
  func.func @transform_20(%arg0: i32, %arg1: memref<8xi32, #tpu.memory_space<smem>>) -> (i32, i32) {
    %c0_i32 = arith.constant 0 : i32
    %c0_i32_0 = arith.constant 0 : i32
    %c0_i32_1 = arith.constant 0 : i32
    return %c0_i32, %c0_i32_0 : i32, i32
  }
  func.func @transform_21(%arg0: i32, %arg1: memref<8xi32, #tpu.memory_space<smem>>) -> (i32, i32) {
    %c0_i32 = arith.constant 0 : i32
    %c0_i32_0 = arith.constant 0 : i32
    %c0_i32_1 = arith.constant 0 : i32
    return %c0_i32, %c0_i32_0 : i32, i32
  }
  func.func @transform_22(%arg0: i32, %arg1: memref<8xi32, #tpu.memory_space<smem>>) -> (i32, i32) {
    %c0_i32 = arith.constant 0 : i32
    %c0_i32_0 = arith.constant 0 : i32
    %c0_i32_1 = arith.constant 0 : i32
    return %c0_i32, %c0_i32_0 : i32, i32
  }
  func.func @transform_23(%arg0: i32, %arg1: memref<8xi32, #tpu.memory_space<smem>>) -> (i32, i32, i32) {
    %c0_i32 = arith.constant 0 : i32
    %c0_i32_0 = arith.constant 0 : i32
    %c0_i32_1 = arith.constant 0 : i32
    %c0_i32_2 = arith.constant 0 : i32
    return %c0_i32, %c0_i32_0, %c0_i32_1 : i32, i32, i32
  }
}

</mosaic_0001>

<llo_original>
// kernel: decoder_cnn_forward.1
$region0: #{decoder_cnn_forward.1}
  #allocation0 [shape = 'u32[]', space=smem, size = 0x4, offset = 0x4, fixed_abs, tag = 'smem constant byte address 0x4 - core index']
  #allocation1 [shape = 'u32[144,128]{1,0:T(1,128)}', space=vmem, size = 0x12000, scoped, tag = 'internal scratch']
  #allocation2 [shape = 'f32[8,64]{1,0:T(8,128)}', space=vmem, size = 0x1000, scoped, tag = 'scratch operand']
  #allocation3 [shape = 's32[8]{0}', space=sflag, size = 0x20, scoped, tag = 'scratch operand']
  #allocation4 [shape = 's32[1]{0}', space=sflag, size = 0x4, scoped, tag = 'scoped memory for decoder_cnn_forward.1']
  #allocation5 [shape = 'u8[512]{0}', space=smem, size = 0x200, scoped, tag = 'prefetched SMEM operand 0']
  #allocation32 [shape = 's32[]', space=sflag, size = 0x4, offset = 0, fixed_abs, tag = 'sflag constant byte address 0x0 - dummy sync flag']
  #allocation33 [shape = 's32[]', space=sflag, size = 0x4, offset = 0, fixed_abs, tag = 'sflag constant byte address 0x0 - dummy sync flag']
  #allocation34 [shape = 's32[]', space=sflag, size = 0x4, offset = 0, fixed_abs, tag = 'sflag constant byte address 0x0 - dummy sync flag']
  #allocation35 [shape = 's32[]', space=sflag, size = 0x4, offset = 0, fixed_abs, tag = 'sflag constant byte address 0x0 - dummy sync flag']
  #allocation36 [shape = 's32[]', space=sflag, size = 0x4, offset = 0, fixed_abs, tag = 'sflag constant byte address 0x0 - dummy sync flag']
  #allocation37 [shape = 's32[]', space=sflag, size = 0x4, offset = 0, fixed_abs, tag = 'sflag constant byte address 0x0 - dummy sync flag']
  #allocation38 [shape = 's32[]', space=sflag, size = 0x4, offset = 0, fixed_abs, tag = 'sflag constant byte address 0x0 - dummy sync flag']
  #allocation39 [shape = 's32[]', space=sflag, size = 0x4, offset = 0, fixed_abs, tag = 'sflag constant byte address 0x0 - dummy sync flag']
  %s0 = inlined_call_operand.vmem [shape: s32[8], index: 0, kind: input, shape index: {}]
  %s1 = inlined_call_operand.vmem [shape: f32[128,64], index: 1, kind: input, shape index: {}]
  %s2 = inlined_call_operand.vmem [shape: f32[2,8,128], index: 2, kind: input, shape index: {}]
  %s3 = inlined_call_operand.hbm [shape: f32[16,8,128], index: 3, kind: input, shape index: {}]
  %s4 = inlined_call_operand.hbm [shape: f32[64,64], index: 4, kind: input, shape index: {}]
  %s5 = inlined_call_operand.vmem [shape: f32[1,64], index: 5, kind: input, shape index: {}]
  %s6 = inlined_call_operand.hbm [shape: f32[64,64], index: 6, kind: input, shape index: {}]
  %s7 = inlined_call_operand.vmem [shape: f32[1,64], index: 7, kind: input, shape index: {}]
  %s8 = inlined_call_operand.vmem [shape: f32[128,256], index: 8, kind: input, shape index: {}]
  %s9 = inlined_call_operand.hbm [shape: f32[1,256], index: 9, kind: input, shape index: {}]
  %s10 = inlined_call_operand.hbm [shape: f32[128,128], index: 10, kind: input, shape index: {}]
  %s11 = inlined_call_operand.hbm [shape: f32[1,128], index: 11, kind: input, shape index: {}]
  %s12 = inlined_call_operand.vmem [shape: f32[128,128], index: 12, kind: input, shape index: {}]
  %s13 = inlined_call_operand.hbm [shape: f32[64,384], index: 13, kind: input, shape index: {}]
  %s14 = inlined_call_operand.hbm [shape: f32[128,384], index: 14, kind: input, shape index: {}]
  %s15 = inlined_call_operand.hbm [shape: f32[1,384], index: 15, kind: input, shape index: {}]
  %s16 = inlined_call_operand.hbm [shape: f32[1,384], index: 16, kind: input, shape index: {}]
  %s17 = inlined_call_operand.hbm [shape: f32[128,384], index: 17, kind: input, shape index: {}]
  %s18 = inlined_call_operand.hbm [shape: f32[128,384], index: 18, kind: input, shape index: {}]
  %s19 = inlined_call_operand.vmem [shape: f32[1,384], index: 19, kind: input, shape index: {}]
  %s20 = inlined_call_operand.hbm [shape: f32[1,384], index: 20, kind: input, shape index: {}]
  %s21 = inlined_call_operand.hbm [shape: f32[128,128], index: 21, kind: input, shape index: {}]
  %s22 = inlined_call_operand.vmem [shape: f32[1,128], index: 22, kind: input, shape index: {}]
  %s23 = inlined_call_operand.hbm [shape: f32[8,128], index: 23, kind: output, shape index: {0}]
  %s24 = inlined_call_operand.hbm [shape: f32[2,8,128], index: 24, kind: output, shape index: {1}]
  %25 = xla_tuple %s23, %s24
  %s26 = sld [smem:[#allocation0]]
  $region398: #{decoder_cnn_forward.1} parent=0
    _
  %s28 = ssub.s32 1, %s26
  %s29 = scalar_select 0, %s28, %s26
  %s30 = sshll.u32 %s0, 4
  %s31 = int_to_ptr.vmem [resolvable:$true] %s30
  %33 = dma.vmem_to_smem %s31, 16, [#allocation5], [#allocation4]
  %34 = dma.done [#allocation4], 16
  %35 = sfence
  $region1: #{decoder_cnn_forward.1} parent=0
    #allocation6 [shape = 'u8[65536]{0}', space=vmem, size = 0x10000, scoped, tag = 'input window, operand 3, single buffered']
    #allocation7 [shape = 's32[1]{0}', space=sflag, size = 0x4, scoped, tag = 'scoped memory for decoder_cnn_forward.1']
    #allocation8 [shape = 's32[1]{0}', space=sflag, size = 0x4, scoped, tag = 'scoped memory for decoder_cnn_forward.1']
    #allocation9 [shape = 'u8[32768]{0}', space=vmem, size = 0x8000, scoped, tag = 'input window, operand 4, single buffered']
    #allocation10 [shape = 's32[1]{0}', space=sflag, size = 0x4, scoped, tag = 'scoped memory for decoder_cnn_forward.1']
    #allocation11 [shape = 'u8[32768]{0}', space=vmem, size = 0x8000, scoped, tag = 'input window, operand 6, single buffered']
    #allocation12 [shape = 'u8[1024]{0}', space=vmem, size = 0x400, scoped, tag = 'input window, operand 9, single buffered']
    #allocation13 [shape = 's32[1]{0}', space=sflag, size = 0x4, scoped, tag = 'scoped memory for decoder_cnn_forward.1']
    #allocation14 [shape = 'u8[65536]{0}', space=vmem, size = 0x10000, scoped, tag = 'input window, operand 10, single buffered']
    #allocation15 [shape = 'u8[512]{0}', space=vmem, size = 0x400, scoped, tag = 'input window, operand 11, single buffered']
    #allocation16 [shape = 's32[1]{0}', space=sflag, size = 0x4, scoped, tag = 'scoped memory for decoder_cnn_forward.1']
    #allocation17 [shape = 'u8[98304]{0}', space=vmem, size = 0x18000, scoped, tag = 'input window, operand 13, single buffered']
    #allocation18 [shape = 'u8[196608]{0}', space=vmem, size = 0x30000, scoped, tag = 'input window, operand 14, single buffered']
    #allocation19 [shape = 's32[1]{0}', space=sflag, size = 0x4, scoped, tag = 'scoped memory for decoder_cnn_forward.1']
    #allocation20 [shape = 'u8[1536]{0}', space=vmem, size = 0x800, scoped, tag = 'input window, operand 15, single buffered']
    #allocation21 [shape = 'u8[1536]{0}', space=vmem, size = 0x800, scoped, tag = 'input window, operand 16, single buffered']
    #allocation22 [shape = 's32[1]{0}', space=sflag, size = 0x4, scoped, tag = 'scoped memory for decoder_cnn_forward.1']
    #allocation23 [shape = 'u8[196608]{0}', space=vmem, size = 0x30000, scoped, tag = 'input window, operand 17, single buffered']
    #allocation24 [shape = 'u8[196608]{0}', space=vmem, size = 0x30000, scoped, tag = 'input window, operand 18, single buffered']
    #allocation25 [shape = 's32[1]{0}', space=sflag, size = 0x4, scoped, tag = 'scoped memory for decoder_cnn_forward.1']
    #allocation26 [shape = 'u8[1536]{0}', space=vmem, size = 0x800, scoped, tag = 'input window, operand 20, single buffered']
    #allocation27 [shape = 'u8[65536]{0}', space=vmem, size = 0x10000, scoped, tag = 'input window, operand 21, single buffered']
    #allocation28 [shape = 's32[1]{0}', space=sflag, size = 0x4, scoped, tag = 'scoped memory for decoder_cnn_forward.1']
    #allocation29 [shape = 'u8[4096]{0}', space=vmem, size = 0x1000, scoped, tag = 'output window, operand 0, single buffered']
    #allocation30 [shape = 'u8[8192]{0}', space=vmem, size = 0x2000, scoped, tag = 'output window, operand 1, single buffered']
    #allocation31 [shape = 's32[1]{0}', space=sflag, size = 0x4, scoped, tag = 'scoped memory for decoder_cnn_forward.1']
    %36 = vsyncpa [#allocation7], 0
    %37 = vsyncpa [#allocation10], 0
    %38 = vsyncpa [#allocation13], 0
    %39 = vsyncpa [#allocation16], 0
    %40 = vsyncpa [#allocation19], 0
    %41 = vsyncpa [#allocation22], 0
    %42 = vsyncpa [#allocation25], 0
    %43 = vsyncpa [#allocation28], 0
    %44 = vsyncpa [#allocation8], 0
    %45 = vsyncpa [#allocation31], 0
    // Predicated region
    $region2: #{decoder_cnn_forward.1} parent=1 // pred_check
      _
    $region3: #{decoder_cnn_forward.1} parent=1 // pred_check_branch
      %47 = sbr.rel (0) target = $region5
    $region4: #{decoder_cnn_forward.1} parent=1 // pred_region
      _
    $region5: #{decoder_cnn_forward.1} parent=1 // pred_fallthru
      _
    // Predicated region
    $region6: #{decoder_cnn_forward.1} parent=1 // pred_check
      _
    $region7: #{decoder_cnn_forward.1} parent=1 // pred_check_branch
      %49 = sbr.rel (0) target = $region9
    $region8: #{decoder_cnn_forward.1} parent=1 // pred_region
      %s51 = ssub.s32 2048, 2048
      %52 = vsyncadd [#allocation7], %s51
      %s53 = sshll.u32 [#allocation6], 4
      %s54 = int_to_ptr.vmem [resolvable:$true] %s53
      %59 = dma.hbm_to_vmem [thread:$0]  %s3, 2048, %s54, [#allocation7], 128, 128, 8
    $region9: #{decoder_cnn_forward.1} parent=1 // pred_fallthru
      _
    // Predicated region
    $region10: #{decoder_cnn_forward.1} parent=1 // pred_check
      _
    $region11: #{decoder_cnn_forward.1} parent=1 // pred_check_branch
      %61 = sbr.rel (0) target = $region13
    $region12: #{decoder_cnn_forward.1} parent=1 // pred_region
      %s63 = ssub.s32 1024, 1024
      %64 = vsyncadd [#allocation10], %s63
      %s65 = sshll.u32 [#allocation9], 4
      %s66 = int_to_ptr.vmem [resolvable:$true] %s65
      %71 = dma.hbm_to_vmem [thread:$0]  %s4, 1024, %s66, [#allocation10], 128, 128, 8
    $region13: #{decoder_cnn_forward.1} parent=1 // pred_fallthru
      _
    // Predicated region
    $region14: #{decoder_cnn_forward.1} parent=1 // pred_check
      _
    $region15: #{decoder_cnn_forward.1} parent=1 // pred_check_branch
      %73 = sbr.rel (0) target = $region17
    $region16: #{decoder_cnn_forward.1} parent=1 // pred_region
      _
    $region17: #{decoder_cnn_forward.1} parent=1 // pred_fallthru
      _
    // Predicated region
    $region18: #{decoder_cnn_forward.1} parent=1 // pred_check
      _
    $region19: #{decoder_cnn_forward.1} parent=1 // pred_check_branch
      %75 = sbr.rel (0) target = $region21
    $region20: #{decoder_cnn_forward.1} parent=1 // pred_region
      %s77 = ssub.s32 1024, 1024
      %78 = vsyncadd [#allocation10], %s77
      %s79 = sshll.u32 [#allocation11], 4
      %s80 = int_to_ptr.vmem [resolvable:$true] %s79
      %85 = dma.hbm_to_vmem [thread:$0]  %s6, 1024, %s80, [#allocation10], 128, 128, 8
    $region21: #{decoder_cnn_forward.1} parent=1 // pred_fallthru
      _
    // Predicated region
    $region22: #{decoder_cnn_forward.1} parent=1 // pred_check
      _
    $region23: #{decoder_cnn_forward.1} parent=1 // pred_check_branch
      %87 = sbr.rel (0) target = $region25
    $region24: #{decoder_cnn_forward.1} parent=1 // pred_region
      _
    $region25: #{decoder_cnn_forward.1} parent=1 // pred_fallthru
      _
    // Predicated region
    $region26: #{decoder_cnn_forward.1} parent=1 // pred_check
      _
    $region27: #{decoder_cnn_forward.1} parent=1 // pred_check_branch
      %89 = sbr.rel (0) target = $region29
    $region28: #{decoder_cnn_forward.1} parent=1 // pred_region
      _
    $region29: #{decoder_cnn_forward.1} parent=1 // pred_fallthru
      _
    // Predicated region
    $region30: #{decoder_cnn_forward.1} parent=1 // pred_check
      _
    $region31: #{decoder_cnn_forward.1} parent=1 // pred_check_branch
      %91 = sbr.rel (0) target = $region33
    $region32: #{decoder_cnn_forward.1} parent=1 // pred_region
      %s93 = ssub.s32 32, 32
      %94 = vsyncadd [#allocation13], %s93
      %s96 = sshll.u32 [#allocation12], 4
      %s97 = int_to_ptr.vmem [resolvable:$true] %s96
      %99 = dma.hbm_to_vmem [thread:$0]  %s9, 32, %s97, [#allocation13]
    $region33: #{decoder_cnn_forward.1} parent=1 // pred_fallthru
      _
    // Predicated region
    $region34: #{decoder_cnn_forward.1} parent=1 // pred_check
      _
    $region35: #{decoder_cnn_forward.1} parent=1 // pred_check_branch
      %101 = sbr.rel (0) target = $region37
    $region36: #{decoder_cnn_forward.1} parent=1 // pred_region
      %s103 = ssub.s32 2048, 2048
      %104 = vsyncadd [#allocation13], %s103
      %s105 = sshll.u32 [#allocation14], 4
      %s106 = int_to_ptr.vmem [resolvable:$true] %s105
      %111 = dma.hbm_to_vmem [thread:$0]  %s10, 2048, %s106, [#allocation13], 128, 128, 8
    $region37: #{decoder_cnn_forward.1} parent=1 // pred_fallthru
      _
    // Predicated region
    $region38: #{decoder_cnn_forward.1} parent=1 // pred_check
      _
    $region39: #{decoder_cnn_forward.1} parent=1 // pred_check_branch
      %113 = sbr.rel (0) target = $region41
    $region40: #{decoder_cnn_forward.1} parent=1 // pred_region
      %s115 = ssub.s32 16, 16
      %116 = vsyncadd [#allocation16], %s115
      %s118 = sshll.u32 [#allocation15], 4
      %s119 = int_to_ptr.vmem [resolvable:$true] %s118
      %121 = dma.hbm_to_vmem [thread:$0]  %s11, 16, %s119, [#allocation16]
    $region41: #{decoder_cnn_forward.1} parent=1 // pred_fallthru
      _
    // Predicated region
    $region42: #{decoder_cnn_forward.1} parent=1 // pred_check
      _
    $region43: #{decoder_cnn_forward.1} parent=1 // pred_check_branch
      %123 = sbr.rel (0) target = $region45
    $region44: #{decoder_cnn_forward.1} parent=1 // pred_region
      _
    $region45: #{decoder_cnn_forward.1} parent=1 // pred_fallthru
      _
    // Predicated region
    $region46: #{decoder_cnn_forward.1} parent=1 // pred_check
      _
    $region47: #{decoder_cnn_forward.1} parent=1 // pred_check_branch
      %125 = sbr.rel (0) target = $region49
    $region48: #{decoder_cnn_forward.1} parent=1 // pred_region
      %s127 = ssub.s32 3072, 3072
      %128 = vsyncadd [#allocation16], %s127
      %s129 = sshll.u32 [#allocation17], 4
      %s130 = int_to_ptr.vmem [resolvable:$true] %s129
      %135 = dma.hbm_to_vmem [thread:$0]  %s13, 3072, %s130, [#allocation16], 384, 384, 24
    $region49: #{decoder_cnn_forward.1} parent=1 // pred_fallthru
      _
    // Predicated region
    $region50: #{decoder_cnn_forward.1} parent=1 // pred_check
      _
    $region51: #{decoder_cnn_forward.1} parent=1 // pred_check_branch
      %137 = sbr.rel (0) target = $region53
    $region52: #{decoder_cnn_forward.1} parent=1 // pred_region
      %s139 = ssub.s32 6144, 6144
      %140 = vsyncadd [#allocation19], %s139
      %s141 = sshll.u32 [#allocation18], 4
      %s142 = int_to_ptr.vmem [resolvable:$true] %s141
      %147 = dma.hbm_to_vmem [thread:$0]  %s14, 6144, %s142, [#allocation19], 384, 384, 24
    $region53: #{decoder_cnn_forward.1} parent=1 // pred_fallthru
      _
    // Predicated region
    $region54: #{decoder_cnn_forward.1} parent=1 // pred_check
      _
    $region55: #{decoder_cnn_forward.1} parent=1 // pred_check_branch
      %149 = sbr.rel (0) target = $region57
    $region56: #{decoder_cnn_forward.1} parent=1 // pred_region
      %s151 = ssub.s32 48, 48
      %152 = vsyncadd [#allocation19], %s151
      %s154 = sshll.u32 [#allocation20], 4
      %s155 = int_to_ptr.vmem [resolvable:$true] %s154
      %157 = dma.hbm_to_vmem [thread:$0]  %s15, 48, %s155, [#allocation19]
    $region57: #{decoder_cnn_forward.1} parent=1 // pred_fallthru
      _
    // Predicated region
    $region58: #{decoder_cnn_forward.1} parent=1 // pred_check
      _
    $region59: #{decoder_cnn_forward.1} parent=1 // pred_check_branch
      %159 = sbr.rel (0) target = $region61
    $region60: #{decoder_cnn_forward.1} parent=1 // pred_region
      %s161 = ssub.s32 48, 48
      %162 = vsyncadd [#allocation22], %s161
      %s164 = sshll.u32 [#allocation21], 4
      %s165 = int_to_ptr.vmem [resolvable:$true] %s164
      %167 = dma.hbm_to_vmem [thread:$0]  %s16, 48, %s165, [#allocation22]
    $region61: #{decoder_cnn_forward.1} parent=1 // pred_fallthru
      _
    // Predicated region
    $region62: #{decoder_cnn_forward.1} parent=1 // pred_check
      _
    $region63: #{decoder_cnn_forward.1} parent=1 // pred_check_branch
      %169 = sbr.rel (0) target = $region65
    $region64: #{decoder_cnn_forward.1} parent=1 // pred_region
      %s171 = ssub.s32 6144, 6144
      %172 = vsyncadd [#allocation22], %s171
      %s173 = sshll.u32 [#allocation23], 4
      %s174 = int_to_ptr.vmem [resolvable:$true] %s173
      %179 = dma.hbm_to_vmem [thread:$0]  %s17, 6144, %s174, [#allocation22], 384, 384, 24
    $region65: #{decoder_cnn_forward.1} parent=1 // pred_fallthru
      _
    // Predicated region
    $region66: #{decoder_cnn_forward.1} parent=1 // pred_check
      _
    $region67: #{decoder_cnn_forward.1} parent=1 // pred_check_branch
      %181 = sbr.rel (0) target = $region69
    $region68: #{decoder_cnn_forward.1} parent=1 // pred_region
      %s183 = ssub.s32 6144, 6144
      %184 = vsyncadd [#allocation25], %s183
      %s185 = sshll.u32 [#allocation24], 4
      %s186 = int_to_ptr.vmem [resolvable:$true] %s185
      %191 = dma.hbm_to_vmem [thread:$0]  %s18, 6144, %s186, [#allocation25], 384, 384, 24
    $region69: #{decoder_cnn_forward.1} parent=1 // pred_fallthru
      _
    // Predicated region
    $region70: #{decoder_cnn_forward.1} parent=1 // pred_check
      _
    $region71: #{decoder_cnn_forward.1} parent=1 // pred_check_branch
      %193 = sbr.rel (0) target = $region73
    $region72: #{decoder_cnn_forward.1} parent=1 // pred_region
      _
    $region73: #{decoder_cnn_forward.1} parent=1 // pred_fallthru
      _
    // Predicated region
    $region74: #{decoder_cnn_forward.1} parent=1 // pred_check
      _
    $region75: #{decoder_cnn_forward.1} parent=1 // pred_check_branch
      %195 = sbr.rel (0) target = $region77
    $region76: #{decoder_cnn_forward.1} parent=1 // pred_region
      %s197 = ssub.s32 48, 48
      %198 = vsyncadd [#allocation25], %s197
      %s200 = sshll.u32 [#allocation26], 4
      %s201 = int_to_ptr.vmem [resolvable:$true] %s200
      %203 = dma.hbm_to_vmem [thread:$0]  %s20, 48, %s201, [#allocation25]
    $region77: #{decoder_cnn_forward.1} parent=1 // pred_fallthru
      _
    // Predicated region
    $region78: #{decoder_cnn_forward.1} parent=1 // pred_check
      _
    $region79: #{decoder_cnn_forward.1} parent=1 // pred_check_branch
      %205 = sbr.rel (0) target = $region81
    $region80: #{decoder_cnn_forward.1} parent=1 // pred_region
      %s207 = ssub.s32 2048, 2048
      %208 = vsyncadd [#allocation28], %s207
      %s209 = sshll.u32 [#allocation27], 4
      %s210 = int_to_ptr.vmem [resolvable:$true] %s209
      %215 = dma.hbm_to_vmem [thread:$0]  %s21, 2048, %s210, [#allocation28], 128, 128, 8
    $region81: #{decoder_cnn_forward.1} parent=1 // pred_fallthru
      _
    // Predicated region
    $region82: #{decoder_cnn_forward.1} parent=1 // pred_check
      _
    $region83: #{decoder_cnn_forward.1} parent=1 // pred_check_branch
      %217 = sbr.rel (0) target = $region85
    $region84: #{decoder_cnn_forward.1} parent=1 // pred_region
      _
    $region85: #{decoder_cnn_forward.1} parent=1 // pred_fallthru
      _
    // Predicated region
    $region86: #{decoder_cnn_forward.1} parent=1 // pred_check
      _
    $region87: #{decoder_cnn_forward.1} parent=1 // pred_check_branch
      %219 = sbr.rel (0) target = $region89
    $region88: #{decoder_cnn_forward.1} parent=1 // pred_region
      %220 = dma.done [#allocation7], 2048
    $region89: #{decoder_cnn_forward.1} parent=1 // pred_fallthru
      _
    // Predicated region
    $region90: #{decoder_cnn_forward.1} parent=1 // pred_check
      _
    $region91: #{decoder_cnn_forward.1} parent=1 // pred_check_branch
      %222 = sbr.rel (0) target = $region93
    $region92: #{decoder_cnn_forward.1} parent=1 // pred_region
      %223 = dma.done [#allocation10], 1024
    $region93: #{decoder_cnn_forward.1} parent=1 // pred_fallthru
      _
    // Predicated region
    $region94: #{decoder_cnn_forward.1} parent=1 // pred_check
      _
    $region95: #{decoder_cnn_forward.1} parent=1 // pred_check_branch
      %225 = sbr.rel (0) target = $region97
    $region96: #{decoder_cnn_forward.1} parent=1 // pred_region
      %226 = dma.done [#allocation10], 1024
    $region97: #{decoder_cnn_forward.1} parent=1 // pred_fallthru
      _
    // Predicated region
    $region98: #{decoder_cnn_forward.1} parent=1 // pred_check
      _
    $region99: #{decoder_cnn_forward.1} parent=1 // pred_check_branch
      %228 = sbr.rel (0) target = $region101
    $region100: #{decoder_cnn_forward.1} parent=1 // pred_region
      %229 = dma.done [#allocation13], 32
    $region101: #{decoder_cnn_forward.1} parent=1 // pred_fallthru
      _
    // Predicated region
    $region102: #{decoder_cnn_forward.1} parent=1 // pred_check
      _
    $region103: #{decoder_cnn_forward.1} parent=1 // pred_check_branch
      %231 = sbr.rel (0) target = $region105
    $region104: #{decoder_cnn_forward.1} parent=1 // pred_region
      %232 = dma.done [#allocation13], 2048
    $region105: #{decoder_cnn_forward.1} parent=1 // pred_fallthru
      _
    // Predicated region
    $region106: #{decoder_cnn_forward.1} parent=1 // pred_check
      _
    $region107: #{decoder_cnn_forward.1} parent=1 // pred_check_branch
      %234 = sbr.rel (0) target = $region109
    $region108: #{decoder_cnn_forward.1} parent=1 // pred_region
      %235 = dma.done [#allocation16], 16
    $region109: #{decoder_cnn_forward.1} parent=1 // pred_fallthru
      _
    // Predicated region
    $region110: #{decoder_cnn_forward.1} parent=1 // pred_check
      _
    $region111: #{decoder_cnn_forward.1} parent=1 // pred_check_branch
      %237 = sbr.rel (0) target = $region113
    $region112: #{decoder_cnn_forward.1} parent=1 // pred_region
      %238 = dma.done [#allocation16], 3072
    $region113: #{decoder_cnn_forward.1} parent=1 // pred_fallthru
      _
    // Predicated region
    $region114: #{decoder_cnn_forward.1} parent=1 // pred_check
      _
    $region115: #{decoder_cnn_forward.1} parent=1 // pred_check_branch
      %240 = sbr.rel (0) target = $region117
    $region116: #{decoder_cnn_forward.1} parent=1 // pred_region
      %241 = dma.done [#allocation19], 6144
    $region117: #{decoder_cnn_forward.1} parent=1 // pred_fallthru
      _
    // Predicated region
    $region118: #{decoder_cnn_forward.1} parent=1 // pred_check
      _
    $region119: #{decoder_cnn_forward.1} parent=1 // pred_check_branch
      %243 = sbr.rel (0) target = $region121
    $region120: #{decoder_cnn_forward.1} parent=1 // pred_region
      %244 = dma.done [#allocation19], 48
    $region121: #{decoder_cnn_forward.1} parent=1 // pred_fallthru
      _
    // Predicated region
    $region122: #{decoder_cnn_forward.1} parent=1 // pred_check
      _
    $region123: #{decoder_cnn_forward.1} parent=1 // pred_check_branch
      %246 = sbr.rel (0) target = $region125
    $region124: #{decoder_cnn_forward.1} parent=1 // pred_region
      %247 = dma.done [#allocation22], 48
    $region125: #{decoder_cnn_forward.1} parent=1 // pred_fallthru
      _
    // Predicated region
    $region126: #{decoder_cnn_forward.1} parent=1 // pred_check
      _
    $region127: #{decoder_cnn_forward.1} parent=1 // pred_check_branch
      %249 = sbr.rel (0) target = $region129
    $region128: #{decoder_cnn_forward.1} parent=1 // pred_region
      %250 = dma.done [#allocation22], 6144
    $region129: #{decoder_cnn_forward.1} parent=1 // pred_fallthru
      _
    // Predicated region
    $region130: #{decoder_cnn_forward.1} parent=1 // pred_check
      _
    $region131: #{decoder_cnn_forward.1} parent=1 // pred_check_branch
      %252 = sbr.rel (0) target = $region133
    $region132: #{decoder_cnn_forward.1} parent=1 // pred_region
      %253 = dma.done [#allocation25], 6144
    $region133: #{decoder_cnn_forward.1} parent=1 // pred_fallthru
      _
    // Predicated region
    $region134: #{decoder_cnn_forward.1} parent=1 // pred_check
      _
    $region135: #{decoder_cnn_forward.1} parent=1 // pred_check_branch
      %255 = sbr.rel (0) target = $region137
    $region136: #{decoder_cnn_forward.1} parent=1 // pred_region
      %256 = dma.done [#allocation25], 48
    $region137: #{decoder_cnn_forward.1} parent=1 // pred_fallthru
      _
    // Predicated region
    $region138: #{decoder_cnn_forward.1} parent=1 // pred_check
      _
    $region139: #{decoder_cnn_forward.1} parent=1 // pred_check_branch
      %258 = sbr.rel (0) target = $region141
    $region140: #{decoder_cnn_forward.1} parent=1 // pred_region
      %259 = dma.done [#allocation28], 2048
    $region141: #{decoder_cnn_forward.1} parent=1 // pred_fallthru
      _
    %s260 = sld [smem:[#allocation5]]
    %s261 = scalar_lea.vmem %s1, %s260
    %p263 = scmp.lt.u32.totalorder 1, 8
    %p264 = pneg %p263
    // Predicated region
    $region142: #{decoder_cnn_forward.1} parent=1 // pred_check
      _
    $region143: #{decoder_cnn_forward.1} parent=1 // pred_check_branch
      %266 = sbr.rel (%p263) target = $region145
    $region144: #{decoder_cnn_forward.1} parent=1 // pred_region
      %s282 = sand.u32 1, 7
      %p283 = scmp.eq.s32.totalorder %s282, 0
      %p284 = pneg %p283
      // Predicated region
      $region157: #{decoder_cnn_forward.1} parent=144 // pred_check
        _
      $region158: #{decoder_cnn_forward.1} parent=144 // pred_check_branch
        %286 = sbr.rel (%p283) target = $region160
      $region159: #{decoder_cnn_forward.1} parent=144 // pred_region
        %s287 = sand.u32 1, 7
        %s288 = ssub.s32 1, %s287
        %s289 = scalar_lea.vmem %s261, %s288
        %s290 = ssub.s32 1, %s287
        %s291 = scalar_lea.vmem [#allocation2], %s290
        %s292 = sshll.u32 1, %s287
        %s293 = ssub.s32 %s292, 1
        loop: start=0, step=1, limit=1
        $region161: #{decoder_cnn_forward.1} parent=159 // loop_pre_header
          _
        $region162: #{decoder_cnn_forward.1} parent=159 // loop_header
          %s295 = sphi 0, %s299
          %p296 = scmp.ge.s32.totalorder %s295, 1
          %s300 = sphi %s289, %s289
          %s301 = sphi %s291, %s291
        $region163: #{decoder_cnn_forward.1} parent=159 // loop_header_branch
          %298 = sbr.rel (%p296) target = $region167
        $region164: #{decoder_cnn_forward.1} parent=159 // loop_body
          %v302 = vld [vmem:[%s300] sm:%s293]
          %303 = vst [vmem:[%s301] sm:%s293] %v302
        $region165: #{decoder_cnn_forward.1} parent=159 // loop_footer
          %s299 = sadd.s32 1, %s295
        $region166: #{decoder_cnn_forward.1} parent=159 // loop_footer_branch
          %294 = sbr.rel target = $region162
        $region167: #{decoder_cnn_forward.1} parent=159 // loop_exit
          _
      $region160: #{decoder_cnn_forward.1} parent=144 // pred_fallthru
        _
    $region145: #{decoder_cnn_forward.1} parent=1 // pred_fallthru
      _
    // Predicated region
    $region146: #{decoder_cnn_forward.1} parent=1 // pred_check
      %p267 = pneg %p263
    $region147: #{decoder_cnn_forward.1} parent=1 // pred_check_branch
      %269 = sbr.rel (%p267) target = $region149
    $region148: #{decoder_cnn_forward.1} parent=1 // pred_region
      %s270 = sshll.u32 1, 1
      %s271 = ssub.s32 %s270, 1
      loop: start=0, step=1, limit=1
      $region150: #{decoder_cnn_forward.1} parent=148 // loop_pre_header
        _
      $region151: #{decoder_cnn_forward.1} parent=148 // loop_header
        %s273 = sphi 0, %s277
        %p274 = scmp.ge.s32.totalorder %s273, 1
        %s278 = sphi %s261, %s261
        %s279 = sphi [#allocation2], [#allocation2]
      $region152: #{decoder_cnn_forward.1} parent=148 // loop_header_branch
        %276 = sbr.rel (%p274) target = $region156
      $region153: #{decoder_cnn_forward.1} parent=148 // loop_body
        %v280 = vld [vmem:[%s278] sm:%s271]
        %281 = vst [vmem:[%s279] sm:%s271] %v280
      $region154: #{decoder_cnn_forward.1} parent=148 // loop_footer
        %s277 = sadd.s32 1, %s273
      $region155: #{decoder_cnn_forward.1} parent=148 // loop_footer_branch
        %272 = sbr.rel target = $region151
      $region156: #{decoder_cnn_forward.1} parent=148 // loop_exit
        _
    $region149: #{decoder_cnn_forward.1} parent=1 // pred_fallthru
      _
    // Predicated region
    $region168: #{decoder_cnn_forward.1} parent=1 // pred_check
      _
    $region169: #{decoder_cnn_forward.1} parent=1 // pred_check_branch
      %306 = sbr.rel (0) target = $region171
    $region170: #{decoder_cnn_forward.1} parent=1 // pred_region
      %307 = vsyncadd [#allocation3], 16
    $region171: #{decoder_cnn_forward.1} parent=1 // pred_fallthru
      _
    %s308 = sld [smem:[#allocation5 + $0x1]]
    %s309 = scalar_lea.vmem %s1, %s308
    %s310 = scalar_lea.vmem [#allocation2], 1
    %s311 = scalar_lea.sflag [#allocation3], 1
    %p313 = scmp.lt.u32.totalorder 1, 8
    %p314 = pneg %p313
    // Predicated region
    $region172: #{decoder_cnn_forward.1} parent=1 // pred_check
      _
    $region173: #{decoder_cnn_forward.1} parent=1 // pred_check_branch
      %316 = sbr.rel (%p313) target = $region175
    $region174: #{decoder_cnn_forward.1} parent=1 // pred_region
      %s332 = sand.u32 1, 7
      %p333 = scmp.eq.s32.totalorder %s332, 0
      %p334 = pneg %p333
      // Predicated region
      $region187: #{decoder_cnn_forward.1} parent=174 // pred_check
        _
      $region188: #{decoder_cnn_forward.1} parent=174 // pred_check_branch
        %336 = sbr.rel (%p333) target = $region190
      $region189: #{decoder_cnn_forward.1} parent=174 // pred_region
        %s337 = sand.u32 1, 7
        %s338 = ssub.s32 1, %s337
        %s339 = scalar_lea.vmem %s309, %s338
        %s340 = ssub.s32 1, %s337
        %s341 = scalar_lea.vmem %s310, %s340 [#allocation2]
        %s342 = sshll.u32 1, %s337
        %s343 = ssub.s32 %s342, 1
        loop: start=0, step=1, limit=1
        $region191: #{decoder_cnn_forward.1} parent=189 // loop_pre_header
          _
        $region192: #{decoder_cnn_forward.1} parent=189 // loop_header
          %s345 = sphi 0, %s349
          %p346 = scmp.ge.s32.totalorder %s345, 1
          %s350 = sphi %s339, %s339
          %s351 = sphi %s341, %s341
        $region193: #{decoder_cnn_forward.1} parent=189 // loop_header_branch
          %348 = sbr.rel (%p346) target = $region197
        $region194: #{decoder_cnn_forward.1} parent=189 // loop_body
          %v352 = vld [vmem:[%s350] sm:%s343]
          %353 = vst [vmem:[%s351] sm:%s343] %v352
        $region195: #{decoder_cnn_forward.1} parent=189 // loop_footer
          %s349 = sadd.s32 1, %s345
        $region196: #{decoder_cnn_forward.1} parent=189 // loop_footer_branch
          %344 = sbr.rel target = $region192
        $region197: #{decoder_cnn_forward.1} parent=189 // loop_exit
          _
      $region190: #{decoder_cnn_forward.1} parent=174 // pred_fallthru
        _
    $region175: #{decoder_cnn_forward.1} parent=1 // pred_fallthru
      _
    // Predicated region
    $region176: #{decoder_cnn_forward.1} parent=1 // pred_check
      %p317 = pneg %p313
    $region177: #{decoder_cnn_forward.1} parent=1 // pred_check_branch
      %319 = sbr.rel (%p317) target = $region179
    $region178: #{decoder_cnn_forward.1} parent=1 // pred_region
      %s320 = sshll.u32 1, 1
      %s321 = ssub.s32 %s320, 1
      loop: start=0, step=1, limit=1
      $region180: #{decoder_cnn_forward.1} parent=178 // loop_pre_header
        _
      $region181: #{decoder_cnn_forward.1} parent=178 // loop_header
        %s323 = sphi 0, %s327
        %p324 = scmp.ge.s32.totalorder %s323, 1
        %s328 = sphi %s309, %s309
        %s329 = sphi %s310, %s310
      $region182: #{decoder_cnn_forward.1} parent=178 // loop_header_branch
        %326 = sbr.rel (%p324) target = $region186
      $region183: #{decoder_cnn_forward.1} parent=178 // loop_body
        %v330 = vld [vmem:[%s328] sm:%s321]
        %331 = vst [vmem:[%s329] sm:%s321] %v330
      $region184: #{decoder_cnn_forward.1} parent=178 // loop_footer
        %s327 = sadd.s32 1, %s323
      $region185: #{decoder_cnn_forward.1} parent=178 // loop_footer_branch
        %322 = sbr.rel target = $region181
      $region186: #{decoder_cnn_forward.1} parent=178 // loop_exit
        _
    $region179: #{decoder_cnn_forward.1} parent=1 // pred_fallthru
      _
    // Predicated region
    $region198: #{decoder_cnn_forward.1} parent=1 // pred_check
      _
    $region199: #{decoder_cnn_forward.1} parent=1 // pred_check_branch
      %356 = sbr.rel (0) target = $region201
    $region200: #{decoder_cnn_forward.1} parent=1 // pred_region
      %357 = vsyncadd %s311, 16
    $region201: #{decoder_cnn_forward.1} parent=1 // pred_fallthru
      _
    %s358 = sld [smem:[#allocation5 + $0x2]]
    %s359 = scalar_lea.vmem %s1, %s358
    %s360 = scalar_lea.vmem [#allocation2], 2
    %s361 = scalar_lea.sflag [#allocation3], 2
    %p363 = scmp.lt.u32.totalorder 1, 8
    %p364 = pneg %p363
    // Predicated region
    $region202: #{decoder_cnn_forward.1} parent=1 // pred_check
      _
    $region203: #{decoder_cnn_forward.1} parent=1 // pred_check_branch
      %366 = sbr.rel (%p363) target = $region205
    $region204: #{decoder_cnn_forward.1} parent=1 // pred_region
      %s382 = sand.u32 1, 7
      %p383 = scmp.eq.s32.totalorder %s382, 0
      %p384 = pneg %p383
      // Predicated region
      $region217: #{decoder_cnn_forward.1} parent=204 // pred_check
        _
      $region218: #{decoder_cnn_forward.1} parent=204 // pred_check_branch
        %386 = sbr.rel (%p383) target = $region220
      $region219: #{decoder_cnn_forward.1} parent=204 // pred_region
        %s387 = sand.u32 1, 7
        %s388 = ssub.s32 1, %s387
        %s389 = scalar_lea.vmem %s359, %s388
        %s390 = ssub.s32 1, %s387
        %s391 = scalar_lea.vmem %s360, %s390 [#allocation2]
        %s392 = sshll.u32 1, %s387
        %s393 = ssub.s32 %s392, 1
        loop: start=0, step=1, limit=1
        $region221: #{decoder_cnn_forward.1} parent=219 // loop_pre_header
          _
        $region222: #{decoder_cnn_forward.1} parent=219 // loop_header
          %s395 = sphi 0, %s399
          %p396 = scmp.ge.s32.totalorder %s395, 1
          %s400 = sphi %s389, %s389
          %s401 = sphi %s391, %s391
        $region223: #{decoder_cnn_forward.1} parent=219 // loop_header_branch
          %398 = sbr.rel (%p396) target = $region227
        $region224: #{decoder_cnn_forward.1} parent=219 // loop_body
          %v402 = vld [vmem:[%s400] sm:%s393]
          %403 = vst [vmem:[%s401] sm:%s393] %v402
        $region225: #{decoder_cnn_forward.1} parent=219 // loop_footer
          %s399 = sadd.s32 1, %s395
        $region226: #{decoder_cnn_forward.1} parent=219 // loop_footer_branch
          %394 = sbr.rel target = $region222
        $region227: #{decoder_cnn_forward.1} parent=219 // loop_exit
          _
      $region220: #{decoder_cnn_forward.1} parent=204 // pred_fallthru
        _
    $region205: #{decoder_cnn_forward.1} parent=1 // pred_fallthru
      _
    // Predicated region
    $region206: #{decoder_cnn_forward.1} parent=1 // pred_check
      %p367 = pneg %p363
    $region207: #{decoder_cnn_forward.1} parent=1 // pred_check_branch
      %369 = sbr.rel (%p367) target = $region209
    $region208: #{decoder_cnn_forward.1} parent=1 // pred_region
      %s370 = sshll.u32 1, 1
      %s371 = ssub.s32 %s370, 1
      loop: start=0, step=1, limit=1
      $region210: #{decoder_cnn_forward.1} parent=208 // loop_pre_header
        _
      $region211: #{decoder_cnn_forward.1} parent=208 // loop_header
        %s373 = sphi 0, %s377
        %p374 = scmp.ge.s32.totalorder %s373, 1
        %s378 = sphi %s359, %s359
        %s379 = sphi %s360, %s360
      $region212: #{decoder_cnn_forward.1} parent=208 // loop_header_branch
        %376 = sbr.rel (%p374) target = $region216
      $region213: #{decoder_cnn_forward.1} parent=208 // loop_body
        %v380 = vld [vmem:[%s378] sm:%s371]
        %381 = vst [vmem:[%s379] sm:%s371] %v380
      $region214: #{decoder_cnn_forward.1} parent=208 // loop_footer
        %s377 = sadd.s32 1, %s373
      $region215: #{decoder_cnn_forward.1} parent=208 // loop_footer_branch
        %372 = sbr.rel target = $region211
      $region216: #{decoder_cnn_forward.1} parent=208 // loop_exit
        _
    $region209: #{decoder_cnn_forward.1} parent=1 // pred_fallthru
      _
    // Predicated region
    $region228: #{decoder_cnn_forward.1} parent=1 // pred_check
      _
    $region229: #{decoder_cnn_forward.1} parent=1 // pred_check_branch
      %406 = sbr.rel (0) target = $region231
    $region230: #{decoder_cnn_forward.1} parent=1 // pred_region
      %407 = vsyncadd %s361, 16
    $region231: #{decoder_cnn_forward.1} parent=1 // pred_fallthru
      _
    %s408 = sld [smem:[#allocation5 + $0x3]]
    %s409 = scalar_lea.vmem %s1, %s408
    %s410 = scalar_lea.vmem [#allocation2], 3
    %s411 = scalar_lea.sflag [#allocation3], 3
    %p413 = scmp.lt.u32.totalorder 1, 8
    %p414 = pneg %p413
    // Predicated region
    $region232: #{decoder_cnn_forward.1} parent=1 // pred_check
      _
    $region233: #{decoder_cnn_forward.1} parent=1 // pred_check_branch
      %416 = sbr.rel (%p413) target = $region235
    $region234: #{decoder_cnn_forward.1} parent=1 // pred_region
      %s432 = sand.u32 1, 7
      %p433 = scmp.eq.s32.totalorder %s432, 0
      %p434 = pneg %p433
      // Predicated region
      $region247: #{decoder_cnn_forward.1} parent=234 // pred_check
        _
      $region248: #{decoder_cnn_forward.1} parent=234 // pred_check_branch
        %436 = sbr.rel (%p433) target = $region250
      $region249: #{decoder_cnn_forward.1} parent=234 // pred_region
        %s437 = sand.u32 1, 7
        %s438 = ssub.s32 1, %s437
        %s439 = scalar_lea.vmem %s409, %s438
        %s440 = ssub.s32 1, %s437
        %s441 = scalar_lea.vmem %s410, %s440 [#allocation2]
        %s442 = sshll.u32 1, %s437
        %s443 = ssub.s32 %s442, 1
        loop: start=0, step=1, limit=1
        $region251: #{decoder_cnn_forward.1} parent=249 // loop_pre_header
          _
        $region252: #{decoder_cnn_forward.1} parent=249 // loop_header
          %s445 = sphi 0, %s449
          %p446 = scmp.ge.s32.totalorder %s445, 1
          %s450 = sphi %s439, %s439
          %s451 = sphi %s441, %s441
        $region253: #{decoder_cnn_forward.1} parent=249 // loop_header_branch
          %448 = sbr.rel (%p446) target = $region257
        $region254: #{decoder_cnn_forward.1} parent=249 // loop_body
          %v452 = vld [vmem:[%s450] sm:%s443]
          %453 = vst [vmem:[%s451] sm:%s443] %v452
        $region255: #{decoder_cnn_forward.1} parent=249 // loop_footer
          %s449 = sadd.s32 1, %s445
        $region256: #{decoder_cnn_forward.1} parent=249 // loop_footer_branch
          %444 = sbr.rel target = $region252
        $region257: #{decoder_cnn_forward.1} parent=249 // loop_exit
          _
      $region250: #{decoder_cnn_forward.1} parent=234 // pred_fallthru
        _
    $region235: #{decoder_cnn_forward.1} parent=1 // pred_fallthru
      _
    // Predicated region
    $region236: #{decoder_cnn_forward.1} parent=1 // pred_check
      %p417 = pneg %p413
    $region237: #{decoder_cnn_forward.1} parent=1 // pred_check_branch
      %419 = sbr.rel (%p417) target = $region239
    $region238: #{decoder_cnn_forward.1} parent=1 // pred_region
      %s420 = sshll.u32 1, 1
      %s421 = ssub.s32 %s420, 1
      loop: start=0, step=1, limit=1
      $region240: #{decoder_cnn_forward.1} parent=238 // loop_pre_header
        _
      $region241: #{decoder_cnn_forward.1} parent=238 // loop_header
        %s423 = sphi 0, %s427
        %p424 = scmp.ge.s32.totalorder %s423, 1
        %s428 = sphi %s409, %s409
        %s429 = sphi %s410, %s410
      $region242: #{decoder_cnn_forward.1} parent=238 // loop_header_branch
        %426 = sbr.rel (%p424) target = $region246
      $region243: #{decoder_cnn_forward.1} parent=238 // loop_body
        %v430 = vld [vmem:[%s428] sm:%s421]
        %431 = vst [vmem:[%s429] sm:%s421] %v430
      $region244: #{decoder_cnn_forward.1} parent=238 // loop_footer
        %s427 = sadd.s32 1, %s423
      $region245: #{decoder_cnn_forward.1} parent=238 // loop_footer_branch
        %422 = sbr.rel target = $region241
      $region246: #{decoder_cnn_forward.1} parent=238 // loop_exit
        _
    $region239: #{decoder_cnn_forward.1} parent=1 // pred_fallthru
      _
    // Predicated region
    $region258: #{decoder_cnn_forward.1} parent=1 // pred_check
      _
    $region259: #{decoder_cnn_forward.1} parent=1 // pred_check_branch
      %456 = sbr.rel (0) target = $region261
    $region260: #{decoder_cnn_forward.1} parent=1 // pred_region
      %457 = vsyncadd %s411, 16
    $region261: #{decoder_cnn_forward.1} parent=1 // pred_fallthru
      _
    %s458 = sld [smem:[#allocation5 + $0x4]]
    %s459 = scalar_lea.vmem %s1, %s458
    %s460 = scalar_lea.vmem [#allocation2], 4
    %s461 = scalar_lea.sflag [#allocation3], 4
    %p463 = scmp.lt.u32.totalorder 1, 8
    %p464 = pneg %p463
    // Predicated region
    $region262: #{decoder_cnn_forward.1} parent=1 // pred_check
      _
    $region263: #{decoder_cnn_forward.1} parent=1 // pred_check_branch
      %466 = sbr.rel (%p463) target = $region265
    $region264: #{decoder_cnn_forward.1} parent=1 // pred_region
      %s482 = sand.u32 1, 7
      %p483 = scmp.eq.s32.totalorder %s482, 0
      %p484 = pneg %p483
      // Predicated region
      $region277: #{decoder_cnn_forward.1} parent=264 // pred_check
        _
      $region278: #{decoder_cnn_forward.1} parent=264 // pred_check_branch
        %486 = sbr.rel (%p483) target = $region280
      $region279: #{decoder_cnn_forward.1} parent=264 // pred_region
        %s487 = sand.u32 1, 7
        %s488 = ssub.s32 1, %s487
        %s489 = scalar_lea.vmem %s459, %s488
        %s490 = ssub.s32 1, %s487
        %s491 = scalar_lea.vmem %s460, %s490 [#allocation2]
        %s492 = sshll.u32 1, %s487
        %s493 = ssub.s32 %s492, 1
        loop: start=0, step=1, limit=1
        $region281: #{decoder_cnn_forward.1} parent=279 // loop_pre_header
          _
        $region282: #{decoder_cnn_forward.1} parent=279 // loop_header
          %s495 = sphi 0, %s499
          %p496 = scmp.ge.s32.totalorder %s495, 1
          %s500 = sphi %s489, %s489
          %s501 = sphi %s491, %s491
        $region283: #{decoder_cnn_forward.1} parent=279 // loop_header_branch
          %498 = sbr.rel (%p496) target = $region287
        $region284: #{decoder_cnn_forward.1} parent=279 // loop_body
          %v502 = vld [vmem:[%s500] sm:%s493]
          %503 = vst [vmem:[%s501] sm:%s493] %v502
        $region285: #{decoder_cnn_forward.1} parent=279 // loop_footer
          %s499 = sadd.s32 1, %s495
        $region286: #{decoder_cnn_forward.1} parent=279 // loop_footer_branch
          %494 = sbr.rel target = $region282
        $region287: #{decoder_cnn_forward.1} parent=279 // loop_exit
          _
      $region280: #{decoder_cnn_forward.1} parent=264 // pred_fallthru
        _
    $region265: #{decoder_cnn_forward.1} parent=1 // pred_fallthru
      _
    // Predicated region
    $region266: #{decoder_cnn_forward.1} parent=1 // pred_check
      %p467 = pneg %p463
    $region267: #{decoder_cnn_forward.1} parent=1 // pred_check_branch
      %469 = sbr.rel (%p467) target = $region269
    $region268: #{decoder_cnn_forward.1} parent=1 // pred_region
      %s470 = sshll.u32 1, 1
      %s471 = ssub.s32 %s470, 1
      loop: start=0, step=1, limit=1
      $region270: #{decoder_cnn_forward.1} parent=268 // loop_pre_header
        _
      $region271: #{decoder_cnn_forward.1} parent=268 // loop_header
        %s473 = sphi 0, %s477
        %p474 = scmp.ge.s32.totalorder %s473, 1
        %s478 = sphi %s459, %s459
        %s479 = sphi %s460, %s460
      $region272: #{decoder_cnn_forward.1} parent=268 // loop_header_branch
        %476 = sbr.rel (%p474) target = $region276
      $region273: #{decoder_cnn_forward.1} parent=268 // loop_body
        %v480 = vld [vmem:[%s478] sm:%s471]
        %481 = vst [vmem:[%s479] sm:%s471] %v480
      $region274: #{decoder_cnn_forward.1} parent=268 // loop_footer
        %s477 = sadd.s32 1, %s473
      $region275: #{decoder_cnn_forward.1} parent=268 // loop_footer_branch
        %472 = sbr.rel target = $region271
      $region276: #{decoder_cnn_forward.1} parent=268 // loop_exit
        _
    $region269: #{decoder_cnn_forward.1} parent=1 // pred_fallthru
      _
    // Predicated region
    $region288: #{decoder_cnn_forward.1} parent=1 // pred_check
      _
    $region289: #{decoder_cnn_forward.1} parent=1 // pred_check_branch
      %506 = sbr.rel (0) target = $region291
    $region290: #{decoder_cnn_forward.1} parent=1 // pred_region
      %507 = vsyncadd %s461, 16
    $region291: #{decoder_cnn_forward.1} parent=1 // pred_fallthru
      _
    %s508 = sld [smem:[#allocation5 + $0x5]]
    %s509 = scalar_lea.vmem %s1, %s508
    %s510 = scalar_lea.vmem [#allocation2], 5
    %s511 = scalar_lea.sflag [#allocation3], 5
    %p513 = scmp.lt.u32.totalorder 1, 8
    %p514 = pneg %p513
    // Predicated region
    $region292: #{decoder_cnn_forward.1} parent=1 // pred_check
      _
    $region293: #{decoder_cnn_forward.1} parent=1 // pred_check_branch
      %516 = sbr.rel (%p513) target = $region295
    $region294: #{decoder_cnn_forward.1} parent=1 // pred_region
      %s532 = sand.u32 1, 7
      %p533 = scmp.eq.s32.totalorder %s532, 0
      %p534 = pneg %p533
      // Predicated region
      $region307: #{decoder_cnn_forward.1} parent=294 // pred_check
        _
      $region308: #{decoder_cnn_forward.1} parent=294 // pred_check_branch
        %536 = sbr.rel (%p533) target = $region310
      $region309: #{decoder_cnn_forward.1} parent=294 // pred_region
        %s537 = sand.u32 1, 7
        %s538 = ssub.s32 1, %s537
        %s539 = scalar_lea.vmem %s509, %s538
        %s540 = ssub.s32 1, %s537
        %s541 = scalar_lea.vmem %s510, %s540 [#allocation2]
        %s542 = sshll.u32 1, %s537
        %s543 = ssub.s32 %s542, 1
        loop: start=0, step=1, limit=1
        $region311: #{decoder_cnn_forward.1} parent=309 // loop_pre_header
          _
        $region312: #{decoder_cnn_forward.1} parent=309 // loop_header
          %s545 = sphi 0, %s549
          %p546 = scmp.ge.s32.totalorder %s545, 1
          %s550 = sphi %s539, %s539
          %s551 = sphi %s541, %s541
        $region313: #{decoder_cnn_forward.1} parent=309 // loop_header_branch
          %548 = sbr.rel (%p546) target = $region317
        $region314: #{decoder_cnn_forward.1} parent=309 // loop_body
          %v552 = vld [vmem:[%s550] sm:%s543]
          %553 = vst [vmem:[%s551] sm:%s543] %v552
        $region315: #{decoder_cnn_forward.1} parent=309 // loop_footer
          %s549 = sadd.s32 1, %s545
        $region316: #{decoder_cnn_forward.1} parent=309 // loop_footer_branch
          %544 = sbr.rel target = $region312
        $region317: #{decoder_cnn_forward.1} parent=309 // loop_exit
          _
      $region310: #{decoder_cnn_forward.1} parent=294 // pred_fallthru
        _
    $region295: #{decoder_cnn_forward.1} parent=1 // pred_fallthru
      _
    // Predicated region
    $region296: #{decoder_cnn_forward.1} parent=1 // pred_check
      %p517 = pneg %p513
    $region297: #{decoder_cnn_forward.1} parent=1 // pred_check_branch
      %519 = sbr.rel (%p517) target = $region299
    $region298: #{decoder_cnn_forward.1} parent=1 // pred_region
      %s520 = sshll.u32 1, 1
      %s521 = ssub.s32 %s520, 1
      loop: start=0, step=1, limit=1
      $region300: #{decoder_cnn_forward.1} parent=298 // loop_pre_header
        _
      $region301: #{decoder_cnn_forward.1} parent=298 // loop_header
        %s523 = sphi 0, %s527
        %p524 = scmp.ge.s32.totalorder %s523, 1
        %s528 = sphi %s509, %s509
        %s529 = sphi %s510, %s510
      $region302: #{decoder_cnn_forward.1} parent=298 // loop_header_branch
        %526 = sbr.rel (%p524) target = $region306
      $region303: #{decoder_cnn_forward.1} parent=298 // loop_body
        %v530 = vld [vmem:[%s528] sm:%s521]
        %531 = vst [vmem:[%s529] sm:%s521] %v530
      $region304: #{decoder_cnn_forward.1} parent=298 // loop_footer
        %s527 = sadd.s32 1, %s523
      $region305: #{decoder_cnn_forward.1} parent=298 // loop_footer_branch
        %522 = sbr.rel target = $region301
      $region306: #{decoder_cnn_forward.1} parent=298 // loop_exit
        _
    $region299: #{decoder_cnn_forward.1} parent=1 // pred_fallthru
      _
    // Predicated region
    $region318: #{decoder_cnn_forward.1} parent=1 // pred_check
      _
    $region319: #{decoder_cnn_forward.1} parent=1 // pred_check_branch
      %556 = sbr.rel (0) target = $region321
    $region320: #{decoder_cnn_forward.1} parent=1 // pred_region
      %557 = vsyncadd %s511, 16
    $region321: #{decoder_cnn_forward.1} parent=1 // pred_fallthru
      _
    %s558 = sld [smem:[#allocation5 + $0x6]]
    %s559 = scalar_lea.vmem %s1, %s558
    %s560 = scalar_lea.vmem [#allocation2], 6
    %s561 = scalar_lea.sflag [#allocation3], 6
    %p563 = scmp.lt.u32.totalorder 1, 8
    %p564 = pneg %p563
    // Predicated region
    $region322: #{decoder_cnn_forward.1} parent=1 // pred_check
      _
    $region323: #{decoder_cnn_forward.1} parent=1 // pred_check_branch
      %566 = sbr.rel (%p563) target = $region325
    $region324: #{decoder_cnn_forward.1} parent=1 // pred_region
      %s582 = sand.u32 1, 7
      %p583 = scmp.eq.s32.totalorder %s582, 0
      %p584 = pneg %p583
      // Predicated region
      $region337: #{decoder_cnn_forward.1} parent=324 // pred_check
        _
      $region338: #{decoder_cnn_forward.1} parent=324 // pred_check_branch
        %586 = sbr.rel (%p583) target = $region340
      $region339: #{decoder_cnn_forward.1} parent=324 // pred_region
        %s587 = sand.u32 1, 7
        %s588 = ssub.s32 1, %s587
        %s589 = scalar_lea.vmem %s559, %s588
        %s590 = ssub.s32 1, %s587
        %s591 = scalar_lea.vmem %s560, %s590 [#allocation2]
        %s592 = sshll.u32 1, %s587
        %s593 = ssub.s32 %s592, 1
        loop: start=0, step=1, limit=1
        $region341: #{decoder_cnn_forward.1} parent=339 // loop_pre_header
          _
        $region342: #{decoder_cnn_forward.1} parent=339 // loop_header
          %s595 = sphi 0, %s599
          %p596 = scmp.ge.s32.totalorder %s595, 1
          %s600 = sphi %s589, %s589
          %s601 = sphi %s591, %s591
        $region343: #{decoder_cnn_forward.1} parent=339 // loop_header_branch
          %598 = sbr.rel (%p596) target = $region347
        $region344: #{decoder_cnn_forward.1} parent=339 // loop_body
          %v602 = vld [vmem:[%s600] sm:%s593]
          %603 = vst [vmem:[%s601] sm:%s593] %v602
        $region345: #{decoder_cnn_forward.1} parent=339 // loop_footer
          %s599 = sadd.s32 1, %s595
        $region346: #{decoder_cnn_forward.1} parent=339 // loop_footer_branch
          %594 = sbr.rel target = $region342
        $region347: #{decoder_cnn_forward.1} parent=339 // loop_exit
          _
      $region340: #{decoder_cnn_forward.1} parent=324 // pred_fallthru
        _
    $region325: #{decoder_cnn_forward.1} parent=1 // pred_fallthru
      _
    // Predicated region
    $region326: #{decoder_cnn_forward.1} parent=1 // pred_check
      %p567 = pneg %p563
    $region327: #{decoder_cnn_forward.1} parent=1 // pred_check_branch
      %569 = sbr.rel (%p567) target = $region329
    $region328: #{decoder_cnn_forward.1} parent=1 // pred_region
      %s570 = sshll.u32 1, 1
      %s571 = ssub.s32 %s570, 1
      loop: start=0, step=1, limit=1
      $region330: #{decoder_cnn_forward.1} parent=328 // loop_pre_header
        _
      $region331: #{decoder_cnn_forward.1} parent=328 // loop_header
        %s573 = sphi 0, %s577
        %p574 = scmp.ge.s32.totalorder %s573, 1
        %s578 = sphi %s559, %s559
        %s579 = sphi %s560, %s560
      $region332: #{decoder_cnn_forward.1} parent=328 // loop_header_branch
        %576 = sbr.rel (%p574) target = $region336
      $region333: #{decoder_cnn_forward.1} parent=328 // loop_body
        %v580 = vld [vmem:[%s578] sm:%s571]
        %581 = vst [vmem:[%s579] sm:%s571] %v580
      $region334: #{decoder_cnn_forward.1} parent=328 // loop_footer
        %s577 = sadd.s32 1, %s573
      $region335: #{decoder_cnn_forward.1} parent=328 // loop_footer_branch
        %572 = sbr.rel target = $region331
      $region336: #{decoder_cnn_forward.1} parent=328 // loop_exit
        _
    $region329: #{decoder_cnn_forward.1} parent=1 // pred_fallthru
      _
    // Predicated region
    $region348: #{decoder_cnn_forward.1} parent=1 // pred_check
      _
    $region349: #{decoder_cnn_forward.1} parent=1 // pred_check_branch
      %606 = sbr.rel (0) target = $region351
    $region350: #{decoder_cnn_forward.1} parent=1 // pred_region
      %607 = vsyncadd %s561, 16
    $region351: #{decoder_cnn_forward.1} parent=1 // pred_fallthru
      _
    %s608 = sld [smem:[#allocation5 + $0x7]]
    %s609 = scalar_lea.vmem %s1, %s608
    %s610 = scalar_lea.vmem [#allocation2], 7
    %s611 = scalar_lea.sflag [#allocation3], 7
    %p613 = scmp.lt.u32.totalorder 1, 8
    %p614 = pneg %p613
    // Predicated region
    $region352: #{decoder_cnn_forward.1} parent=1 // pred_check
      _
    $region353: #{decoder_cnn_forward.1} parent=1 // pred_check_branch
      %616 = sbr.rel (%p613) target = $region355
    $region354: #{decoder_cnn_forward.1} parent=1 // pred_region
      %s632 = sand.u32 1, 7
      %p633 = scmp.eq.s32.totalorder %s632, 0
      %p634 = pneg %p633
      // Predicated region
      $region367: #{decoder_cnn_forward.1} parent=354 // pred_check
        _
      $region368: #{decoder_cnn_forward.1} parent=354 // pred_check_branch
        %636 = sbr.rel (%p633) target = $region370
      $region369: #{decoder_cnn_forward.1} parent=354 // pred_region
        %s637 = sand.u32 1, 7
        %s638 = ssub.s32 1, %s637
        %s639 = scalar_lea.vmem %s609, %s638
        %s640 = ssub.s32 1, %s637
        %s641 = scalar_lea.vmem %s610, %s640 [#allocation2]
        %s642 = sshll.u32 1, %s637
        %s643 = ssub.s32 %s642, 1
        loop: start=0, step=1, limit=1
        $region371: #{decoder_cnn_forward.1} parent=369 // loop_pre_header
          _
        $region372: #{decoder_cnn_forward.1} parent=369 // loop_header
          %s645 = sphi 0, %s649
          %p646 = scmp.ge.s32.totalorder %s645, 1
          %s650 = sphi %s639, %s639
          %s651 = sphi %s641, %s641
        $region373: #{decoder_cnn_forward.1} parent=369 // loop_header_branch
          %648 = sbr.rel (%p646) target = $region377
        $region374: #{decoder_cnn_forward.1} parent=369 // loop_body
          %v652 = vld [vmem:[%s650] sm:%s643]
          %653 = vst [vmem:[%s651] sm:%s643] %v652
        $region375: #{decoder_cnn_forward.1} parent=369 // loop_footer
          %s649 = sadd.s32 1, %s645
        $region376: #{decoder_cnn_forward.1} parent=369 // loop_footer_branch
          %644 = sbr.rel target = $region372
        $region377: #{decoder_cnn_forward.1} parent=369 // loop_exit
          _
      $region370: #{decoder_cnn_forward.1} parent=354 // pred_fallthru
        _
    $region355: #{decoder_cnn_forward.1} parent=1 // pred_fallthru
      _
    // Predicated region
    $region356: #{decoder_cnn_forward.1} parent=1 // pred_check
      %p617 = pneg %p613
    $region357: #{decoder_cnn_forward.1} parent=1 // pred_check_branch
      %619 = sbr.rel (%p617) target = $region359
    $region358: #{decoder_cnn_forward.1} parent=1 // pred_region
      %s620 = sshll.u32 1, 1
      %s621 = ssub.s32 %s620, 1
      loop: start=0, step=1, limit=1
      $region360: #{decoder_cnn_forward.1} parent=358 // loop_pre_header
        _
      $region361: #{decoder_cnn_forward.1} parent=358 // loop_header
        %s623 = sphi 0, %s627
        %p624 = scmp.ge.s32.totalorder %s623, 1
        %s628 = sphi %s609, %s609
        %s629 = sphi %s610, %s610
      $region362: #{decoder_cnn_forward.1} parent=358 // loop_header_branch
        %626 = sbr.rel (%p624) target = $region366
      $region363: #{decoder_cnn_forward.1} parent=358 // loop_body
        %v630 = vld [vmem:[%s628] sm:%s621]
        %631 = vst [vmem:[%s629] sm:%s621] %v630
      $region364: #{decoder_cnn_forward.1} parent=358 // loop_footer
        %s627 = sadd.s32 1, %s623
      $region365: #{decoder_cnn_forward.1} parent=358 // loop_footer_branch
        %622 = sbr.rel target = $region361
      $region366: #{decoder_cnn_forward.1} parent=358 // loop_exit
        _
    $region359: #{decoder_cnn_forward.1} parent=1 // pred_fallthru
      _
    // Predicated region
    $region378: #{decoder_cnn_forward.1} parent=1 // pred_check
      _
    $region379: #{decoder_cnn_forward.1} parent=1 // pred_check_branch
      %656 = sbr.rel (0) target = $region381
    $region380: #{decoder_cnn_forward.1} parent=1 // pred_region
      %657 = vsyncadd %s611, 16
    $region381: #{decoder_cnn_forward.1} parent=1 // pred_fallthru
      _
    %v658 = vld [vmem:[#allocation6] sm:$0xff]
    %v659 = vld [vmem:[#allocation6 + $0x8] sm:$0xff]
    %v660 = vld [vmem:[#allocation6 + $0x10] sm:$0xff]
    %v661 = vld [vmem:[#allocation6 + $0x18] sm:$0xff]
    %v662 = vld [vmem:[#allocation6 + $0x20] sm:$0xff]
    %v663 = vld [vmem:[#allocation6 + $0x28] sm:$0xff]
    %v664 = vld [vmem:[#allocation6 + $0x30] sm:$0xff]
    %v665 = vld [vmem:[#allocation6 + $0x38] sm:$0xff]
    %v666 = vld [vmem:[#allocation6 + $0x40] sm:$0xff]
    %v667 = vld [vmem:[#allocation6 + $0x48] sm:$0xff]
    %v668 = vld [vmem:[#allocation6 + $0x50] sm:$0xff]
    %v669 = vld [vmem:[#allocation6 + $0x58] sm:$0xff]
    %v670 = vld [vmem:[#allocation6 + $0x60] sm:$0xff]
    %v671 = vld [vmem:[#allocation6 + $0x68] sm:$0xff]
    %v672 = vld [vmem:[#allocation6 + $0x70] sm:$0xff]
    %v673 = vld [vmem:[#allocation6 + $0x78] sm:$0xff]
    %v674 = vld [vmem:[%s8] sm:$0xff]
    %v675 = vld [vmem:[%s8 + $0x8] sm:$0xff]
    %v676 = vld [vmem:[%s8 + $0x10] sm:$0xff]
    %v677 = vld [vmem:[%s8 + $0x18] sm:$0xff]
    %v678 = vld [vmem:[%s8 + $0x20] sm:$0xff]
    %v679 = vld [vmem:[%s8 + $0x28] sm:$0xff]
    %v680 = vld [vmem:[%s8 + $0x30] sm:$0xff]
    %v681 = vld [vmem:[%s8 + $0x38] sm:$0xff]
    %v682 = vld [vmem:[%s8 + $0x40] sm:$0xff]
    %v683 = vld [vmem:[%s8 + $0x48] sm:$0xff]
    %v684 = vld [vmem:[%s8 + $0x50] sm:$0xff]
    %v685 = vld [vmem:[%s8 + $0x58] sm:$0xff]
    %v686 = vld [vmem:[%s8 + $0x60] sm:$0xff]
    %v687 = vld [vmem:[%s8 + $0x68] sm:$0xff]
    %v688 = vld [vmem:[%s8 + $0x70] sm:$0xff]
    %v689 = vld [vmem:[%s8 + $0x78] sm:$0xff]
    %v690 = vld [vmem:[%s8 + $0x80] sm:$0xff]
    %v691 = vld [vmem:[%s8 + $0x88] sm:$0xff]
    %v692 = vld [vmem:[%s8 + $0x90] sm:$0xff]
    %v693 = vld [vmem:[%s8 + $0x98] sm:$0xff]
    %v694 = vld [vmem:[%s8 + $0xa0] sm:$0xff]
    %v695 = vld [vmem:[%s8 + $0xa8] sm:$0xff]
    %v696 = vld [vmem:[%s8 + $0xb0] sm:$0xff]
    %v697 = vld [vmem:[%s8 + $0xb8] sm:$0xff]
    %v698 = vld [vmem:[%s8 + $0xc0] sm:$0xff]
    %v699 = vld [vmem:[%s8 + $0xc8] sm:$0xff]
    %v700 = vld [vmem:[%s8 + $0xd0] sm:$0xff]
    %v701 = vld [vmem:[%s8 + $0xd8] sm:$0xff]
    %v702 = vld [vmem:[%s8 + $0xe0] sm:$0xff]
    %v703 = vld [vmem:[%s8 + $0xe8] sm:$0xff]
    %v704 = vld [vmem:[%s8 + $0xf0] sm:$0xff]
    %v705 = vld [vmem:[%s8 + $0xf8] sm:$0xff]
    %v706 = vld [vmem:[#allocation12] sm:$0x3]
    %v708 = vlaneseq
    %v709 = vshrl.u32 %v708, 7
    %v710 = vsub.s32 0, %v709
    %v711 = vrot.slane %v706, %v710
    %v712 = vlaneseq
    %v713 = vshrl.u32 %v712, 7
    %v714 = vsub.s32 1, %v713
    %v715 = vrot.slane %v706, %v714
    %718 = vmatprep.subr.mxu0 %v705
    %719 = vmatpush1.msra.mxu0 %v704
    %720 = vmatprep.subr.mxu0 %v703
    %721 = vmatpush1.msra.mxu0 %v702
    %722 = vmatprep.subr.mxu0 %v701
    %723 = vmatpush1.msra.mxu0 %v700
    %724 = vmatprep.subr.mxu0 %v699
    %725 = vmatpush1.msra.mxu0 %v698
    %726 = vmatprep.subr.mxu0 %v697
    %727 = vmatpush1.msra.mxu0 %v696
    %728 = vmatprep.subr.mxu0 %v695
    %729 = vmatpush1.msra.mxu0 %v694
    %730 = vmatprep.subr.mxu0 %v693
    %731 = vmatpush1.msra.mxu0 %v692
    %732 = vmatprep.subr.mxu0 %v691
    %733 = vmatpush1.msra.mxu0 %v690
    %734 = vmatprep.subr.mxu0 %v689
    %735 = vmatpush1.msra.mxu0 %v688
    %736 = vmatprep.subr.mxu0 %v687
    %737 = vmatpush1.msra.mxu0 %v686
    %738 = vmatprep.subr.mxu0 %v685
    %739 = vmatpush1.msra.mxu0 %v684
    %740 = vmatprep.subr.mxu0 %v683
    %741 = vmatpush1.msra.mxu0 %v682
    %742 = vmatprep.subr.mxu0 %v681
    %743 = vmatpush1.msra.mxu0 %v680
    %744 = vmatprep.subr.mxu0 %v679
    %745 = vmatpush1.msra.mxu0 %v678
    %746 = vmatprep.subr.mxu0 %v677
    %747 = vmatpush1.msra.mxu0 %v676
    %748 = vmatprep.subr.mxu0 %v675
    %749 = vmatpush1.msra.mxu0 %v674
    %750 = vmatprep.subr.mxu0 0.0
    %751 = vmatpush2.msra.mxu0 0.0
    %752 = vmatprep.subr.mxu0 0.0
    %753 = vmatpush2.msra.mxu0 0.0
    %754 = vmatprep.subr.mxu0 0.0
    %755 = vmatpush2.msra.mxu0 0.0
    %756 = vmatprep.subr.mxu0 0.0
    %757 = vmatpush2.msra.mxu0 0.0
    %758 = vmatprep.subr.mxu0 0.0
    %759 = vmatpush2.msra.mxu0 0.0
    %760 = vmatprep.subr.mxu0 0.0
    %761 = vmatpush2.msra.mxu0 0.0
    %762 = vmatprep.subr.mxu0 0.0
    %763 = vmatpush2.msra.mxu0 0.0
    %764 = vmatprep.subr.mxu0 0.0
    %765 = vmatpush2.msra.mxu0 0.0
    %766 = vmatprep.subr.mxu0 0.0
    %767 = vmatpush2.msra.mxu0 0.0
    %768 = vmatprep.subr.mxu0 0.0
    %769 = vmatpush2.msra.mxu0 0.0
    %770 = vmatprep.subr.mxu0 0.0
    %771 = vmatpush2.msra.mxu0 0.0
    %772 = vmatprep.subr.mxu0 0.0
    %773 = vmatpush2.msra.mxu0 0.0
    %774 = vmatprep.subr.mxu0 0.0
    %775 = vmatpush2.msra.mxu0 0.0
    %776 = vmatprep.subr.mxu0 0.0
    %777 = vmatpush2.msra.mxu0 0.0
    %778 = vmatprep.subr.mxu0 0.0
    %779 = vmatpush2.msra.mxu0 0.0
    %780 = vmatprep.subr.mxu0 0.0
    %781 = vmatpush2.msra.mxu0 0.0
    %782 = vmatprep.mubr.f32.mxu0 0.0
    %783 = vmatmul.mubr.f32.gmra.mxu0 %v658
    %v784 = vpop.f32.mrf.mxu0
    %v785 = vadd.f32 %v711, %v784
    %v786 = vpop.f32.mrf.mxu0
    %v787 = vadd.f32 %v715, %v786
    %788 = vmatprep.mubr.f32.mxu0 0.0
    %789 = vmatmul.mubr.f32.gmra.mxu0 %v659
    %v790 = vpop.f32.mrf.mxu0
    %v791 = vadd.f32 %v711, %v790
    %v792 = vpop.f32.mrf.mxu0
    %v793 = vadd.f32 %v715, %v792
    %794 = vmatprep.mubr.f32.mxu0 0.0
    %795 = vmatmul.mubr.f32.gmra.mxu0 %v660
    %v796 = vpop.f32.mrf.mxu0
    %v797 = vadd.f32 %v711, %v796
    %v798 = vpop.f32.mrf.mxu0
    %v799 = vadd.f32 %v715, %v798
    %800 = vmatprep.mubr.f32.mxu0 0.0
    %801 = vmatmul.mubr.f32.gmra.mxu0 %v661
    %v802 = vpop.f32.mrf.mxu0
    %v803 = vadd.f32 %v711, %v802
    %v804 = vpop.f32.mrf.mxu0
    %v805 = vadd.f32 %v715, %v804
    %806 = vmatprep.mubr.f32.mxu0 0.0
    %807 = vmatmul.mubr.f32.gmra.mxu0 %v662
    %v808 = vpop.f32.mrf.mxu0
    %v809 = vadd.f32 %v711, %v808
    %v810 = vpop.f32.mrf.mxu0
    %v811 = vadd.f32 %v715, %v810
    %812 = vmatprep.mubr.f32.mxu0 0.0
    %813 = vmatmul.mubr.f32.gmra.mxu0 %v663
    %v814 = vpop.f32.mrf.mxu0
    %v815 = vadd.f32 %v711, %v814
    %v816 = vpop.f32.mrf.mxu0
    %v817 = vadd.f32 %v715, %v816
    %818 = vmatprep.mubr.f32.mxu0 0.0
    %819 = vmatmul.mubr.f32.gmra.mxu0 %v664
    %v820 = vpop.f32.mrf.mxu0
    %v821 = vadd.f32 %v711, %v820
    %v822 = vpop.f32.mrf.mxu0
    %v823 = vadd.f32 %v715, %v822
    %824 = vmatprep.mubr.f32.mxu0 0.0
    %825 = vmatmul.mubr.f32.gmra.mxu0 %v665
    %v826 = vpop.f32.mrf.mxu0
    %v827 = vadd.f32 %v711, %v826
    %v828 = vpop.f32.mrf.mxu0
    %v829 = vadd.f32 %v715, %v828
    %830 = vmatprep.mubr.f32.mxu0 0.0
    %831 = vmatmul.mubr.f32.gmra.mxu0 %v666
    %v832 = vpop.f32.mrf.mxu0
    %v833 = vadd.f32 %v711, %v832
    %v834 = vpop.f32.mrf.mxu0
    %v835 = vadd.f32 %v715, %v834
    %836 = vmatprep.mubr.f32.mxu0 0.0
    %837 = vmatmul.mubr.f32.gmra.mxu0 %v667
    %v838 = vpop.f32.mrf.mxu0
    %v839 = vadd.f32 %v711, %v838
    %v840 = vpop.f32.mrf.mxu0
    %v841 = vadd.f32 %v715, %v840
    %842 = vmatprep.mubr.f32.mxu0 0.0
    %843 = vmatmul.mubr.f32.gmra.mxu0 %v668
    %v844 = vpop.f32.mrf.mxu0
    %v845 = vadd.f32 %v711, %v844
    %v846 = vpop.f32.mrf.mxu0
    %v847 = vadd.f32 %v715, %v846
    %848 = vmatprep.mubr.f32.mxu0 0.0
    %849 = vmatmul.mubr.f32.gmra.mxu0 %v669
    %v850 = vpop.f32.mrf.mxu0
    %v851 = vadd.f32 %v711, %v850
    %v852 = vpop.f32.mrf.mxu0
    %v853 = vadd.f32 %v715, %v852
    %854 = vmatprep.mubr.f32.mxu0 0.0
    %855 = vmatmul.mubr.f32.gmra.mxu0 %v670
    %v856 = vpop.f32.mrf.mxu0
    %v857 = vadd.f32 %v711, %v856
    %v858 = vpop.f32.mrf.mxu0
    %v859 = vadd.f32 %v715, %v858
    %860 = vmatprep.mubr.f32.mxu0 0.0
    %861 = vmatmul.mubr.f32.gmra.mxu0 %v671
    %v862 = vpop.f32.mrf.mxu0
    %v863 = vadd.f32 %v711, %v862
    %v864 = vpop.f32.mrf.mxu0
    %v865 = vadd.f32 %v715, %v864
    %866 = vmatprep.mubr.f32.mxu0 0.0
    %867 = vmatmul.mubr.f32.gmra.mxu0 %v672
    %v868 = vpop.f32.mrf.mxu0
    %v869 = vadd.f32 %v711, %v868
    %v870 = vpop.f32.mrf.mxu0
    %v871 = vadd.f32 %v715, %v870
    %872 = vmatprep.mubr.f32.mxu0 0.0
    %873 = vmatmul.mubr.f32.gmra.mxu0 %v673
    %v874 = vpop.f32.mrf.mxu0
    %v875 = vadd.f32 %v711, %v874
    %v876 = vpop.f32.mrf.mxu0
    %v877 = vadd.f32 %v715, %v876
    %878 = vdwg.mxu0
    %s879 = smul.u32 1, 1
    %s880 = sshll.u32 %s879, 4
    %881 = dma.done [#allocation3], %s880
    %s882 = sshll.u32 %s879, 4
    %883 = dma.done %s311, %s882
    %s884 = sshll.u32 %s879, 4
    %885 = dma.done %s361, %s884
    %s886 = sshll.u32 %s879, 4
    %887 = dma.done %s411, %s886
    %s888 = sshll.u32 %s879, 4
    %889 = dma.done %s461, %s888
    %s890 = sshll.u32 %s879, 4
    %891 = dma.done %s511, %s890
    %s892 = sshll.u32 %s879, 4
    %893 = dma.done %s561, %s892
    %s894 = sshll.u32 %s879, 4
    %895 = dma.done %s611, %s894
    %v896 = vld [vmem:[#allocation2] sm:$0xff]
    %v897 = vld [vmem:[#allocation9] sm:$0xff]
    %v898 = vld [vmem:[#allocation9 + $0x8] sm:$0xff]
    %v899 = vld [vmem:[#allocation9 + $0x10] sm:$0xff]
    %v900 = vld [vmem:[#allocation9 + $0x18] sm:$0xff]
    %v901 = vld [vmem:[#allocation9 + $0x20] sm:$0xff]
    %v902 = vld [vmem:[#allocation9 + $0x28] sm:$0xff]
    %v903 = vld [vmem:[#allocation9 + $0x30] sm:$0xff]
    %v904 = vld [vmem:[#allocation9 + $0x38] sm:$0xff]
    %v905 = vld [vmem:[%s5] sm:$0x1]
    %v907 = vlaneseq
    %v908 = vshrl.u32 %v907, 7
    %v909 = vsub.s32 0, %v908
    %v910 = vrot.slane %v905, %v909
    %vm912 = vcmask 523264
    %v914 = vsel %vm912, %v896, 0
    %916 = vmatprep.subr.mxu0 0.0
    %917 = vmatpush1.msra.mxu0 0.0
    %918 = vmatprep.subr.mxu0 0.0
    %919 = vmatpush1.msra.mxu0 0.0
    %920 = vmatprep.subr.mxu0 0.0
    %921 = vmatpush1.msra.mxu0 0.0
    %922 = vmatprep.subr.mxu0 0.0
    %923 = vmatpush1.msra.mxu0 0.0
    %924 = vmatprep.subr.mxu0 0.0
    %925 = vmatpush1.msra.mxu0 0.0
    %926 = vmatprep.subr.mxu0 0.0
    %927 = vmatpush1.msra.mxu0 0.0
    %928 = vmatprep.subr.mxu0 0.0
    %929 = vmatpush1.msra.mxu0 0.0
    %930 = vmatprep.subr.mxu0 0.0
    %931 = vmatpush1.msra.mxu0 0.0
    %932 = vmatprep.subr.mxu0 0.0
    %933 = vmatpush1.msra.mxu0 %v904
    %934 = vmatprep.subr.mxu0 0.0
    %935 = vmatpush1.msra.mxu0 %v903
    %936 = vmatprep.subr.mxu0 0.0
    %937 = vmatpush1.msra.mxu0 %v902
    %938 = vmatprep.subr.mxu0 0.0
    %939 = vmatpush1.msra.mxu0 %v901
    %940 = vmatprep.subr.mxu0 0.0
    %941 = vmatpush1.msra.mxu0 %v900
    %942 = vmatprep.subr.mxu0 0.0
    %943 = vmatpush1.msra.mxu0 %v899
    %944 = vmatprep.subr.mxu0 0.0
    %945 = vmatpush1.msra.mxu0 %v898
    %946 = vmatprep.subr.mxu0 0.0
    %947 = vmatpush1.msra.mxu0 %v897
    %948 = vmatprep.subr.mxu0 0.0
    %949 = vmatpush2.msra.mxu0 0.0
    %950 = vmatprep.subr.mxu0 0.0
    %951 = vmatpush2.msra.mxu0 0.0
    %952 = vmatprep.subr.mxu0 0.0
    %953 = vmatpush2.msra.mxu0 0.0
    %954 = vmatprep.subr.mxu0 0.0
    %955 = vmatpush2.msra.mxu0 0.0
    %956 = vmatprep.subr.mxu0 0.0
    %957 = vmatpush2.msra.mxu0 0.0
    %958 = vmatprep.subr.mxu0 0.0
    %959 = vmatpush2.msra.mxu0 0.0
    %960 = vmatprep.subr.mxu0 0.0
    %961 = vmatpush2.msra.mxu0 0.0
    %962 = vmatprep.subr.mxu0 0.0
    %963 = vmatpush2.msra.mxu0 0.0
    %964 = vmatprep.subr.mxu0 0.0
    %965 = vmatpush2.msra.mxu0 0.0
    %966 = vmatprep.subr.mxu0 0.0
    %967 = vmatpush2.msra.mxu0 0.0
    %968 = vmatprep.subr.mxu0 0.0
    %969 = vmatpush2.msra.mxu0 0.0
    %970 = vmatprep.subr.mxu0 0.0
    %971 = vmatpush2.msra.mxu0 0.0
    %972 = vmatprep.subr.mxu0 0.0
    %973 = vmatpush2.msra.mxu0 0.0
    %974 = vmatprep.subr.mxu0 0.0
    %975 = vmatpush2.msra.mxu0 0.0
    %976 = vmatprep.subr.mxu0 0.0
    %977 = vmatpush2.msra.mxu0 0.0
    %978 = vmatprep.subr.mxu0 0.0
    %979 = vmatpush2.msra.mxu0 0.0
    %980 = vmatprep.mubr.f32.mxu0 0.0
    %981 = vmatmul.mubr.f32.gmra.mxu0 %v914
    %v982 = vpop.f32.mrf.mxu0
    %v983 = vadd.f32 %v910, %v982
    %v984 = vpop.f32.mrf.mxu0
    %985 = vdwg.mxu0
    %v986 = vld [vmem:[#allocation11] sm:$0xff]
    %v987 = vld [vmem:[#allocation11 + $0x8] sm:$0xff]
    %v988 = vld [vmem:[#allocation11 + $0x10] sm:$0xff]
    %v989 = vld [vmem:[#allocation11 + $0x18] sm:$0xff]
    %v990 = vld [vmem:[#allocation11 + $0x20] sm:$0xff]
    %v991 = vld [vmem:[#allocation11 + $0x28] sm:$0xff]
    %v992 = vld [vmem:[#allocation11 + $0x30] sm:$0xff]
    %v993 = vld [vmem:[#allocation11 + $0x38] sm:$0xff]
    %v994 = vld [vmem:[%s7] sm:$0x1]
    %v996 = vlaneseq
    %v997 = vshrl.u32 %v996, 7
    %v998 = vsub.s32 0, %v997
    %v999 = vrot.slane %v994, %v998
    %v1002 = vsel %vm912, %v983, 0
    %1004 = vmatprep.subr.mxu0 0.0
    %1005 = vmatpush1.msra.mxu0 0.0
    %1006 = vmatprep.subr.mxu0 0.0
    %1007 = vmatpush1.msra.mxu0 0.0
    %1008 = vmatprep.subr.mxu0 0.0
    %1009 = vmatpush1.msra.mxu0 0.0
    %1010 = vmatprep.subr.mxu0 0.0
    %1011 = vmatpush1.msra.mxu0 0.0
    %1012 = vmatprep.subr.mxu0 0.0
    %1013 = vmatpush1.msra.mxu0 0.0
    %1014 = vmatprep.subr.mxu0 0.0
    %1015 = vmatpush1.msra.mxu0 0.0
    %1016 = vmatprep.subr.mxu0 0.0
    %1017 = vmatpush1.msra.mxu0 0.0
    %1018 = vmatprep.subr.mxu0 0.0
    %1019 = vmatpush1.msra.mxu0 0.0
    %1020 = vmatprep.subr.mxu0 0.0
    %1021 = vmatpush1.msra.mxu0 %v993
    %1022 = vmatprep.subr.mxu0 0.0
    %1023 = vmatpush1.msra.mxu0 %v992
    %1024 = vmatprep.subr.mxu0 0.0
    %1025 = vmatpush1.msra.mxu0 %v991
    %1026 = vmatprep.subr.mxu0 0.0
    %1027 = vmatpush1.msra.mxu0 %v990
    %1028 = vmatprep.subr.mxu0 0.0
    %1029 = vmatpush1.msra.mxu0 %v989
    %1030 = vmatprep.subr.mxu0 0.0
    %1031 = vmatpush1.msra.mxu0 %v988
    %1032 = vmatprep.subr.mxu0 0.0
    %1033 = vmatpush1.msra.mxu0 %v987
    %1034 = vmatprep.subr.mxu0 0.0
    %1035 = vmatpush1.msra.mxu0 %v986
    %1036 = vmatprep.subr.mxu0 0.0
    %1037 = vmatpush2.msra.mxu0 0.0
    %1038 = vmatprep.subr.mxu0 0.0
    %1039 = vmatpush2.msra.mxu0 0.0
    %1040 = vmatprep.subr.mxu0 0.0
    %1041 = vmatpush2.msra.mxu0 0.0
    %1042 = vmatprep.subr.mxu0 0.0
    %1043 = vmatpush2.msra.mxu0 0.0
    %1044 = vmatprep.subr.mxu0 0.0
    %1045 = vmatpush2.msra.mxu0 0.0
    %1046 = vmatprep.subr.mxu0 0.0
    %1047 = vmatpush2.msra.mxu0 0.0
    %1048 = vmatprep.subr.mxu0 0.0
    %1049 = vmatpush2.msra.mxu0 0.0
    %1050 = vmatprep.subr.mxu0 0.0
    %1051 = vmatpush2.msra.mxu0 0.0
    %1052 = vmatprep.subr.mxu0 0.0
    %1053 = vmatpush2.msra.mxu0 0.0
    %1054 = vmatprep.subr.mxu0 0.0
    %1055 = vmatpush2.msra.mxu0 0.0
    %1056 = vmatprep.subr.mxu0 0.0
    %1057 = vmatpush2.msra.mxu0 0.0
    %1058 = vmatprep.subr.mxu0 0.0
    %1059 = vmatpush2.msra.mxu0 0.0
    %1060 = vmatprep.subr.mxu0 0.0
    %1061 = vmatpush2.msra.mxu0 0.0
    %1062 = vmatprep.subr.mxu0 0.0
    %1063 = vmatpush2.msra.mxu0 0.0
    %1064 = vmatprep.subr.mxu0 0.0
    %1065 = vmatpush2.msra.mxu0 0.0
    %1066 = vmatprep.subr.mxu0 0.0
    %1067 = vmatpush2.msra.mxu0 0.0
    %1068 = vmatprep.mubr.f32.mxu0 0.0
    %1069 = vmatmul.mubr.f32.gmra.mxu0 %v1002
    %v1070 = vpop.f32.mrf.mxu0
    %v1071 = vadd.f32 %v999, %v1070
    %v1072 = vpop.f32.mrf.mxu0
    %1073 = vdwg.mxu0
    %v1074 = vadd.f32 %v896, %v1071
    %v1075 = vld [vmem:[%s2] sm:$0xff]
    %v1076 = vld [vmem:[#allocation17] sm:$0xff]
    %v1077 = vld [vmem:[#allocation17 + $0x8] sm:$0xff]
    %v1078 = vld [vmem:[#allocation17 + $0x10] sm:$0xff]
    %v1079 = vld [vmem:[#allocation17 + $0x18] sm:$0xff]
    %v1080 = vld [vmem:[#allocation17 + $0x20] sm:$0xff]
    %v1081 = vld [vmem:[#allocation17 + $0x28] sm:$0xff]
    %v1082 = vld [vmem:[#allocation17 + $0x30] sm:$0xff]
    %v1083 = vld [vmem:[#allocation17 + $0x38] sm:$0xff]
    %v1084 = vld [vmem:[#allocation17 + $0x40] sm:$0xff]
    %v1085 = vld [vmem:[#allocation17 + $0x48] sm:$0xff]
    %v1086 = vld [vmem:[#allocation17 + $0x50] sm:$0xff]
    %v1087 = vld [vmem:[#allocation17 + $0x58] sm:$0xff]
    %v1088 = vld [vmem:[#allocation17 + $0x60] sm:$0xff]
    %v1089 = vld [vmem:[#allocation17 + $0x68] sm:$0xff]
    %v1090 = vld [vmem:[#allocation17 + $0x70] sm:$0xff]
    %v1091 = vld [vmem:[#allocation17 + $0x78] sm:$0xff]
    %v1092 = vld [vmem:[#allocation17 + $0x80] sm:$0xff]
    %v1093 = vld [vmem:[#allocation17 + $0x88] sm:$0xff]
    %v1094 = vld [vmem:[#allocation17 + $0x90] sm:$0xff]
    %v1095 = vld [vmem:[#allocation17 + $0x98] sm:$0xff]
    %v1096 = vld [vmem:[#allocation17 + $0xa0] sm:$0xff]
    %v1097 = vld [vmem:[#allocation17 + $0xa8] sm:$0xff]
    %v1098 = vld [vmem:[#allocation17 + $0xb0] sm:$0xff]
    %v1099 = vld [vmem:[#allocation17 + $0xb8] sm:$0xff]
    %v1100 = vld [vmem:[#allocation20] sm:$0x7]
    %v1102 = vlaneseq
    %v1103 = vshrl.u32 %v1102, 7
    %v1104 = vsub.s32 0, %v1103
    %v1105 = vrot.slane %v1100, %v1104
    %v1106 = vlaneseq
    %v1107 = vshrl.u32 %v1106, 7
    %v1108 = vsub.s32 1, %v1107
    %v1109 = vrot.slane %v1100, %v1108
    %v1110 = vlaneseq
    %v1111 = vshrl.u32 %v1110, 7
    %v1112 = vsub.s32 2, %v1111
    %v1113 = vrot.slane %v1100, %v1112
    %v1118 = vsel %vm912, %v1074, 0
    %1120 = vmatprep.subr.mxu0 0.0
    %1121 = vmatpush1.msra.mxu0 0.0
    %1122 = vmatprep.subr.mxu0 0.0
    %1123 = vmatpush1.msra.mxu0 0.0
    %1124 = vmatprep.subr.mxu0 0.0
    %1125 = vmatpush1.msra.mxu0 0.0
    %1126 = vmatprep.subr.mxu0 0.0
    %1127 = vmatpush1.msra.mxu0 0.0
    %1128 = vmatprep.subr.mxu0 0.0
    %1129 = vmatpush1.msra.mxu0 0.0
    %1130 = vmatprep.subr.mxu0 0.0
    %1131 = vmatpush1.msra.mxu0 0.0
    %1132 = vmatprep.subr.mxu0 0.0
    %1133 = vmatpush1.msra.mxu0 0.0
    %1134 = vmatprep.subr.mxu0 0.0
    %1135 = vmatpush1.msra.mxu0 0.0
    %1136 = vmatprep.subr.mxu0 %v1098
    %1137 = vmatpush1.msra.mxu0 %v1097
    %1138 = vmatprep.subr.mxu0 %v1095
    %1139 = vmatpush1.msra.mxu0 %v1094
    %1140 = vmatprep.subr.mxu0 %v1092
    %1141 = vmatpush1.msra.mxu0 %v1091
    %1142 = vmatprep.subr.mxu0 %v1089
    %1143 = vmatpush1.msra.mxu0 %v1088
    %1144 = vmatprep.subr.mxu0 %v1086
    %1145 = vmatpush1.msra.mxu0 %v1085
    %1146 = vmatprep.subr.mxu0 %v1083
    %1147 = vmatpush1.msra.mxu0 %v1082
    %1148 = vmatprep.subr.mxu0 %v1080
    %1149 = vmatpush1.msra.mxu0 %v1079
    %1150 = vmatprep.subr.mxu0 %v1077
    %1151 = vmatpush1.msra.mxu0 %v1076
    %1152 = vmatprep.subr.mxu0 0.0
    %1153 = vmatpush2.msra.mxu0 0.0
    %1154 = vmatprep.subr.mxu0 0.0
    %1155 = vmatpush2.msra.mxu0 0.0
    %1156 = vmatprep.subr.mxu0 0.0
    %1157 = vmatpush2.msra.mxu0 0.0
    %1158 = vmatprep.subr.mxu0 0.0
    %1159 = vmatpush2.msra.mxu0 0.0
    %1160 = vmatprep.subr.mxu0 0.0
    %1161 = vmatpush2.msra.mxu0 0.0
    %1162 = vmatprep.subr.mxu0 0.0
    %1163 = vmatpush2.msra.mxu0 0.0
    %1164 = vmatprep.subr.mxu0 0.0
    %1165 = vmatpush2.msra.mxu0 0.0
    %1166 = vmatprep.subr.mxu0 0.0
    %1167 = vmatpush2.msra.mxu0 0.0
    %1168 = vmatprep.subr.mxu0 0.0
    %1169 = vmatpush2.msra.mxu0 0.0
    %1170 = vmatprep.subr.mxu0 0.0
    %1171 = vmatpush2.msra.mxu0 0.0
    %1172 = vmatprep.subr.mxu0 0.0
    %1173 = vmatpush2.msra.mxu0 0.0
    %1174 = vmatprep.subr.mxu0 0.0
    %1175 = vmatpush2.msra.mxu0 0.0
    %1176 = vmatprep.subr.mxu0 0.0
    %1177 = vmatpush2.msra.mxu0 0.0
    %1178 = vmatprep.subr.mxu0 0.0
    %1179 = vmatpush2.msra.mxu0 0.0
    %1180 = vmatprep.subr.mxu0 0.0
    %1181 = vmatpush2.msra.mxu0 0.0
    %1182 = vmatprep.subr.mxu0 0.0
    %1183 = vmatpush2.msra.mxu0 0.0
    %1184 = vmatprep.mubr.f32.mxu0 0.0
    %1185 = vmatmul.mubr.f32.gmra.mxu0 %v1118
    %v1186 = vpop.f32.mrf.mxu0
    %v1187 = vadd.f32 %v1105, %v1186
    %v1188 = vpop.f32.mrf.mxu0
    %v1189 = vadd.f32 %v1109, %v1188
    %1190 = vdwg.mxu0
    %1191 = vmatprep.subr.mxu0 0.0
    %1192 = vmatpush1.msra.mxu0 0.0
    %1193 = vmatprep.subr.mxu0 0.0
    %1194 = vmatpush1.msra.mxu0 0.0
    %1195 = vmatprep.subr.mxu0 0.0
    %1196 = vmatpush1.msra.mxu0 0.0
    %1197 = vmatprep.subr.mxu0 0.0
    %1198 = vmatpush1.msra.mxu0 0.0
    %1199 = vmatprep.subr.mxu0 0.0
    %1200 = vmatpush1.msra.mxu0 0.0
    %1201 = vmatprep.subr.mxu0 0.0
    %1202 = vmatpush1.msra.mxu0 0.0
    %1203 = vmatprep.subr.mxu0 0.0
    %1204 = vmatpush1.msra.mxu0 0.0
    %1205 = vmatprep.subr.mxu0 0.0
    %1206 = vmatpush1.msra.mxu0 0.0
    %1207 = vmatprep.subr.mxu0 0.0
    %1208 = vmatpush1.msra.mxu0 %v1099
    %1209 = vmatprep.subr.mxu0 0.0
    %1210 = vmatpush1.msra.mxu0 %v1096
    %1211 = vmatprep.subr.mxu0 0.0
    %1212 = vmatpush1.msra.mxu0 %v1093
    %1213 = vmatprep.subr.mxu0 0.0
    %1214 = vmatpush1.msra.mxu0 %v1090
    %1215 = vmatprep.subr.mxu0 0.0
    %1216 = vmatpush1.msra.mxu0 %v1087
    %1217 = vmatprep.subr.mxu0 0.0
    %1218 = vmatpush1.msra.mxu0 %v1084
    %1219 = vmatprep.subr.mxu0 0.0
    %1220 = vmatpush1.msra.mxu0 %v1081
    %1221 = vmatprep.subr.mxu0 0.0
    %1222 = vmatpush1.msra.mxu0 %v1078
    %1223 = vmatprep.subr.mxu0 0.0
    %1224 = vmatpush2.msra.mxu0 0.0
    %1225 = vmatprep.subr.mxu0 0.0
    %1226 = vmatpush2.msra.mxu0 0.0
    %1227 = vmatprep.subr.mxu0 0.0
    %1228 = vmatpush2.msra.mxu0 0.0
    %1229 = vmatprep.subr.mxu0 0.0
    %1230 = vmatpush2.msra.mxu0 0.0
    %1231 = vmatprep.subr.mxu0 0.0
    %1232 = vmatpush2.msra.mxu0 0.0
    %1233 = vmatprep.subr.mxu0 0.0
    %1234 = vmatpush2.msra.mxu0 0.0
    %1235 = vmatprep.subr.mxu0 0.0
    %1236 = vmatpush2.msra.mxu0 0.0
    %1237 = vmatprep.subr.mxu0 0.0
    %1238 = vmatpush2.msra.mxu0 0.0
    %1239 = vmatprep.subr.mxu0 0.0
    %1240 = vmatpush2.msra.mxu0 0.0
    %1241 = vmatprep.subr.mxu0 0.0
    %1242 = vmatpush2.msra.mxu0 0.0
    %1243 = vmatprep.subr.mxu0 0.0
    %1244 = vmatpush2.msra.mxu0 0.0
    %1245 = vmatprep.subr.mxu0 0.0
    %1246 = vmatpush2.msra.mxu0 0.0
    %1247 = vmatprep.subr.mxu0 0.0
    %1248 = vmatpush2.msra.mxu0 0.0
    %1249 = vmatprep.subr.mxu0 0.0
    %1250 = vmatpush2.msra.mxu0 0.0
    %1251 = vmatprep.subr.mxu0 0.0
    %1252 = vmatpush2.msra.mxu0 0.0
    %1253 = vmatprep.subr.mxu0 0.0
    %1254 = vmatpush2.msra.mxu0 0.0
    %1255 = vmatprep.mubr.f32.mxu0 0.0
    %1256 = vmatmul.mubr.f32.gmra.mxu0 %v1118
    %v1257 = vpop.f32.mrf.mxu0
    %v1258 = vadd.f32 %v1113, %v1257
    %v1259 = vpop.f32.mrf.mxu0
    %1260 = vdwg.mxu0
    %v1261 = vld [vmem:[#allocation18] sm:$0xff]
    %v1262 = vld [vmem:[#allocation18 + $0x8] sm:$0xff]
    %v1263 = vld [vmem:[#allocation18 + $0x10] sm:$0xff]
    %v1264 = vld [vmem:[#allocation18 + $0x18] sm:$0xff]
    %v1265 = vld [vmem:[#allocation18 + $0x20] sm:$0xff]
    %v1266 = vld [vmem:[#allocation18 + $0x28] sm:$0xff]
    %v1267 = vld [vmem:[#allocation18 + $0x30] sm:$0xff]
    %v1268 = vld [vmem:[#allocation18 + $0x38] sm:$0xff]
    %v1269 = vld [vmem:[#allocation18 + $0x40] sm:$0xff]
    %v1270 = vld [vmem:[#allocation18 + $0x48] sm:$0xff]
    %v1271 = vld [vmem:[#allocation18 + $0x50] sm:$0xff]
    %v1272 = vld [vmem:[#allocation18 + $0x58] sm:$0xff]
    %v1273 = vld [vmem:[#allocation18 + $0x60] sm:$0xff]
    %v1274 = vld [vmem:[#allocation18 + $0x68] sm:$0xff]
    %v1275 = vld [vmem:[#allocation18 + $0x70] sm:$0xff]
    %v1276 = vld [vmem:[#allocation18 + $0x78] sm:$0xff]
    %v1277 = vld [vmem:[#allocation18 + $0x80] sm:$0xff]
    %v1278 = vld [vmem:[#allocation18 + $0x88] sm:$0xff]
    %v1279 = vld [vmem:[#allocation18 + $0x90] sm:$0xff]
    %v1280 = vld [vmem:[#allocation18 + $0x98] sm:$0xff]
    %v1281 = vld [vmem:[#allocation18 + $0xa0] sm:$0xff]
    %v1282 = vld [vmem:[#allocation18 + $0xa8] sm:$0xff]
    %v1283 = vld [vmem:[#allocation18 + $0xb0] sm:$0xff]
    %v1284 = vld [vmem:[#allocation18 + $0xb8] sm:$0xff]
    %v1285 = vld [vmem:[#allocation18 + $0xc0] sm:$0xff]
    %v1286 = vld [vmem:[#allocation18 + $0xc8] sm:$0xff]
    %v1287 = vld [vmem:[#allocation18 + $0xd0] sm:$0xff]
    %v1288 = vld [vmem:[#allocation18 + $0xd8] sm:$0xff]
    %v1289 = vld [vmem:[#allocation18 + $0xe0] sm:$0xff]
    %v1290 = vld [vmem:[#allocation18 + $0xe8] sm:$0xff]
    %v1291 = vld [vmem:[#allocation18 + $0xf0] sm:$0xff]
    %v1292 = vld [vmem:[#allocation18 + $0xf8] sm:$0xff]
    %v1293 = vld [vmem:[#allocation18 + $0x100] sm:$0xff]
    %v1294 = vld [vmem:[#allocation18 + $0x108] sm:$0xff]
    %v1295 = vld [vmem:[#allocation18 + $0x110] sm:$0xff]
    %v1296 = vld [vmem:[#allocation18 + $0x118] sm:$0xff]
    %v1297 = vld [vmem:[#allocation18 + $0x120] sm:$0xff]
    %v1298 = vld [vmem:[#allocation18 + $0x128] sm:$0xff]
    %v1299 = vld [vmem:[#allocation18 + $0x130] sm:$0xff]
    %v1300 = vld [vmem:[#allocation18 + $0x138] sm:$0xff]
    %v1301 = vld [vmem:[#allocation18 + $0x140] sm:$0xff]
    %v1302 = vld [vmem:[#allocation18 + $0x148] sm:$0xff]
    %v1303 = vld [vmem:[#allocation18 + $0x150] sm:$0xff]
    %v1304 = vld [vmem:[#allocation18 + $0x158] sm:$0xff]
    %v1305 = vld [vmem:[#allocation18 + $0x160] sm:$0xff]
    %v1306 = vld [vmem:[#allocation18 + $0x168] sm:$0xff]
    %v1307 = vld [vmem:[#allocation18 + $0x170] sm:$0xff]
    %v1308 = vld [vmem:[#allocation18 + $0x178] sm:$0xff]
    %v1309 = vld [vmem:[#allocation21] sm:$0x7]
    %v1311 = vlaneseq
    %v1312 = vshrl.u32 %v1311, 7
    %v1313 = vsub.s32 0, %v1312
    %v1314 = vrot.slane %v1309, %v1313
    %v1315 = vlaneseq
    %v1316 = vshrl.u32 %v1315, 7
    %v1317 = vsub.s32 1, %v1316
    %v1318 = vrot.slane %v1309, %v1317
    %v1319 = vlaneseq
    %v1320 = vshrl.u32 %v1319, 7
    %v1321 = vsub.s32 2, %v1320
    %v1322 = vrot.slane %v1309, %v1321
    %1326 = vmatprep.subr.mxu0 %v1307
    %1327 = vmatpush1.msra.mxu0 %v1306
    %1328 = vmatprep.subr.mxu0 %v1304
    %1329 = vmatpush1.msra.mxu0 %v1303
    %1330 = vmatprep.subr.mxu0 %v1301
    %1331 = vmatpush1.msra.mxu0 %v1300
    %1332 = vmatprep.subr.mxu0 %v1298
    %1333 = vmatpush1.msra.mxu0 %v1297
    %1334 = vmatprep.subr.mxu0 %v1295
    %1335 = vmatpush1.msra.mxu0 %v1294
    %1336 = vmatprep.subr.mxu0 %v1292
    %1337 = vmatpush1.msra.mxu0 %v1291
    %1338 = vmatprep.subr.mxu0 %v1289
    %1339 = vmatpush1.msra.mxu0 %v1288
    %1340 = vmatprep.subr.mxu0 %v1286
    %1341 = vmatpush1.msra.mxu0 %v1285
    %1342 = vmatprep.subr.mxu0 %v1283
    %1343 = vmatpush1.msra.mxu0 %v1282
    %1344 = vmatprep.subr.mxu0 %v1280
    %1345 = vmatpush1.msra.mxu0 %v1279
    %1346 = vmatprep.subr.mxu0 %v1277
    %1347 = vmatpush1.msra.mxu0 %v1276
    %1348 = vmatprep.subr.mxu0 %v1274
    %1349 = vmatpush1.msra.mxu0 %v1273
    %1350 = vmatprep.subr.mxu0 %v1271
    %1351 = vmatpush1.msra.mxu0 %v1270
    %1352 = vmatprep.subr.mxu0 %v1268
    %1353 = vmatpush1.msra.mxu0 %v1267
    %1354 = vmatprep.subr.mxu0 %v1265
    %1355 = vmatpush1.msra.mxu0 %v1264
    %1356 = vmatprep.subr.mxu0 %v1262
    %1357 = vmatpush1.msra.mxu0 %v1261
    %1358 = vmatprep.subr.mxu0 0.0
    %1359 = vmatpush2.msra.mxu0 0.0
    %1360 = vmatprep.subr.mxu0 0.0
    %1361 = vmatpush2.msra.mxu0 0.0
    %1362 = vmatprep.subr.mxu0 0.0
    %1363 = vmatpush2.msra.mxu0 0.0
    %1364 = vmatprep.subr.mxu0 0.0
    %1365 = vmatpush2.msra.mxu0 0.0
    %1366 = vmatprep.subr.mxu0 0.0
    %1367 = vmatpush2.msra.mxu0 0.0
    %1368 = vmatprep.subr.mxu0 0.0
    %1369 = vmatpush2.msra.mxu0 0.0
    %1370 = vmatprep.subr.mxu0 0.0
    %1371 = vmatpush2.msra.mxu0 0.0
    %1372 = vmatprep.subr.mxu0 0.0
    %1373 = vmatpush2.msra.mxu0 0.0
    %1374 = vmatprep.subr.mxu0 0.0
    %1375 = vmatpush2.msra.mxu0 0.0
    %1376 = vmatprep.subr.mxu0 0.0
    %1377 = vmatpush2.msra.mxu0 0.0
    %1378 = vmatprep.subr.mxu0 0.0
    %1379 = vmatpush2.msra.mxu0 0.0
    %1380 = vmatprep.subr.mxu0 0.0
    %1381 = vmatpush2.msra.mxu0 0.0
    %1382 = vmatprep.subr.mxu0 0.0
    %1383 = vmatpush2.msra.mxu0 0.0
    %1384 = vmatprep.subr.mxu0 0.0
    %1385 = vmatpush2.msra.mxu0 0.0
    %1386 = vmatprep.subr.mxu0 0.0
    %1387 = vmatpush2.msra.mxu0 0.0
    %1388 = vmatprep.subr.mxu0 0.0
    %1389 = vmatpush2.msra.mxu0 0.0
    %1390 = vmatprep.mubr.f32.mxu0 0.0
    %1391 = vmatmul.mubr.f32.gmra.mxu0 %v1075
    %v1392 = vpop.f32.mrf.mxu0
    %v1393 = vadd.f32 %v1314, %v1392
    %v1394 = vpop.f32.mrf.mxu0
    %v1395 = vadd.f32 %v1318, %v1394
    %1396 = vdwg.mxu0
    %1397 = vmatprep.subr.mxu0 0.0
    %1398 = vmatpush1.msra.mxu0 %v1308
    %1399 = vmatprep.subr.mxu0 0.0
    %1400 = vmatpush1.msra.mxu0 %v1305
    %1401 = vmatprep.subr.mxu0 0.0
    %1402 = vmatpush1.msra.mxu0 %v1302
    %1403 = vmatprep.subr.mxu0 0.0
    %1404 = vmatpush1.msra.mxu0 %v1299
    %1405 = vmatprep.subr.mxu0 0.0
    %1406 = vmatpush1.msra.mxu0 %v1296
    %1407 = vmatprep.subr.mxu0 0.0
    %1408 = vmatpush1.msra.mxu0 %v1293
    %1409 = vmatprep.subr.mxu0 0.0
    %1410 = vmatpush1.msra.mxu0 %v1290
    %1411 = vmatprep.subr.mxu0 0.0
    %1412 = vmatpush1.msra.mxu0 %v1287
    %1413 = vmatprep.subr.mxu0 0.0
    %1414 = vmatpush1.msra.mxu0 %v1284
    %1415 = vmatprep.subr.mxu0 0.0
    %1416 = vmatpush1.msra.mxu0 %v1281
    %1417 = vmatprep.subr.mxu0 0.0
    %1418 = vmatpush1.msra.mxu0 %v1278
    %1419 = vmatprep.subr.mxu0 0.0
    %1420 = vmatpush1.msra.mxu0 %v1275
    %1421 = vmatprep.subr.mxu0 0.0
    %1422 = vmatpush1.msra.mxu0 %v1272
    %1423 = vmatprep.subr.mxu0 0.0
    %1424 = vmatpush1.msra.mxu0 %v1269
    %1425 = vmatprep.subr.mxu0 0.0
    %1426 = vmatpush1.msra.mxu0 %v1266
    %1427 = vmatprep.subr.mxu0 0.0
    %1428 = vmatpush1.msra.mxu0 %v1263
    %1429 = vmatprep.subr.mxu0 0.0
    %1430 = vmatpush2.msra.mxu0 0.0
    %1431 = vmatprep.subr.mxu0 0.0
    %1432 = vmatpush2.msra.mxu0 0.0
    %1433 = vmatprep.subr.mxu0 0.0
    %1434 = vmatpush2.msra.mxu0 0.0
    %1435 = vmatprep.subr.mxu0 0.0
    %1436 = vmatpush2.msra.mxu0 0.0
    %1437 = vmatprep.subr.mxu0 0.0
    %1438 = vmatpush2.msra.mxu0 0.0
    %1439 = vmatprep.subr.mxu0 0.0
    %1440 = vmatpush2.msra.mxu0 0.0
    %1441 = vmatprep.subr.mxu0 0.0
    %1442 = vmatpush2.msra.mxu0 0.0
    %1443 = vmatprep.subr.mxu0 0.0
    %1444 = vmatpush2.msra.mxu0 0.0
    %1445 = vmatprep.subr.mxu0 0.0
    %1446 = vmatpush2.msra.mxu0 0.0
    %1447 = vmatprep.subr.mxu0 0.0
    %1448 = vmatpush2.msra.mxu0 0.0
    %1449 = vmatprep.subr.mxu0 0.0
    %1450 = vmatpush2.msra.mxu0 0.0
    %1451 = vmatprep.subr.mxu0 0.0
    %1452 = vmatpush2.msra.mxu0 0.0
    %1453 = vmatprep.subr.mxu0 0.0
    %1454 = vmatpush2.msra.mxu0 0.0
    %1455 = vmatprep.subr.mxu0 0.0
    %1456 = vmatpush2.msra.mxu0 0.0
    %1457 = vmatprep.subr.mxu0 0.0
    %1458 = vmatpush2.msra.mxu0 0.0
    %1459 = vmatprep.subr.mxu0 0.0
    %1460 = vmatpush2.msra.mxu0 0.0
    %1461 = vmatprep.mubr.f32.mxu0 0.0
    %1462 = vmatmul.mubr.f32.gmra.mxu0 %v1075
    %v1463 = vpop.f32.mrf.mxu0
    %v1464 = vadd.f32 %v1322, %v1463
    %v1465 = vpop.f32.mrf.mxu0
    %1466 = vdwg.mxu0
    %v1467 = vadd.f32 %v1187, %v1393
    %v1468 = vxor.u32 %v1467, 2147483648
    %v1469 = vmul.f32 %v1468, 1.442695
    %v1470 = vpow.pop %v1469
    %v1471 = vadd.f32 %v1470, 1.0
    %v1472 = vrcp.pop %v1471
    %v1473 = vmul.f32 1.0, %v1472
    %v1474 = vadd.f32 %v1189, %v1395
    %v1475 = vxor.u32 %v1474, 2147483648
    %v1476 = vmul.f32 %v1475, 1.442695
    %v1477 = vpow.pop %v1476
    %v1478 = vadd.f32 %v1477, 1.0
    %v1479 = vrcp.pop %v1478
    %v1480 = vmul.f32 1.0, %v1479
    %v1481 = vmul.f32 %v1473, %v1464
    %v1482 = vadd.f32 %v1258, %v1481
    %v1483 = vtanh.pop %v1482
    %v1484 = vsub.f32 1.0, %v1480
    %v1485 = vmul.f32 %v1484, %v1483
    %v1486 = vmul.f32 %v1480, %v1075
    %v1487 = vadd.f32 %v1485, %v1486
    %1488 = vst [vmem:[#allocation30] sm:$0xff] %v1487
    %s1489 = scalar_lea.vmem %s2, 8
    %v1490 = vld [vmem:[%s1489] sm:$0xff]
    %v1491 = vld [vmem:[#allocation23] sm:$0xff]
    %v1492 = vld [vmem:[#allocation23 + $0x8] sm:$0xff]
    %v1493 = vld [vmem:[#allocation23 + $0x10] sm:$0xff]
    %v1494 = vld [vmem:[#allocation23 + $0x18] sm:$0xff]
    %v1495 = vld [vmem:[#allocation23 + $0x20] sm:$0xff]
    %v1496 = vld [vmem:[#allocation23 + $0x28] sm:$0xff]
    %v1497 = vld [vmem:[#allocation23 + $0x30] sm:$0xff]
    %v1498 = vld [vmem:[#allocation23 + $0x38] sm:$0xff]
    %v1499 = vld [vmem:[#allocation23 + $0x40] sm:$0xff]
    %v1500 = vld [vmem:[#allocation23 + $0x48] sm:$0xff]
    %v1501 = vld [vmem:[#allocation23 + $0x50] sm:$0xff]
    %v1502 = vld [vmem:[#allocation23 + $0x58] sm:$0xff]
    %v1503 = vld [vmem:[#allocation23 + $0x60] sm:$0xff]
    %v1504 = vld [vmem:[#allocation23 + $0x68] sm:$0xff]
    %v1505 = vld [vmem:[#allocation23 + $0x70] sm:$0xff]
    %v1506 = vld [vmem:[#allocation23 + $0x78] sm:$0xff]
    %v1507 = vld [vmem:[#allocation23 + $0x80] sm:$0xff]
    %v1508 = vld [vmem:[#allocation23 + $0x88] sm:$0xff]
    %v1509 = vld [vmem:[#allocation23 + $0x90] sm:$0xff]
    %v1510 = vld [vmem:[#allocation23 + $0x98] sm:$0xff]
    %v1511 = vld [vmem:[#allocation23 + $0xa0] sm:$0xff]
    %v1512 = vld [vmem:[#allocation23 + $0xa8] sm:$0xff]
    %v1513 = vld [vmem:[#allocation23 + $0xb0] sm:$0xff]
    %v1514 = vld [vmem:[#allocation23 + $0xb8] sm:$0xff]
    %v1515 = vld [vmem:[#allocation23 + $0xc0] sm:$0xff]
    %v1516 = vld [vmem:[#allocation23 + $0xc8] sm:$0xff]
    %v1517 = vld [vmem:[#allocation23 + $0xd0] sm:$0xff]
    %v1518 = vld [vmem:[#allocation23 + $0xd8] sm:$0xff]
    %v1519 = vld [vmem:[#allocation23 + $0xe0] sm:$0xff]
    %v1520 = vld [vmem:[#allocation23 + $0xe8] sm:$0xff]
    %v1521 = vld [vmem:[#allocation23 + $0xf0] sm:$0xff]
    %v1522 = vld [vmem:[#allocation23 + $0xf8] sm:$0xff]
    %v1523 = vld [vmem:[#allocation23 + $0x100] sm:$0xff]
    %v1524 = vld [vmem:[#allocation23 + $0x108] sm:$0xff]
    %v1525 = vld [vmem:[#allocation23 + $0x110] sm:$0xff]
    %v1526 = vld [vmem:[#allocation23 + $0x118] sm:$0xff]
    %v1527 = vld [vmem:[#allocation23 + $0x120] sm:$0xff]
    %v1528 = vld [vmem:[#allocation23 + $0x128] sm:$0xff]
    %v1529 = vld [vmem:[#allocation23 + $0x130] sm:$0xff]
    %v1530 = vld [vmem:[#allocation23 + $0x138] sm:$0xff]
    %v1531 = vld [vmem:[#allocation23 + $0x140] sm:$0xff]
    %v1532 = vld [vmem:[#allocation23 + $0x148] sm:$0xff]
    %v1533 = vld [vmem:[#allocation23 + $0x150] sm:$0xff]
    %v1534 = vld [vmem:[#allocation23 + $0x158] sm:$0xff]
    %v1535 = vld [vmem:[#allocation23 + $0x160] sm:$0xff]
    %v1536 = vld [vmem:[#allocation23 + $0x168] sm:$0xff]
    %v1537 = vld [vmem:[#allocation23 + $0x170] sm:$0xff]
    %v1538 = vld [vmem:[#allocation23 + $0x178] sm:$0xff]
    %v1539 = vld [vmem:[%s19] sm:$0x7]
    %v1541 = vlaneseq
    %v1542 = vshrl.u32 %v1541, 7
    %v1543 = vsub.s32 0, %v1542
    %v1544 = vrot.slane %v1539, %v1543
    %v1545 = vlaneseq
    %v1546 = vshrl.u32 %v1545, 7
    %v1547 = vsub.s32 1, %v1546
    %v1548 = vrot.slane %v1539, %v1547
    %v1549 = vlaneseq
    %v1550 = vshrl.u32 %v1549, 7
    %v1551 = vsub.s32 2, %v1550
    %v1552 = vrot.slane %v1539, %v1551
    %1556 = vmatprep.subr.mxu0 %v1537
    %1557 = vmatpush1.msra.mxu0 %v1536
    %1558 = vmatprep.subr.mxu0 %v1534
    %1559 = vmatpush1.msra.mxu0 %v1533
    %1560 = vmatprep.subr.mxu0 %v1531
    %1561 = vmatpush1.msra.mxu0 %v1530
    %1562 = vmatprep.subr.mxu0 %v1528
    %1563 = vmatpush1.msra.mxu0 %v1527
    %1564 = vmatprep.subr.mxu0 %v1525
    %1565 = vmatpush1.msra.mxu0 %v1524
    %1566 = vmatprep.subr.mxu0 %v1522
    %1567 = vmatpush1.msra.mxu0 %v1521
    %1568 = vmatprep.subr.mxu0 %v1519
    %1569 = vmatpush1.msra.mxu0 %v1518
    %1570 = vmatprep.subr.mxu0 %v1516
    %1571 = vmatpush1.msra.mxu0 %v1515
    %1572 = vmatprep.subr.mxu0 %v1513
    %1573 = vmatpush1.msra.mxu0 %v1512
    %1574 = vmatprep.subr.mxu0 %v1510
    %1575 = vmatpush1.msra.mxu0 %v1509
    %1576 = vmatprep.subr.mxu0 %v1507
    %1577 = vmatpush1.msra.mxu0 %v1506
    %1578 = vmatprep.subr.mxu0 %v1504
    %1579 = vmatpush1.msra.mxu0 %v1503
    %1580 = vmatprep.subr.mxu0 %v1501
    %1581 = vmatpush1.msra.mxu0 %v1500
    %1582 = vmatprep.subr.mxu0 %v1498
    %1583 = vmatpush1.msra.mxu0 %v1497
    %1584 = vmatprep.subr.mxu0 %v1495
    %1585 = vmatpush1.msra.mxu0 %v1494
    %1586 = vmatprep.subr.mxu0 %v1492
    %1587 = vmatpush1.msra.mxu0 %v1491
    %1588 = vmatprep.subr.mxu0 0.0
    %1589 = vmatpush2.msra.mxu0 0.0
    %1590 = vmatprep.subr.mxu0 0.0
    %1591 = vmatpush2.msra.mxu0 0.0
    %1592 = vmatprep.subr.mxu0 0.0
    %1593 = vmatpush2.msra.mxu0 0.0
    %1594 = vmatprep.subr.mxu0 0.0
    %1595 = vmatpush2.msra.mxu0 0.0
    %1596 = vmatprep.subr.mxu0 0.0
    %1597 = vmatpush2.msra.mxu0 0.0
    %1598 = vmatprep.subr.mxu0 0.0
    %1599 = vmatpush2.msra.mxu0 0.0
    %1600 = vmatprep.subr.mxu0 0.0
    %1601 = vmatpush2.msra.mxu0 0.0
    %1602 = vmatprep.subr.mxu0 0.0
    %1603 = vmatpush2.msra.mxu0 0.0
    %1604 = vmatprep.subr.mxu0 0.0
    %1605 = vmatpush2.msra.mxu0 0.0
    %1606 = vmatprep.subr.mxu0 0.0
    %1607 = vmatpush2.msra.mxu0 0.0
    %1608 = vmatprep.subr.mxu0 0.0
    %1609 = vmatpush2.msra.mxu0 0.0
    %1610 = vmatprep.subr.mxu0 0.0
    %1611 = vmatpush2.msra.mxu0 0.0
    %1612 = vmatprep.subr.mxu0 0.0
    %1613 = vmatpush2.msra.mxu0 0.0
    %1614 = vmatprep.subr.mxu0 0.0
    %1615 = vmatpush2.msra.mxu0 0.0
    %1616 = vmatprep.subr.mxu0 0.0
    %1617 = vmatpush2.msra.mxu0 0.0
    %1618 = vmatprep.subr.mxu0 0.0
    %1619 = vmatpush2.msra.mxu0 0.0
    %1620 = vmatprep.mubr.f32.mxu0 0.0
    %1621 = vmatmul.mubr.f32.gmra.mxu0 %v1487
    %v1622 = vpop.f32.mrf.mxu0
    %v1623 = vadd.f32 %v1544, %v1622
    %v1624 = vpop.f32.mrf.mxu0
    %v1625 = vadd.f32 %v1548, %v1624
    %1626 = vdwg.mxu0
    %1627 = vmatprep.subr.mxu0 0.0
    %1628 = vmatpush1.msra.mxu0 %v1538
    %1629 = vmatprep.subr.mxu0 0.0
    %1630 = vmatpush1.msra.mxu0 %v1535
    %1631 = vmatprep.subr.mxu0 0.0
    %1632 = vmatpush1.msra.mxu0 %v1532
    %1633 = vmatprep.subr.mxu0 0.0
    %1634 = vmatpush1.msra.mxu0 %v1529
    %1635 = vmatprep.subr.mxu0 0.0
    %1636 = vmatpush1.msra.mxu0 %v1526
    %1637 = vmatprep.subr.mxu0 0.0
    %1638 = vmatpush1.msra.mxu0 %v1523
    %1639 = vmatprep.subr.mxu0 0.0
    %1640 = vmatpush1.msra.mxu0 %v1520
    %1641 = vmatprep.subr.mxu0 0.0
    %1642 = vmatpush1.msra.mxu0 %v1517
    %1643 = vmatprep.subr.mxu0 0.0
    %1644 = vmatpush1.msra.mxu0 %v1514
    %1645 = vmatprep.subr.mxu0 0.0
    %1646 = vmatpush1.msra.mxu0 %v1511
    %1647 = vmatprep.subr.mxu0 0.0
    %1648 = vmatpush1.msra.mxu0 %v1508
    %1649 = vmatprep.subr.mxu0 0.0
    %1650 = vmatpush1.msra.mxu0 %v1505
    %1651 = vmatprep.subr.mxu0 0.0
    %1652 = vmatpush1.msra.mxu0 %v1502
    %1653 = vmatprep.subr.mxu0 0.0
    %1654 = vmatpush1.msra.mxu0 %v1499
    %1655 = vmatprep.subr.mxu0 0.0
    %1656 = vmatpush1.msra.mxu0 %v1496
    %1657 = vmatprep.subr.mxu0 0.0
    %1658 = vmatpush1.msra.mxu0 %v1493
    %1659 = vmatprep.subr.mxu0 0.0
    %1660 = vmatpush2.msra.mxu0 0.0
    %1661 = vmatprep.subr.mxu0 0.0
    %1662 = vmatpush2.msra.mxu0 0.0
    %1663 = vmatprep.subr.mxu0 0.0
    %1664 = vmatpush2.msra.mxu0 0.0
    %1665 = vmatprep.subr.mxu0 0.0
    %1666 = vmatpush2.msra.mxu0 0.0
    %1667 = vmatprep.subr.mxu0 0.0
    %1668 = vmatpush2.msra.mxu0 0.0
    %1669 = vmatprep.subr.mxu0 0.0
    %1670 = vmatpush2.msra.mxu0 0.0
    %1671 = vmatprep.subr.mxu0 0.0
    %1672 = vmatpush2.msra.mxu0 0.0
    %1673 = vmatprep.subr.mxu0 0.0
    %1674 = vmatpush2.msra.mxu0 0.0
    %1675 = vmatprep.subr.mxu0 0.0
    %1676 = vmatpush2.msra.mxu0 0.0
    %1677 = vmatprep.subr.mxu0 0.0
    %1678 = vmatpush2.msra.mxu0 0.0
    %1679 = vmatprep.subr.mxu0 0.0
    %1680 = vmatpush2.msra.mxu0 0.0
    %1681 = vmatprep.subr.mxu0 0.0
    %1682 = vmatpush2.msra.mxu0 0.0
    %1683 = vmatprep.subr.mxu0 0.0
    %1684 = vmatpush2.msra.mxu0 0.0
    %1685 = vmatprep.subr.mxu0 0.0
    %1686 = vmatpush2.msra.mxu0 0.0
    %1687 = vmatprep.subr.mxu0 0.0
    %1688 = vmatpush2.msra.mxu0 0.0
    %1689 = vmatprep.subr.mxu0 0.0
    %1690 = vmatpush2.msra.mxu0 0.0
    %1691 = vmatprep.mubr.f32.mxu0 0.0
    %1692 = vmatmul.mubr.f32.gmra.mxu0 %v1487
    %v1693 = vpop.f32.mrf.mxu0
    %v1694 = vadd.f32 %v1552, %v1693
    %v1695 = vpop.f32.mrf.mxu0
    %1696 = vdwg.mxu0
    %v1697 = vld [vmem:[#allocation24] sm:$0xff]
    %v1698 = vld [vmem:[#allocation24 + $0x8] sm:$0xff]
    %v1699 = vld [vmem:[#allocation24 + $0x10] sm:$0xff]
    %v1700 = vld [vmem:[#allocation24 + $0x18] sm:$0xff]
    %v1701 = vld [vmem:[#allocation24 + $0x20] sm:$0xff]
    %v1702 = vld [vmem:[#allocation24 + $0x28] sm:$0xff]
    %v1703 = vld [vmem:[#allocation24 + $0x30] sm:$0xff]
    %v1704 = vld [vmem:[#allocation24 + $0x38] sm:$0xff]
    %v1705 = vld [vmem:[#allocation24 + $0x40] sm:$0xff]
    %v1706 = vld [vmem:[#allocation24 + $0x48] sm:$0xff]
    %v1707 = vld [vmem:[#allocation24 + $0x50] sm:$0xff]
    %v1708 = vld [vmem:[#allocation24 + $0x58] sm:$0xff]
    %v1709 = vld [vmem:[#allocation24 + $0x60] sm:$0xff]
    %v1710 = vld [vmem:[#allocation24 + $0x68] sm:$0xff]
    %v1711 = vld [vmem:[#allocation24 + $0x70] sm:$0xff]
    %v1712 = vld [vmem:[#allocation24 + $0x78] sm:$0xff]
    %v1713 = vld [vmem:[#allocation24 + $0x80] sm:$0xff]
    %v1714 = vld [vmem:[#allocation24 + $0x88] sm:$0xff]
    %v1715 = vld [vmem:[#allocation24 + $0x90] sm:$0xff]
    %v1716 = vld [vmem:[#allocation24 + $0x98] sm:$0xff]
    %v1717 = vld [vmem:[#allocation24 + $0xa0] sm:$0xff]
    %v1718 = vld [vmem:[#allocation24 + $0xa8] sm:$0xff]
    %v1719 = vld [vmem:[#allocation24 + $0xb0] sm:$0xff]
    %v1720 = vld [vmem:[#allocation24 + $0xb8] sm:$0xff]
    %v1721 = vld [vmem:[#allocation24 + $0xc0] sm:$0xff]
    %v1722 = vld [vmem:[#allocation24 + $0xc8] sm:$0xff]
    %v1723 = vld [vmem:[#allocation24 + $0xd0] sm:$0xff]
    %v1724 = vld [vmem:[#allocation24 + $0xd8] sm:$0xff]
    %v1725 = vld [vmem:[#allocation24 + $0xe0] sm:$0xff]
    %v1726 = vld [vmem:[#allocation24 + $0xe8] sm:$0xff]
    %v1727 = vld [vmem:[#allocation24 + $0xf0] sm:$0xff]
    %v1728 = vld [vmem:[#allocation24 + $0xf8] sm:$0xff]
    %v1729 = vld [vmem:[#allocation24 + $0x100] sm:$0xff]
    %v1730 = vld [vmem:[#allocation24 + $0x108] sm:$0xff]
    %v1731 = vld [vmem:[#allocation24 + $0x110] sm:$0xff]
    %v1732 = vld [vmem:[#allocation24 + $0x118] sm:$0xff]
    %v1733 = vld [vmem:[#allocation24 + $0x120] sm:$0xff]
    %v1734 = vld [vmem:[#allocation24 + $0x128] sm:$0xff]
    %v1735 = vld [vmem:[#allocation24 + $0x130] sm:$0xff]
    %v1736 = vld [vmem:[#allocation24 + $0x138] sm:$0xff]
    %v1737 = vld [vmem:[#allocation24 + $0x140] sm:$0xff]
    %v1738 = vld [vmem:[#allocation24 + $0x148] sm:$0xff]
    %v1739 = vld [vmem:[#allocation24 + $0x150] sm:$0xff]
    %v1740 = vld [vmem:[#allocation24 + $0x158] sm:$0xff]
    %v1741 = vld [vmem:[#allocation24 + $0x160] sm:$0xff]
    %v1742 = vld [vmem:[#allocation24 + $0x168] sm:$0xff]
    %v1743 = vld [vmem:[#allocation24 + $0x170] sm:$0xff]
    %v1744 = vld [vmem:[#allocation24 + $0x178] sm:$0xff]
    %v1745 = vld [vmem:[#allocation26] sm:$0x7]
    %v1747 = vlaneseq
    %v1748 = vshrl.u32 %v1747, 7
    %v1749 = vsub.s32 0, %v1748
    %v1750 = vrot.slane %v1745, %v1749
    %v1751 = vlaneseq
    %v1752 = vshrl.u32 %v1751, 7
    %v1753 = vsub.s32 1, %v1752
    %v1754 = vrot.slane %v1745, %v1753
    %v1755 = vlaneseq
    %v1756 = vshrl.u32 %v1755, 7
    %v1757 = vsub.s32 2, %v1756
    %v1758 = vrot.slane %v1745, %v1757
    %1762 = vmatprep.subr.mxu0 %v1743
    %1763 = vmatpush1.msra.mxu0 %v1742
    %1764 = vmatprep.subr.mxu0 %v1740
    %1765 = vmatpush1.msra.mxu0 %v1739
    %1766 = vmatprep.subr.mxu0 %v1737
    %1767 = vmatpush1.msra.mxu0 %v1736
    %1768 = vmatprep.subr.mxu0 %v1734
    %1769 = vmatpush1.msra.mxu0 %v1733
    %1770 = vmatprep.subr.mxu0 %v1731
    %1771 = vmatpush1.msra.mxu0 %v1730
    %1772 = vmatprep.subr.mxu0 %v1728
    %1773 = vmatpush1.msra.mxu0 %v1727
    %1774 = vmatprep.subr.mxu0 %v1725
    %1775 = vmatpush1.msra.mxu0 %v1724
    %1776 = vmatprep.subr.mxu0 %v1722
    %1777 = vmatpush1.msra.mxu0 %v1721
    %1778 = vmatprep.subr.mxu0 %v1719
    %1779 = vmatpush1.msra.mxu0 %v1718
    %1780 = vmatprep.subr.mxu0 %v1716
    %1781 = vmatpush1.msra.mxu0 %v1715
    %1782 = vmatprep.subr.mxu0 %v1713
    %1783 = vmatpush1.msra.mxu0 %v1712
    %1784 = vmatprep.subr.mxu0 %v1710
    %1785 = vmatpush1.msra.mxu0 %v1709
    %1786 = vmatprep.subr.mxu0 %v1707
    %1787 = vmatpush1.msra.mxu0 %v1706
    %1788 = vmatprep.subr.mxu0 %v1704
    %1789 = vmatpush1.msra.mxu0 %v1703
    %1790 = vmatprep.subr.mxu0 %v1701
    %1791 = vmatpush1.msra.mxu0 %v1700
    %1792 = vmatprep.subr.mxu0 %v1698
    %1793 = vmatpush1.msra.mxu0 %v1697
    %1794 = vmatprep.subr.mxu0 0.0
    %1795 = vmatpush2.msra.mxu0 0.0
    %1796 = vmatprep.subr.mxu0 0.0
    %1797 = vmatpush2.msra.mxu0 0.0
    %1798 = vmatprep.subr.mxu0 0.0
    %1799 = vmatpush2.msra.mxu0 0.0
    %1800 = vmatprep.subr.mxu0 0.0
    %1801 = vmatpush2.msra.mxu0 0.0
    %1802 = vmatprep.subr.mxu0 0.0
    %1803 = vmatpush2.msra.mxu0 0.0
    %1804 = vmatprep.subr.mxu0 0.0
    %1805 = vmatpush2.msra.mxu0 0.0
    %1806 = vmatprep.subr.mxu0 0.0
    %1807 = vmatpush2.msra.mxu0 0.0
    %1808 = vmatprep.subr.mxu0 0.0
    %1809 = vmatpush2.msra.mxu0 0.0
    %1810 = vmatprep.subr.mxu0 0.0
    %1811 = vmatpush2.msra.mxu0 0.0
    %1812 = vmatprep.subr.mxu0 0.0
    %1813 = vmatpush2.msra.mxu0 0.0
    %1814 = vmatprep.subr.mxu0 0.0
    %1815 = vmatpush2.msra.mxu0 0.0
    %1816 = vmatprep.subr.mxu0 0.0
    %1817 = vmatpush2.msra.mxu0 0.0
    %1818 = vmatprep.subr.mxu0 0.0
    %1819 = vmatpush2.msra.mxu0 0.0
    %1820 = vmatprep.subr.mxu0 0.0
    %1821 = vmatpush2.msra.mxu0 0.0
    %1822 = vmatprep.subr.mxu0 0.0
    %1823 = vmatpush2.msra.mxu0 0.0
    %1824 = vmatprep.subr.mxu0 0.0
    %1825 = vmatpush2.msra.mxu0 0.0
    %1826 = vmatprep.mubr.f32.mxu0 0.0
    %1827 = vmatmul.mubr.f32.gmra.mxu0 %v1490
    %v1828 = vpop.f32.mrf.mxu0
    %v1829 = vadd.f32 %v1750, %v1828
    %v1830 = vpop.f32.mrf.mxu0
    %v1831 = vadd.f32 %v1754, %v1830
    %1832 = vdwg.mxu0
    %1833 = vmatprep.subr.mxu0 0.0
    %1834 = vmatpush1.msra.mxu0 %v1744
    %1835 = vmatprep.subr.mxu0 0.0
    %1836 = vmatpush1.msra.mxu0 %v1741
    %1837 = vmatprep.subr.mxu0 0.0
    %1838 = vmatpush1.msra.mxu0 %v1738
    %1839 = vmatprep.subr.mxu0 0.0
    %1840 = vmatpush1.msra.mxu0 %v1735
    %1841 = vmatprep.subr.mxu0 0.0
    %1842 = vmatpush1.msra.mxu0 %v1732
    %1843 = vmatprep.subr.mxu0 0.0
    %1844 = vmatpush1.msra.mxu0 %v1729
    %1845 = vmatprep.subr.mxu0 0.0
    %1846 = vmatpush1.msra.mxu0 %v1726
    %1847 = vmatprep.subr.mxu0 0.0
    %1848 = vmatpush1.msra.mxu0 %v1723
    %1849 = vmatprep.subr.mxu0 0.0
    %1850 = vmatpush1.msra.mxu0 %v1720
    %1851 = vmatprep.subr.mxu0 0.0
    %1852 = vmatpush1.msra.mxu0 %v1717
    %1853 = vmatprep.subr.mxu0 0.0
    %1854 = vmatpush1.msra.mxu0 %v1714
    %1855 = vmatprep.subr.mxu0 0.0
    %1856 = vmatpush1.msra.mxu0 %v1711
    %1857 = vmatprep.subr.mxu0 0.0
    %1858 = vmatpush1.msra.mxu0 %v1708
    %1859 = vmatprep.subr.mxu0 0.0
    %1860 = vmatpush1.msra.mxu0 %v1705
    %1861 = vmatprep.subr.mxu0 0.0
    %1862 = vmatpush1.msra.mxu0 %v1702
    %1863 = vmatprep.subr.mxu0 0.0
    %1864 = vmatpush1.msra.mxu0 %v1699
    %1865 = vmatprep.subr.mxu0 0.0
    %1866 = vmatpush2.msra.mxu0 0.0
    %1867 = vmatprep.subr.mxu0 0.0
    %1868 = vmatpush2.msra.mxu0 0.0
    %1869 = vmatprep.subr.mxu0 0.0
    %1870 = vmatpush2.msra.mxu0 0.0
    %1871 = vmatprep.subr.mxu0 0.0
    %1872 = vmatpush2.msra.mxu0 0.0
    %1873 = vmatprep.subr.mxu0 0.0
    %1874 = vmatpush2.msra.mxu0 0.0
    %1875 = vmatprep.subr.mxu0 0.0
    %1876 = vmatpush2.msra.mxu0 0.0
    %1877 = vmatprep.subr.mxu0 0.0
    %1878 = vmatpush2.msra.mxu0 0.0
    %1879 = vmatprep.subr.mxu0 0.0
    %1880 = vmatpush2.msra.mxu0 0.0
    %1881 = vmatprep.subr.mxu0 0.0
    %1882 = vmatpush2.msra.mxu0 0.0
    %1883 = vmatprep.subr.mxu0 0.0
    %1884 = vmatpush2.msra.mxu0 0.0
    %1885 = vmatprep.subr.mxu0 0.0
    %1886 = vmatpush2.msra.mxu0 0.0
    %1887 = vmatprep.subr.mxu0 0.0
    %1888 = vmatpush2.msra.mxu0 0.0
    %1889 = vmatprep.subr.mxu0 0.0
    %1890 = vmatpush2.msra.mxu0 0.0
    %1891 = vmatprep.subr.mxu0 0.0
    %1892 = vmatpush2.msra.mxu0 0.0
    %1893 = vmatprep.subr.mxu0 0.0
    %1894 = vmatpush2.msra.mxu0 0.0
    %1895 = vmatprep.subr.mxu0 0.0
    %1896 = vmatpush2.msra.mxu0 0.0
    %1897 = vmatprep.mubr.f32.mxu0 0.0
    %1898 = vmatmul.mubr.f32.gmra.mxu0 %v1490
    %v1899 = vpop.f32.mrf.mxu0
    %v1900 = vadd.f32 %v1758, %v1899
    %v1901 = vpop.f32.mrf.mxu0
    %1902 = vdwg.mxu0
    %v1903 = vadd.f32 %v1623, %v1829
    %v1904 = vxor.u32 %v1903, 2147483648
    %v1905 = vmul.f32 %v1904, 1.442695
    %v1906 = vpow.pop %v1905
    %v1907 = vadd.f32 %v1906, 1.0
    %v1908 = vrcp.pop %v1907
    %v1909 = vmul.f32 1.0, %v1908
    %v1910 = vadd.f32 %v1625, %v1831
    %v1911 = vxor.u32 %v1910, 2147483648
    %v1912 = vmul.f32 %v1911, 1.442695
    %v1913 = vpow.pop %v1912
    %v1914 = vadd.f32 %v1913, 1.0
    %v1915 = vrcp.pop %v1914
    %v1916 = vmul.f32 1.0, %v1915
    %v1917 = vmul.f32 %v1909, %v1900
    %v1918 = vadd.f32 %v1694, %v1917
    %v1919 = vtanh.pop %v1918
    %v1920 = vsub.f32 1.0, %v1916
    %v1921 = vmul.f32 %v1920, %v1919
    %v1922 = vmul.f32 %v1916, %v1490
    %v1923 = vadd.f32 %v1921, %v1922
    %s1924 = scalar_lea.vmem [#allocation30], 8
    %1925 = vst [vmem:[%s1924] sm:$0xff] %v1923
    %v1926 = vmul.f32 %v1923, %v785
    %v1927 = vmul.f32 %v1923, %v791
    %v1928 = vmul.f32 %v1923, %v797
    %v1929 = vmul.f32 %v1923, %v803
    %v1930 = vmul.f32 %v1923, %v809
    %v1931 = vmul.f32 %v1923, %v815
    %v1932 = vmul.f32 %v1923, %v821
    %v1933 = vmul.f32 %v1923, %v827
    %v1934 = vmul.f32 %v1923, %v833
    %v1935 = vmul.f32 %v1923, %v839
    %v1936 = vmul.f32 %v1923, %v845
    %v1937 = vmul.f32 %v1923, %v851
    %v1938 = vmul.f32 %v1923, %v857
    %v1939 = vmul.f32 %v1923, %v863
    %v1940 = vmul.f32 %v1923, %v869
    %v1941 = vmul.f32 %v1923, %v875
    %v1942 = vld [vmem:[%s12] sm:$0xff]
    %v1943 = vld [vmem:[%s12 + $0x8] sm:$0xff]
    %v1944 = vld [vmem:[%s12 + $0x10] sm:$0xff]
    %v1945 = vld [vmem:[%s12 + $0x18] sm:$0xff]
    %v1946 = vld [vmem:[%s12 + $0x20] sm:$0xff]
    %v1947 = vld [vmem:[%s12 + $0x28] sm:$0xff]
    %v1948 = vld [vmem:[%s12 + $0x30] sm:$0xff]
    %v1949 = vld [vmem:[%s12 + $0x38] sm:$0xff]
    %v1950 = vld [vmem:[%s12 + $0x40] sm:$0xff]
    %v1951 = vld [vmem:[%s12 + $0x48] sm:$0xff]
    %v1952 = vld [vmem:[%s12 + $0x50] sm:$0xff]
    %v1953 = vld [vmem:[%s12 + $0x58] sm:$0xff]
    %v1954 = vld [vmem:[%s12 + $0x60] sm:$0xff]
    %v1955 = vld [vmem:[%s12 + $0x68] sm:$0xff]
    %v1956 = vld [vmem:[%s12 + $0x70] sm:$0xff]
    %v1957 = vld [vmem:[%s12 + $0x78] sm:$0xff]
    %1958 = vmatprep.subr.mxu0 0.0
    %1959 = vmatpush1.msra.mxu0 %v1957
    %1960 = vmatprep.subr.mxu0 0.0
    %1961 = vmatpush1.msra.mxu0 %v1956
    %1962 = vmatprep.subr.mxu0 0.0
    %1963 = vmatpush1.msra.mxu0 %v1955
    %1964 = vmatprep.subr.mxu0 0.0
    %1965 = vmatpush1.msra.mxu0 %v1954
    %1966 = vmatprep.subr.mxu0 0.0
    %1967 = vmatpush1.msra.mxu0 %v1953
    %1968 = vmatprep.subr.mxu0 0.0
    %1969 = vmatpush1.msra.mxu0 %v1952
    %1970 = vmatprep.subr.mxu0 0.0
    %1971 = vmatpush1.msra.mxu0 %v1951
    %1972 = vmatprep.subr.mxu0 0.0
    %1973 = vmatpush1.msra.mxu0 %v1950
    %1974 = vmatprep.subr.mxu0 0.0
    %1975 = vmatpush1.msra.mxu0 %v1949
    %1976 = vmatprep.subr.mxu0 0.0
    %1977 = vmatpush1.msra.mxu0 %v1948
    %1978 = vmatprep.subr.mxu0 0.0
    %1979 = vmatpush1.msra.mxu0 %v1947
    %1980 = vmatprep.subr.mxu0 0.0
    %1981 = vmatpush1.msra.mxu0 %v1946
    %1982 = vmatprep.subr.mxu0 0.0
    %1983 = vmatpush1.msra.mxu0 %v1945
    %1984 = vmatprep.subr.mxu0 0.0
    %1985 = vmatpush1.msra.mxu0 %v1944
    %1986 = vmatprep.subr.mxu0 0.0
    %1987 = vmatpush1.msra.mxu0 %v1943
    %1988 = vmatprep.subr.mxu0 0.0
    %1989 = vmatpush1.msra.mxu0 %v1942
    %1990 = vmatprep.subr.mxu0 0.0
    %1991 = vmatpush2.msra.mxu0 0.0
    %1992 = vmatprep.subr.mxu0 0.0
    %1993 = vmatpush2.msra.mxu0 0.0
    %1994 = vmatprep.subr.mxu0 0.0
    %1995 = vmatpush2.msra.mxu0 0.0
    %1996 = vmatprep.subr.mxu0 0.0
    %1997 = vmatpush2.msra.mxu0 0.0
    %1998 = vmatprep.subr.mxu0 0.0
    %1999 = vmatpush2.msra.mxu0 0.0
    %2000 = vmatprep.subr.mxu0 0.0
    %2001 = vmatpush2.msra.mxu0 0.0
    %2002 = vmatprep.subr.mxu0 0.0
    %2003 = vmatpush2.msra.mxu0 0.0
    %2004 = vmatprep.subr.mxu0 0.0
    %2005 = vmatpush2.msra.mxu0 0.0
    %2006 = vmatprep.subr.mxu0 0.0
    %2007 = vmatpush2.msra.mxu0 0.0
    %2008 = vmatprep.subr.mxu0 0.0
    %2009 = vmatpush2.msra.mxu0 0.0
    %2010 = vmatprep.subr.mxu0 0.0
    %2011 = vmatpush2.msra.mxu0 0.0
    %2012 = vmatprep.subr.mxu0 0.0
    %2013 = vmatpush2.msra.mxu0 0.0
    %2014 = vmatprep.subr.mxu0 0.0
    %2015 = vmatpush2.msra.mxu0 0.0
    %2016 = vmatprep.subr.mxu0 0.0
    %2017 = vmatpush2.msra.mxu0 0.0
    %2018 = vmatprep.subr.mxu0 0.0
    %2019 = vmatpush2.msra.mxu0 0.0
    %2020 = vmatprep.subr.mxu0 0.0
    %2021 = vmatpush2.msra.mxu0 0.0
    %2022 = vmatprep.mubr.f32.mxu0 0.0
    %2023 = vmatmul.mubr.f32.gmra.mxu0 %v1926
    %v2024 = vpop.f32.mrf.mxu0
    %v2025 = vadd.f32 0.0, %v2024
    %v2026 = vpop.f32.mrf.mxu0
    %2027 = vmatprep.mubr.f32.mxu0 0.0
    %2028 = vmatmul.mubr.f32.gmra.mxu0 %v1927
    %v2029 = vpop.f32.mrf.mxu0
    %v2030 = vadd.f32 0.0, %v2029
    %v2031 = vpop.f32.mrf.mxu0
    %2032 = vmatprep.mubr.f32.mxu0 0.0
    %2033 = vmatmul.mubr.f32.gmra.mxu0 %v1928
    %v2034 = vpop.f32.mrf.mxu0
    %v2035 = vadd.f32 0.0, %v2034
    %v2036 = vpop.f32.mrf.mxu0
    %2037 = vmatprep.mubr.f32.mxu0 0.0
    %2038 = vmatmul.mubr.f32.gmra.mxu0 %v1929
    %v2039 = vpop.f32.mrf.mxu0
    %v2040 = vadd.f32 0.0, %v2039
    %v2041 = vpop.f32.mrf.mxu0
    %2042 = vmatprep.mubr.f32.mxu0 0.0
    %2043 = vmatmul.mubr.f32.gmra.mxu0 %v1930
    %v2044 = vpop.f32.mrf.mxu0
    %v2045 = vadd.f32 0.0, %v2044
    %v2046 = vpop.f32.mrf.mxu0
    %2047 = vmatprep.mubr.f32.mxu0 0.0
    %2048 = vmatmul.mubr.f32.gmra.mxu0 %v1931
    %v2049 = vpop.f32.mrf.mxu0
    %v2050 = vadd.f32 0.0, %v2049
    %v2051 = vpop.f32.mrf.mxu0
    %2052 = vmatprep.mubr.f32.mxu0 0.0
    %2053 = vmatmul.mubr.f32.gmra.mxu0 %v1932
    %v2054 = vpop.f32.mrf.mxu0
    %v2055 = vadd.f32 0.0, %v2054
    %v2056 = vpop.f32.mrf.mxu0
    %2057 = vmatprep.mubr.f32.mxu0 0.0
    %2058 = vmatmul.mubr.f32.gmra.mxu0 %v1933
    %v2059 = vpop.f32.mrf.mxu0
    %v2060 = vadd.f32 0.0, %v2059
    %v2061 = vpop.f32.mrf.mxu0
    %2062 = vmatprep.mubr.f32.mxu0 0.0
    %2063 = vmatmul.mubr.f32.gmra.mxu0 %v1934
    %v2064 = vpop.f32.mrf.mxu0
    %v2065 = vadd.f32 0.0, %v2064
    %v2066 = vpop.f32.mrf.mxu0
    %2067 = vmatprep.mubr.f32.mxu0 0.0
    %2068 = vmatmul.mubr.f32.gmra.mxu0 %v1935
    %v2069 = vpop.f32.mrf.mxu0
    %v2070 = vadd.f32 0.0, %v2069
    %v2071 = vpop.f32.mrf.mxu0
    %2072 = vmatprep.mubr.f32.mxu0 0.0
    %2073 = vmatmul.mubr.f32.gmra.mxu0 %v1936
    %v2074 = vpop.f32.mrf.mxu0
    %v2075 = vadd.f32 0.0, %v2074
    %v2076 = vpop.f32.mrf.mxu0
    %2077 = vmatprep.mubr.f32.mxu0 0.0
    %2078 = vmatmul.mubr.f32.gmra.mxu0 %v1937
    %v2079 = vpop.f32.mrf.mxu0
    %v2080 = vadd.f32 0.0, %v2079
    %v2081 = vpop.f32.mrf.mxu0
    %2082 = vmatprep.mubr.f32.mxu0 0.0
    %2083 = vmatmul.mubr.f32.gmra.mxu0 %v1938
    %v2084 = vpop.f32.mrf.mxu0
    %v2085 = vadd.f32 0.0, %v2084
    %v2086 = vpop.f32.mrf.mxu0
    %2087 = vmatprep.mubr.f32.mxu0 0.0
    %2088 = vmatmul.mubr.f32.gmra.mxu0 %v1939
    %v2089 = vpop.f32.mrf.mxu0
    %v2090 = vadd.f32 0.0, %v2089
    %v2091 = vpop.f32.mrf.mxu0
    %2092 = vmatprep.mubr.f32.mxu0 0.0
    %2093 = vmatmul.mubr.f32.gmra.mxu0 %v1940
    %v2094 = vpop.f32.mrf.mxu0
    %v2095 = vadd.f32 0.0, %v2094
    %v2096 = vpop.f32.mrf.mxu0
    %2097 = vmatprep.mubr.f32.mxu0 0.0
    %2098 = vmatmul.mubr.f32.gmra.mxu0 %v1941
    %v2099 = vpop.f32.mrf.mxu0
    %v2100 = vadd.f32 0.0, %v2099
    %v2101 = vpop.f32.mrf.mxu0
    %2102 = vdwg.mxu0
    %v2103 = vmul.f32 %v2025, 0.17677669
    %v2104 = vmul.f32 %v2030, 0.17677669
    %v2105 = vmul.f32 %v2035, 0.17677669
    %v2106 = vmul.f32 %v2040, 0.17677669
    %v2107 = vmul.f32 %v2045, 0.17677669
    %v2108 = vmul.f32 %v2050, 0.17677669
    %v2109 = vmul.f32 %v2055, 0.17677669
    %v2110 = vmul.f32 %v2060, 0.17677669
    %v2111 = vmul.f32 %v2065, 0.17677669
    %v2112 = vmul.f32 %v2070, 0.17677669
    %v2113 = vmul.f32 %v2075, 0.17677669
    %v2114 = vmul.f32 %v2080, 0.17677669
    %v2115 = vmul.f32 %v2085, 0.17677669
    %v2116 = vmul.f32 %v2090, 0.17677669
    %v2117 = vmul.f32 %v2095, 0.17677669
    %v2118 = vmul.f32 %v2100, 0.17677669
    %v2119 = vmax.f32 %v2103, %v2107
    %v2120 = vmax.f32 %v2104, %v2108
    %v2121 = vmax.f32 %v2105, %v2109
    %v2122 = vmax.f32 %v2106, %v2110
    %v2123 = vmax.f32 %v2119, %v2111
    %v2124 = vmax.f32 %v2120, %v2112
    %v2125 = vmax.f32 %v2121, %v2113
    %v2126 = vmax.f32 %v2122, %v2114
    %v2127 = vmax.f32 %v2123, %v2115
    %v2128 = vmax.f32 %v2124, %v2116
    %v2129 = vmax.f32 %v2125, %v2117
    %v2130 = vmax.f32 %v2126, %v2118
    %v2131 = vmax.f32 %v2127, %v2128
    %v2132 = vmax.f32 %v2129, %v2130
    %v2133 = vmax.f32 %v2131, %v2132
    %v2134 = vsub.f32 %v2103, %v2133
    %v2135 = vsub.f32 %v2104, %v2133
    %v2136 = vsub.f32 %v2105, %v2133
    %v2137 = vsub.f32 %v2106, %v2133
    %v2138 = vsub.f32 %v2107, %v2133
    %v2139 = vsub.f32 %v2108, %v2133
    %v2140 = vsub.f32 %v2109, %v2133
    %v2141 = vsub.f32 %v2110, %v2133
    %v2142 = vsub.f32 %v2111, %v2133
    %v2143 = vsub.f32 %v2112, %v2133
    %v2144 = vsub.f32 %v2113, %v2133
    %v2145 = vsub.f32 %v2114, %v2133
    %v2146 = vsub.f32 %v2115, %v2133
    %v2147 = vsub.f32 %v2116, %v2133
    %v2148 = vsub.f32 %v2117, %v2133
    %v2149 = vsub.f32 %v2118, %v2133
    %v2150 = vmul.f32 %v2134, 1.442695
    %v2151 = vpow.pop %v2150
    %v2152 = vmul.f32 %v2135, 1.442695
    %v2153 = vpow.pop %v2152
    %v2154 = vmul.f32 %v2136, 1.442695
    %v2155 = vpow.pop %v2154
    %v2156 = vmul.f32 %v2137, 1.442695
    %v2157 = vpow.pop %v2156
    %v2158 = vmul.f32 %v2138, 1.442695
    %v2159 = vpow.pop %v2158
    %v2160 = vmul.f32 %v2139, 1.442695
    %v2161 = vpow.pop %v2160
    %v2162 = vmul.f32 %v2140, 1.442695
    %v2163 = vpow.pop %v2162
    %v2164 = vmul.f32 %v2141, 1.442695
    %v2165 = vpow.pop %v2164
    %v2166 = vmul.f32 %v2142, 1.442695
    %v2167 = vpow.pop %v2166
    %v2168 = vmul.f32 %v2143, 1.442695
    %v2169 = vpow.pop %v2168
    %v2170 = vmul.f32 %v2144, 1.442695
    %v2171 = vpow.pop %v2170
    %v2172 = vmul.f32 %v2145, 1.442695
    %v2173 = vpow.pop %v2172
    %v2174 = vmul.f32 %v2146, 1.442695
    %v2175 = vpow.pop %v2174
    %v2176 = vmul.f32 %v2147, 1.442695
    %v2177 = vpow.pop %v2176
    %v2178 = vmul.f32 %v2148, 1.442695
    %v2179 = vpow.pop %v2178
    %v2180 = vmul.f32 %v2149, 1.442695
    %v2181 = vpow.pop %v2180
    %v2182 = vadd.f32 %v2151, %v2153
    %v2183 = vadd.f32 %v2182, %v2155
    %v2184 = vadd.f32 %v2183, %v2157
    %v2185 = vadd.f32 %v2184, %v2159
    %v2186 = vadd.f32 %v2185, %v2161
    %v2187 = vadd.f32 %v2186, %v2163
    %v2188 = vadd.f32 %v2187, %v2165
    %v2189 = vadd.f32 %v2188, %v2167
    %v2190 = vadd.f32 %v2189, %v2169
    %v2191 = vadd.f32 %v2190, %v2171
    %v2192 = vadd.f32 %v2191, %v2173
    %v2193 = vadd.f32 %v2192, %v2175
    %v2194 = vadd.f32 %v2193, %v2177
    %v2195 = vadd.f32 %v2194, %v2179
    %v2196 = vadd.f32 %v2195, %v2181
    %v2197 = vrcp.pop %v2196
    %v2198 = vmul.f32 %v2151, %v2197
    %v2199 = vmul.f32 %v2153, %v2197
    %v2200 = vmul.f32 %v2155, %v2197
    %v2201 = vmul.f32 %v2157, %v2197
    %v2202 = vmul.f32 %v2159, %v2197
    %v2203 = vmul.f32 %v2161, %v2197
    %v2204 = vmul.f32 %v2163, %v2197
    %v2205 = vmul.f32 %v2165, %v2197
    %v2206 = vmul.f32 %v2167, %v2197
    %v2207 = vmul.f32 %v2169, %v2197
    %v2208 = vmul.f32 %v2171, %v2197
    %v2209 = vmul.f32 %v2173, %v2197
    %v2210 = vmul.f32 %v2175, %v2197
    %v2211 = vmul.f32 %v2177, %v2197
    %v2212 = vmul.f32 %v2179, %v2197
    %v2213 = vmul.f32 %v2181, %v2197
    %v2214 = vmul.f32 %v2198, %v787
    %v2215 = vmul.f32 %v2199, %v793
    %v2216 = vmul.f32 %v2200, %v799
    %v2217 = vmul.f32 %v2201, %v805
    %v2218 = vmul.f32 %v2202, %v811
    %v2219 = vmul.f32 %v2203, %v817
    %v2220 = vmul.f32 %v2204, %v823
    %v2221 = vmul.f32 %v2205, %v829
    %v2222 = vmul.f32 %v2206, %v835
    %v2223 = vmul.f32 %v2207, %v841
    %v2224 = vmul.f32 %v2208, %v847
    %v2225 = vmul.f32 %v2209, %v853
    %v2226 = vmul.f32 %v2210, %v859
    %v2227 = vmul.f32 %v2211, %v865
    %v2228 = vmul.f32 %v2212, %v871
    %v2229 = vmul.f32 %v2213, %v877
    %v2230 = vadd.f32 %v2214, %v2215
    %v2231 = vadd.f32 %v2230, %v2216
    %v2232 = vadd.f32 %v2231, %v2217
    %v2233 = vadd.f32 %v2232, %v2218
    %v2234 = vadd.f32 %v2233, %v2219
    %v2235 = vadd.f32 %v2234, %v2220
    %v2236 = vadd.f32 %v2235, %v2221
    %v2237 = vadd.f32 %v2236, %v2222
    %v2238 = vadd.f32 %v2237, %v2223
    %v2239 = vadd.f32 %v2238, %v2224
    %v2240 = vadd.f32 %v2239, %v2225
    %v2241 = vadd.f32 %v2240, %v2226
    %v2242 = vadd.f32 %v2241, %v2227
    %v2243 = vadd.f32 %v2242, %v2228
    %v2244 = vadd.f32 %v2243, %v2229
    %v2245 = vld [vmem:[#allocation14] sm:$0xff]
    %v2246 = vld [vmem:[#allocation14 + $0x8] sm:$0xff]
    %v2247 = vld [vmem:[#allocation14 + $0x10] sm:$0xff]
    %v2248 = vld [vmem:[#allocation14 + $0x18] sm:$0xff]
    %v2249 = vld [vmem:[#allocation14 + $0x20] sm:$0xff]
    %v2250 = vld [vmem:[#allocation14 + $0x28] sm:$0xff]
    %v2251 = vld [vmem:[#allocation14 + $0x30] sm:$0xff]
    %v2252 = vld [vmem:[#allocation14 + $0x38] sm:$0xff]
    %v2253 = vld [vmem:[#allocation14 + $0x40] sm:$0xff]
    %v2254 = vld [vmem:[#allocation14 + $0x48] sm:$0xff]
    %v2255 = vld [vmem:[#allocation14 + $0x50] sm:$0xff]
    %v2256 = vld [vmem:[#allocation14 + $0x58] sm:$0xff]
    %v2257 = vld [vmem:[#allocation14 + $0x60] sm:$0xff]
    %v2258 = vld [vmem:[#allocation14 + $0x68] sm:$0xff]
    %v2259 = vld [vmem:[#allocation14 + $0x70] sm:$0xff]
    %v2260 = vld [vmem:[#allocation14 + $0x78] sm:$0xff]
    %v2261 = vld [vmem:[#allocation15] sm:$0x1]
    %v2263 = vlaneseq
    %v2264 = vshrl.u32 %v2263, 7
    %v2265 = vsub.s32 0, %v2264
    %v2266 = vrot.slane %v2261, %v2265
    %2268 = vmatprep.subr.mxu0 0.0
    %2269 = vmatpush1.msra.mxu0 %v2260
    %2270 = vmatprep.subr.mxu0 0.0
    %2271 = vmatpush1.msra.mxu0 %v2259
    %2272 = vmatprep.subr.mxu0 0.0
    %2273 = vmatpush1.msra.mxu0 %v2258
    %2274 = vmatprep.subr.mxu0 0.0
    %2275 = vmatpush1.msra.mxu0 %v2257
    %2276 = vmatprep.subr.mxu0 0.0
    %2277 = vmatpush1.msra.mxu0 %v2256
    %2278 = vmatprep.subr.mxu0 0.0
    %2279 = vmatpush1.msra.mxu0 %v2255
    %2280 = vmatprep.subr.mxu0 0.0
    %2281 = vmatpush1.msra.mxu0 %v2254
    %2282 = vmatprep.subr.mxu0 0.0
    %2283 = vmatpush1.msra.mxu0 %v2253
    %2284 = vmatprep.subr.mxu0 0.0
    %2285 = vmatpush1.msra.mxu0 %v2252
    %2286 = vmatprep.subr.mxu0 0.0
    %2287 = vmatpush1.msra.mxu0 %v2251
    %2288 = vmatprep.subr.mxu0 0.0
    %2289 = vmatpush1.msra.mxu0 %v2250
    %2290 = vmatprep.subr.mxu0 0.0
    %2291 = vmatpush1.msra.mxu0 %v2249
    %2292 = vmatprep.subr.mxu0 0.0
    %2293 = vmatpush1.msra.mxu0 %v2248
    %2294 = vmatprep.subr.mxu0 0.0
    %2295 = vmatpush1.msra.mxu0 %v2247
    %2296 = vmatprep.subr.mxu0 0.0
    %2297 = vmatpush1.msra.mxu0 %v2246
    %2298 = vmatprep.subr.mxu0 0.0
    %2299 = vmatpush1.msra.mxu0 %v2245
    %2300 = vmatprep.subr.mxu0 0.0
    %2301 = vmatpush2.msra.mxu0 0.0
    %2302 = vmatprep.subr.mxu0 0.0
    %2303 = vmatpush2.msra.mxu0 0.0
    %2304 = vmatprep.subr.mxu0 0.0
    %2305 = vmatpush2.msra.mxu0 0.0
    %2306 = vmatprep.subr.mxu0 0.0
    %2307 = vmatpush2.msra.mxu0 0.0
    %2308 = vmatprep.subr.mxu0 0.0
    %2309 = vmatpush2.msra.mxu0 0.0
    %2310 = vmatprep.subr.mxu0 0.0
    %2311 = vmatpush2.msra.mxu0 0.0
    %2312 = vmatprep.subr.mxu0 0.0
    %2313 = vmatpush2.msra.mxu0 0.0
    %2314 = vmatprep.subr.mxu0 0.0
    %2315 = vmatpush2.msra.mxu0 0.0
    %2316 = vmatprep.subr.mxu0 0.0
    %2317 = vmatpush2.msra.mxu0 0.0
    %2318 = vmatprep.subr.mxu0 0.0
    %2319 = vmatpush2.msra.mxu0 0.0
    %2320 = vmatprep.subr.mxu0 0.0
    %2321 = vmatpush2.msra.mxu0 0.0
    %2322 = vmatprep.subr.mxu0 0.0
    %2323 = vmatpush2.msra.mxu0 0.0
    %2324 = vmatprep.subr.mxu0 0.0
    %2325 = vmatpush2.msra.mxu0 0.0
    %2326 = vmatprep.subr.mxu0 0.0
    %2327 = vmatpush2.msra.mxu0 0.0
    %2328 = vmatprep.subr.mxu0 0.0
    %2329 = vmatpush2.msra.mxu0 0.0
    %2330 = vmatprep.subr.mxu0 0.0
    %2331 = vmatpush2.msra.mxu0 0.0
    %2332 = vmatprep.mubr.f32.mxu0 0.0
    %2333 = vmatmul.mubr.f32.gmra.mxu0 %v2244
    %v2334 = vpop.f32.mrf.mxu0
    %v2335 = vadd.f32 %v2266, %v2334
    %v2336 = vpop.f32.mrf.mxu0
    %2337 = vdwg.mxu0
    %v2338 = vadd.f32 %v1923, %v2335
    %v2339 = vld [vmem:[#allocation27] sm:$0xff]
    %v2340 = vld [vmem:[#allocation27 + $0x8] sm:$0xff]
    %v2341 = vld [vmem:[#allocation27 + $0x10] sm:$0xff]
    %v2342 = vld [vmem:[#allocation27 + $0x18] sm:$0xff]
    %v2343 = vld [vmem:[#allocation27 + $0x20] sm:$0xff]
    %v2344 = vld [vmem:[#allocation27 + $0x28] sm:$0xff]
    %v2345 = vld [vmem:[#allocation27 + $0x30] sm:$0xff]
    %v2346 = vld [vmem:[#allocation27 + $0x38] sm:$0xff]
    %v2347 = vld [vmem:[#allocation27 + $0x40] sm:$0xff]
    %v2348 = vld [vmem:[#allocation27 + $0x48] sm:$0xff]
    %v2349 = vld [vmem:[#allocation27 + $0x50] sm:$0xff]
    %v2350 = vld [vmem:[#allocation27 + $0x58] sm:$0xff]
    %v2351 = vld [vmem:[#allocation27 + $0x60] sm:$0xff]
    %v2352 = vld [vmem:[#allocation27 + $0x68] sm:$0xff]
    %v2353 = vld [vmem:[#allocation27 + $0x70] sm:$0xff]
    %v2354 = vld [vmem:[#allocation27 + $0x78] sm:$0xff]
    %v2355 = vld [vmem:[%s22] sm:$0x1]
    %v2357 = vlaneseq
    %v2358 = vshrl.u32 %v2357, 7
    %v2359 = vsub.s32 0, %v2358
    %v2360 = vrot.slane %v2355, %v2359
    %2362 = vmatprep.subr.mxu0 0.0
    %2363 = vmatpush1.msra.mxu0 %v2354
    %2364 = vmatprep.subr.mxu0 0.0
    %2365 = vmatpush1.msra.mxu0 %v2353
    %2366 = vmatprep.subr.mxu0 0.0
    %2367 = vmatpush1.msra.mxu0 %v2352
    %2368 = vmatprep.subr.mxu0 0.0
    %2369 = vmatpush1.msra.mxu0 %v2351
    %2370 = vmatprep.subr.mxu0 0.0
    %2371 = vmatpush1.msra.mxu0 %v2350
    %2372 = vmatprep.subr.mxu0 0.0
    %2373 = vmatpush1.msra.mxu0 %v2349
    %2374 = vmatprep.subr.mxu0 0.0
    %2375 = vmatpush1.msra.mxu0 %v2348
    %2376 = vmatprep.subr.mxu0 0.0
    %2377 = vmatpush1.msra.mxu0 %v2347
    %2378 = vmatprep.subr.mxu0 0.0
    %2379 = vmatpush1.msra.mxu0 %v2346
    %2380 = vmatprep.subr.mxu0 0.0
    %2381 = vmatpush1.msra.mxu0 %v2345
    %2382 = vmatprep.subr.mxu0 0.0
    %2383 = vmatpush1.msra.mxu0 %v2344
    %2384 = vmatprep.subr.mxu0 0.0
    %2385 = vmatpush1.msra.mxu0 %v2343
    %2386 = vmatprep.subr.mxu0 0.0
    %2387 = vmatpush1.msra.mxu0 %v2342
    %2388 = vmatprep.subr.mxu0 0.0
    %2389 = vmatpush1.msra.mxu0 %v2341
    %2390 = vmatprep.subr.mxu0 0.0
    %2391 = vmatpush1.msra.mxu0 %v2340
    %2392 = vmatprep.subr.mxu0 0.0
    %2393 = vmatpush1.msra.mxu0 %v2339
    %2394 = vmatprep.subr.mxu0 0.0
    %2395 = vmatpush2.msra.mxu0 0.0
    %2396 = vmatprep.subr.mxu0 0.0
    %2397 = vmatpush2.msra.mxu0 0.0
    %2398 = vmatprep.subr.mxu0 0.0
    %2399 = vmatpush2.msra.mxu0 0.0
    %2400 = vmatprep.subr.mxu0 0.0
    %2401 = vmatpush2.msra.mxu0 0.0
    %2402 = vmatprep.subr.mxu0 0.0
    %2403 = vmatpush2.msra.mxu0 0.0
    %2404 = vmatprep.subr.mxu0 0.0
    %2405 = vmatpush2.msra.mxu0 0.0
    %2406 = vmatprep.subr.mxu0 0.0
    %2407 = vmatpush2.msra.mxu0 0.0
    %2408 = vmatprep.subr.mxu0 0.0
    %2409 = vmatpush2.msra.mxu0 0.0
    %2410 = vmatprep.subr.mxu0 0.0
    %2411 = vmatpush2.msra.mxu0 0.0
    %2412 = vmatprep.subr.mxu0 0.0
    %2413 = vmatpush2.msra.mxu0 0.0
    %2414 = vmatprep.subr.mxu0 0.0
    %2415 = vmatpush2.msra.mxu0 0.0
    %2416 = vmatprep.subr.mxu0 0.0
    %2417 = vmatpush2.msra.mxu0 0.0
    %2418 = vmatprep.subr.mxu0 0.0
    %2419 = vmatpush2.msra.mxu0 0.0
    %2420 = vmatprep.subr.mxu0 0.0
    %2421 = vmatpush2.msra.mxu0 0.0
    %2422 = vmatprep.subr.mxu0 0.0
    %2423 = vmatpush2.msra.mxu0 0.0
    %2424 = vmatprep.subr.mxu0 0.0
    %2425 = vmatpush2.msra.mxu0 0.0
    %2426 = vmatprep.mubr.f32.mxu0 0.0
    %2427 = vmatmul.mubr.f32.gmra.mxu0 %v2338
    %v2428 = vpop.f32.mrf.mxu0
    %v2429 = vadd.f32 %v2360, %v2428
    %v2430 = vpop.f32.mrf.mxu0
    %2431 = vdwg.mxu0
    %2432 = vst [vmem:[#allocation29] sm:$0xff] %v2429
    // Predicated region
    $region382: #{decoder_cnn_forward.1} parent=1 // pred_check
      _
    $region383: #{decoder_cnn_forward.1} parent=1 // pred_check_branch
      %2434 = sbr.rel (0) target = $region385
    $region384: #{decoder_cnn_forward.1} parent=1 // pred_region
      %s2436 = ssub.s32 128, 128
      %2437 = vsyncadd [#allocation8], %s2436
      %s2439 = sshll.u32 [#allocation29], 4
      %s2440 = int_to_ptr.vmem [resolvable:$true] %s2439
      %2442 = dma.vmem_to_hbm [thread:$0]  %s2440, 128, %s23, [#allocation8]
    $region385: #{decoder_cnn_forward.1} parent=1 // pred_fallthru
      _
    // Predicated region
    $region386: #{decoder_cnn_forward.1} parent=1 // pred_check
      _
    $region387: #{decoder_cnn_forward.1} parent=1 // pred_check_branch
      %2444 = sbr.rel (0) target = $region389
    $region388: #{decoder_cnn_forward.1} parent=1 // pred_region
      %s2446 = ssub.s32 256, 256
      %2447 = vsyncadd [#allocation31], %s2446
      %s2448 = sshll.u32 [#allocation30], 4
      %s2449 = int_to_ptr.vmem [resolvable:$true] %s2448
      %2454 = dma.vmem_to_hbm [thread:$0]  %s2449, 256, %s24, [#allocation31], 128, 128, 8
    $region389: #{decoder_cnn_forward.1} parent=1 // pred_fallthru
      _
    // Predicated region
    $region390: #{decoder_cnn_forward.1} parent=1 // pred_check
      _
    $region391: #{decoder_cnn_forward.1} parent=1 // pred_check_branch
      %2456 = sbr.rel (0) target = $region393
    $region392: #{decoder_cnn_forward.1} parent=1 // pred_region
      %2457 = dma.done [#allocation8], 128
    $region393: #{decoder_cnn_forward.1} parent=1 // pred_fallthru
      _
    // Predicated region
    $region394: #{decoder_cnn_forward.1} parent=1 // pred_check
      _
    $region395: #{decoder_cnn_forward.1} parent=1 // pred_check_branch
      %2459 = sbr.rel (0) target = $region397
    $region396: #{decoder_cnn_forward.1} parent=1 // pred_region
      %2460 = dma.done [#allocation31], 256
    $region397: #{decoder_cnn_forward.1} parent=1 // pred_fallthru
      _
    %2461 = vsyncpa [#allocation7], 1
    %2462 = vsyncpa [#allocation10], 1
    %2463 = vsyncpa [#allocation13], 1
    %2464 = vsyncpa [#allocation16], 1
    %2465 = vsyncpa [#allocation19], 1
    %2466 = vsyncpa [#allocation22], 1
    %2467 = vsyncpa [#allocation25], 1
    %2468 = vsyncpa [#allocation28], 1
    %2469 = vsyncpa [#allocation8], 1
    %2470 = vsyncpa [#allocation31], 1
  %2471 = vsyncmov [#allocation3]
  %s2472 = vpop.sfrf %2471
  %p2473 = scmp.eq.s32.totalorder %s2472, 0
  %p2474 = pneg %p2473
  %2476 = shalt.err (%p2474)
  %s2477 = scalar_lea.sflag [#allocation3], 1
  %2478 = vsyncmov %s2477
  %s2479 = vpop.sfrf %2478
  %p2480 = scmp.eq.s32.totalorder %s2479, 0
  %p2481 = pneg %p2480
  %2483 = shalt.err (%p2481)
  %s2484 = scalar_lea.sflag [#allocation3], 2
  %2485 = vsyncmov %s2484
  %s2486 = vpop.sfrf %2485
  %p2487 = scmp.eq.s32.totalorder %s2486, 0
  %p2488 = pneg %p2487
  %2490 = shalt.err (%p2488)
  %s2491 = scalar_lea.sflag [#allocation3], 3
  %2492 = vsyncmov %s2491
  %s2493 = vpop.sfrf %2492
  %p2494 = scmp.eq.s32.totalorder %s2493, 0
  %p2495 = pneg %p2494
  %2497 = shalt.err (%p2495)
  %s2498 = scalar_lea.sflag [#allocation3], 4
  %2499 = vsyncmov %s2498
  %s2500 = vpop.sfrf %2499
  %p2501 = scmp.eq.s32.totalorder %s2500, 0
  %p2502 = pneg %p2501
  %2504 = shalt.err (%p2502)
  %s2505 = scalar_lea.sflag [#allocation3], 5
  %2506 = vsyncmov %s2505
  %s2507 = vpop.sfrf %2506
  %p2508 = scmp.eq.s32.totalorder %s2507, 0
  %p2509 = pneg %p2508
  %2511 = shalt.err (%p2509)
  %s2512 = scalar_lea.sflag [#allocation3], 6
  %2513 = vsyncmov %s2512
  %s2514 = vpop.sfrf %2513
  %p2515 = scmp.eq.s32.totalorder %s2514, 0
  %p2516 = pneg %p2515
  %2518 = shalt.err (%p2516)
  %s2519 = scalar_lea.sflag [#allocation3], 7
  %2520 = vsyncmov %s2519
  %s2521 = vpop.sfrf %2520
  %p2522 = scmp.eq.s32.totalorder %s2521, 0
  %p2523 = pneg %p2522
  %2525 = shalt.err (%p2523)

</llo_original>
